<compile_context>
chip_gen: v7x
topology: tpu7x:2x2x1
jax: 0.10.0
libtpu: 0.0.40
codegen_flags: <defaults>
</compile_context>

<pallas_src>
import functools

import jax
import jax.numpy as jnp
from jax.experimental import pallas as pl
from jax.experimental.pallas import tpu as pltpu

IGNORE_ID = -1


# -----------------------------------------------------------------------------
# Tiling helpers (static python ints only).
# -----------------------------------------------------------------------------
def _pad_classes(odim):
    """Pad class dim up to a multiple of 128 lanes."""
    return ((odim + 127) // 128) * 128


def _row_tile(n, max_tile=2048):
    """Largest multiple-of-8 divisor of n (<= max_tile); else full n block."""
    if n % 8 != 0:
        return n
    best, t = 8, 8
    while t <= min(n, max_tile):
        if n % t == 0:
            best = t
        t += 8
    return best


def _time_chunk(t_len, stream_bytes_per_step, vmem_budget=24 * 1024 * 1024,
                max_chunk=128):
    """Largest multiple-of-8 divisor of T, capped so that the double-buffered
    per-chunk input/output streams fit the VMEM budget (v7x has only 64 MiB of
    VMEM, so keep the streamed chunks well under ~24 MiB)."""
    cap = max(8, min(max_chunk, vmem_budget // max(1, 2 * stream_bytes_per_step)))
    best, t = None, 8
    while t <= min(t_len, cap):
        if t_len % t == 0:
            best = t
        t += 8
    return best if best is not None else t_len


# -----------------------------------------------------------------------------
# Fused LSTM encoder kernel.
#   * grid = (T // tc,), sequential ("arbitrary"); h/c state in VMEM scratch.
#   * n_models models (student, optionally EMA teacher) advance in lock-step
#     over the SAME input chunk; the per-chunk input projection is one bf16
#     MXU matmul of width n_models*4H.
#   * Per-timestep accesses index the leading (time) axis only.
# -----------------------------------------------------------------------------
def lstm_enc_kernel(x_ref, wg_ref, bg_ref, u_ref, *rest, n_models, hdim):
    hout_refs = rest[:n_models]
    h_s = rest[n_models]
    c_s = rest[n_models + 1]

    @pl.when(pl.program_id(0) == 0)
    def _():
        h_s[...] = jnp.zeros_like(h_s)
        c_s[...] = jnp.zeros_like(c_s)

    tc, bsz, idim = x_ref.shape
    g = 4 * hdim

    # Fused input projection for the whole chunk (lane dim = n_models*4H).
    x2 = x_ref[...].astype(jnp.bfloat16).reshape(tc * bsz, idim)
    xw = jnp.dot(x2, wg_ref[...], preferred_element_type=jnp.float32)
    xw = (xw + bg_ref[...]).reshape(tc, bsz, n_models * g)        # f32

    us = [u_ref[m] for m in range(n_models)]          # (H, 4H) bf16, resident
    h_all = h_s[...]                                  # (M, B, H) f32
    c_all = c_s[...]
    hs = [h_all[m] for m in range(n_models)]
    cs = [c_all[m] for m in range(n_models)]

    for j in range(tc):                               # statically unrolled
        xw_j = xw[j]                                  # (B, M*4H), leading axis
        for m in range(n_models):
            gates = xw_j[:, m * g:(m + 1) * g] + jnp.dot(
                hs[m].astype(jnp.bfloat16), us[m],
                preferred_element_type=jnp.float32)
            i_g = jax.nn.sigmoid(gates[:, 0 * hdim:1 * hdim])
            f_g = jax.nn.sigmoid(gates[:, 1 * hdim:2 * hdim])
            g_g = jnp.tanh(gates[:, 2 * hdim:3 * hdim])
            o_g = jax.nn.sigmoid(gates[:, 3 * hdim:4 * hdim])
            cs[m] = f_g * cs[m] + i_g * g_g
            hs[m] = o_g * jnp.tanh(cs[m])
            hout_refs[m][j] = hs[m].astype(hout_refs[m].dtype)

    h_s[...] = jnp.stack(hs, axis=0)
    c_s[...] = jnp.stack(cs, axis=0)


def lstm_encoder(x_tm, model_params, hdim):
    """x_tm: (T, B, idim) f32 time-major.  model_params: list of per-model
    param tuples (w_cat bf16 (idim,4H), b_cat f32 (1,4H), u_cat bf16 (H,4H),
    wp_pad, bp_pad).  Returns tuple of per-model hidden states (T, B, H) f32.
    """
    t_len, bsz, idim = x_tm.shape
    n_models = len(model_params)
    g = 4 * hdim
    w_all = jnp.concatenate([p[0] for p in model_params], axis=1)  # (idim,M*4H)
    b_all = jnp.concatenate([p[1] for p in model_params], axis=1)  # (1, M*4H)
    u_all = jnp.stack([p[2] for p in model_params], axis=0)        # (M, H, 4H)

    stream_bytes = 4 * (bsz * idim + n_models * bsz * hdim)   # per-step streams
    tc = _time_chunk(t_len, stream_bytes)

    kernel = functools.partial(lstm_enc_kernel, n_models=n_models, hdim=hdim)
    out_shape = tuple(jax.ShapeDtypeStruct((t_len, bsz, hdim), jnp.float32)
                      for _ in range(n_models))
    out_specs = tuple(pl.BlockSpec((tc, bsz, hdim), lambda c: (c, 0, 0))
                      for _ in range(n_models))

    # TODO(synk): at realistic sizes, single-buffer the resident weight blocks
    # (pipeline_mode=pl.Buffered(1)) and add a leading "parallel" batch-halves
    # grid axis for v7x's 2 TensorCores once B gives (8,128)-aligned halves.
    outs = pl.pallas_call(
        kernel,
        out_shape=out_shape,
        grid_spec=pltpu.PrefetchScalarGridSpec(
            num_scalar_prefetch=0,
            grid=(t_len // tc,),
            in_specs=[pl.BlockSpec((tc, bsz, idim), lambda c: (c, 0, 0)),
                      pl.BlockSpec((idim, n_models * g), lambda c: (0, 0)),
                      pl.BlockSpec((1, n_models * g), lambda c: (0, 0)),
                      pl.BlockSpec((n_models, hdim, g), lambda c: (0, 0, 0))],
            out_specs=out_specs,
            scratch_shapes=[pltpu.VMEM((n_models, bsz, hdim), jnp.float32),
                            pltpu.VMEM((n_models, bsz, hdim), jnp.float32)],
        ),
        compiler_params=pltpu.CompilerParams(
            dimension_semantics=("arbitrary",)),
    )(x_tm, w_all, b_all, u_all)
    if not isinstance(outs, (list, tuple)):
        outs = (outs,)
    return tuple(outs)


# -----------------------------------------------------------------------------
# Loss kernel 1: fused output-projection + cross entropy.
# Logits tile is computed in-kernel (hid @ wp_pad + bp_pad) and never hits HBM.
# Class dim padded to 128 lanes; pad columns masked inside the kernel.
# -----------------------------------------------------------------------------
def ce_fused_kernel(hid_ref, wp_ref, bp_ref, labels_ref, nll_ref, cnt_ref,
                    *, num_classes):
    @pl.when(pl.program_id(0) == 0)
    def _():
        nll_ref[...] = jnp.zeros_like(nll_ref)
        cnt_ref[...] = jnp.zeros_like(cnt_ref)

    logits = jnp.dot(hid_ref[...].astype(jnp.bfloat16), wp_ref[...],
                     preferred_element_type=jnp.float32) + bp_ref[...]
    labels = labels_ref[...]                             # (TN, 1) int32
    n, cpad = logits.shape

    col = jax.lax.broadcasted_iota(jnp.int32, (n, cpad), 1)
    valid = col < num_classes
    ml = jnp.where(valid, logits, jnp.float32(-1e30))
    m = jnp.max(ml, axis=-1, keepdims=True)
    lse = m + jnp.log(jnp.sum(jnp.exp(ml - m), axis=-1, keepdims=True))
    picked = jnp.sum(jnp.where(col == labels, logits, 0.0),
                     axis=-1, keepdims=True)             # logits[label]
    row_mask = (labels != IGNORE_ID).astype(jnp.float32)

    nll_ref[...] += jnp.sum((lse - picked) * row_mask, keepdims=True)
    cnt_ref[...] += jnp.sum(row_mask, keepdims=True)


def ce_loss(hid, labels, wp_pad, bp_pad, odim):
    """hid: (N, H) f32; labels: (N,). CE with ignore_index=-1, mean reduction."""
    n, hdim = hid.shape
    cpad = wp_pad.shape[1]
    npad = pl.cdiv(n, 8) * 8
    if npad != n:
        hid = jnp.pad(hid, ((0, npad - n), (0, 0)))
        labels = jnp.pad(labels, (0, npad - n), constant_values=IGNORE_ID)
    labels2d = labels.reshape(npad, 1).astype(jnp.int32)
    tn = _row_tile(npad)

    nll, cnt = pl.pallas_call(
        functools.partial(ce_fused_kernel, num_classes=odim),
        out_shape=(jax.ShapeDtypeStruct((1, 1), jnp.float32),
                   jax.ShapeDtypeStruct((1, 1), jnp.float32)),
        grid_spec=pltpu.PrefetchScalarGridSpec(
            num_scalar_prefetch=0,
            grid=(npad // tn,),
            in_specs=[pl.BlockSpec((tn, hdim), lambda i: (i, 0)),
                      pl.BlockSpec((hdim, cpad), lambda i: (0, 0)),
                      pl.BlockSpec((1, cpad), lambda i: (0, 0)),
                      pl.BlockSpec((tn, 1), lambda i: (i, 0))],
            out_specs=(pl.BlockSpec((1, 1), lambda i: (0, 0)),
                       pl.BlockSpec((1, 1), lambda i: (0, 0))),
        ),
        compiler_params=pltpu.CompilerParams(
            dimension_semantics=("arbitrary",)),
    )(hid, wp_pad, bp_pad, labels2d)
    # NOTE: like F.cross_entropy(mean), an all-ignored batch gives 0/0 -> NaN.
    return nll[0, 0] / cnt[0, 0]


# -----------------------------------------------------------------------------
# Loss kernel 2: fused output-projections + teacher accuracy + softmax MSE.
# Student and teacher logit tiles are computed in-kernel from hidden tiles.
# -----------------------------------------------------------------------------
def acc_mse_fused_kernel(hid_s_ref, hid_t_ref, wps_ref, bps_ref,
                         wpt_ref, bpt_ref, labels_ref,
                         corr_ref, cnt_ref, sq_ref, *, num_classes, n_rows):
    @pl.when(pl.program_id(0) == 0)
    def _():
        corr_ref[...] = jnp.zeros_like(corr_ref)
        cnt_ref[...] = jnp.zeros_like(cnt_ref)
        sq_ref[...] = jnp.zeros_like(sq_ref)

    s = jnp.dot(hid_s_ref[...].astype(jnp.bfloat16), wps_ref[...],
                preferred_element_type=jnp.float32) + bps_ref[...]
    t = jnp.dot(hid_t_ref[...].astype(jnp.bfloat16), wpt_ref[...],
                preferred_element_type=jnp.float32) + bpt_ref[...]
    labels = labels_ref[...]                             # (TN, 1)
    n, cpad = t.shape

    col = jax.lax.broadcasted_iota(jnp.int32, (n, cpad), 1)
    valid = col < num_classes
    neg = jnp.float32(-1e30)
    s_m = jnp.where(valid, s, neg)
    t_m = jnp.where(valid, t, neg)

    # teacher argmax accuracy (th_accuracy, ignore_label=-1); first max wins.
    t_max = jnp.max(t_m, axis=-1, keepdims=True)
    pred = jnp.min(jnp.where(t_m == t_max, col, cpad), axis=-1, keepdims=True)
    row_mask = labels != IGNORE_ID
    corr_ref[...] += jnp.sum(
        jnp.where(row_mask & (pred == labels), 1.0, 0.0), keepdims=True)
    cnt_ref[...] += jnp.sum(row_mask.astype(jnp.float32), keepdims=True)

    # softmax over valid classes only; rows added for tiling pad are excluded
    # via a global row-index mask (ignore-labeled rows DO contribute, matching
    # the reference softmax_mse_loss which is label-agnostic).
    s_max = jnp.max(s_m, axis=-1, keepdims=True)
    e_s = jnp.exp(s_m - s_max)
    e_t = jnp.exp(t_m - t_max)
    sm_s = e_s / jnp.sum(e_s, axis=-1, keepdims=True)
    sm_t = e_t / jnp.sum(e_t, axis=-1, keepdims=True)
    ridx = pl.program_id(0) * n + jax.lax.broadcasted_iota(jnp.int32, (n, 1), 0)
    real = (ridx < n_rows).astype(jnp.float32)
    diff = sm_s - sm_t
    sq_ref[...] += jnp.sum(diff * diff * real, keepdims=True)


def acc_and_softmax_mse(hid_stu, hid_ema, labels, wp_s, bp_s, wp_t, bp_t, odim):
    n, hdim = hid_stu.shape
    cpad = wp_s.shape[1]
    npad = pl.cdiv(n, 8) * 8
    if npad != n:
        hid_stu = jnp.pad(hid_stu, ((0, npad - n), (0, 0)))
        hid_ema = jnp.pad(hid_ema, ((0, npad - n), (0, 0)))
        labels = jnp.pad(labels, (0, npad - n), constant_values=IGNORE_ID)
    labels2d = labels.reshape(npad, 1).astype(jnp.int32)
    tn = _row_tile(npad)

    corr, cnt, sq = pl.pallas_call(
        functools.partial(acc_mse_fused_kernel, num_classes=odim, n_rows=n),
        out_shape=(jax.ShapeDtypeStruct((1, 1), jnp.float32),) * 3,
        grid_spec=pltpu.PrefetchScalarGridSpec(
            num_scalar_prefetch=0,
            grid=(npad // tn,),
            in_specs=[pl.BlockSpec((tn, hdim), lambda i: (i, 0)),
                      pl.BlockSpec((tn, hdim), lambda i: (i, 0)),
                      pl.BlockSpec((hdim, cpad), lambda i: (0, 0)),
                      pl.BlockSpec((1, cpad), lambda i: (0, 0)),
                      pl.BlockSpec((hdim, cpad), lambda i: (0, 0)),
                      pl.BlockSpec((1, cpad), lambda i: (0, 0)),
                      pl.BlockSpec((tn, 1), lambda i: (i, 0))],
            out_specs=(pl.BlockSpec((1, 1), lambda i: (0, 0)),) * 3,
        ),
        compiler_params=pltpu.CompilerParams(
            dimension_semantics=("arbitrary",)),
    )(hid_stu, hid_ema, wp_s, bp_s, wp_t, bp_t, labels2d)
    acc = corr[0, 0] / cnt[0, 0]
    # NOTE: F.mse_loss(reduction='mean') => divide by N*odim.
    mse = sq[0, 0] / jnp.float32(n * odim)
    return acc, mse


# -----------------------------------------------------------------------------
# E2E.forward
# -----------------------------------------------------------------------------
def match_pad_tm(hid_tm, ys):
    """Time-major analogue of E2E.match_pad: trim ys to pred length."""
    t_pred, t_ys = hid_tm.shape[0], ys.shape[1]
    if t_pred < t_ys:
        ys = ys[:, :t_pred]
    elif t_pred > t_ys:
        raise ValueError("target size {} and pred size {} is mismatch"
                         .format(t_ys, t_pred))
    return hid_tm, ys


@functools.partial(jax.jit,
                   static_argnames=("hdim", "odim", "compute_consistency"))
def e2e_forward(xs_pad, ys_pad, ul_xs_pad, ul_ys_pad,
                enc_params, ema_params, hdim, odim, compute_consistency=True):
    wp_s, bp_s = enc_params[3], enc_params[4]

    # ---- labeled branch: student encoder + fused projection/CE -------------
    xs_tm = jnp.transpose(xs_pad, (1, 0, 2))               # (T, B, idim)
    (hid_lab,) = lstm_encoder(xs_tm, [enc_params], hdim)   # (T, B, H)
    hid_lab, ys = match_pad_tm(hid_lab, ys_pad)
    t_pred, bsz = hid_lab.shape[0], hid_lab.shape[1]
    labels_lab = jnp.transpose(ys, (1, 0)).reshape(t_pred * bsz)
    loss_ce = ce_loss(hid_lab.reshape(t_pred * bsz, hdim), labels_lab,
                      wp_s, bp_s, odim)

    # ---- unlabeled branch: student + EMA teacher in ONE recurrence sweep ----
    if compute_consistency:
        ul_tm = jnp.transpose(ul_xs_pad, (1, 0, 2))
        hid_ul_stu, hid_ul_ema = lstm_encoder(
            ul_tm, [enc_params, ema_params], hdim)
        hid_ul_stu, ul_ys = match_pad_tm(hid_ul_stu, ul_ys_pad)
        hid_ul_ema, _ = match_pad_tm(hid_ul_ema, ul_ys_pad)
        t_ul, b_ul = hid_ul_stu.shape[0], hid_ul_stu.shape[1]
        labels_ul = jnp.transpose(ul_ys, (1, 0)).reshape(t_ul * b_ul)
        wp_t, bp_t = ema_params[3], ema_params[4]
        ema_acc, loss_mse = acc_and_softmax_mse(
            hid_ul_stu.reshape(t_ul * b_ul, hdim),
            jax.lax.stop_gradient(hid_ul_ema).reshape(t_ul * b_ul, hdim),
            labels_ul, wp_s, bp_s, wp_t, bp_t, odim)
    else:
        ema_acc = jnp.float32(0.0)
        loss_mse = jnp.float32(0.0)

    consistency_weight = jnp.float32(0.0)   # process_info is None in this script
    loss = loss_ce + consistency_weight * loss_mse
    return loss, loss_ce, loss_mse, ema_acc


# -----------------------------------------------------------------------------
# Deterministic parameter init (LeCun normal weights, zero biases), packed for
# the fused-gate / padded-class kernels. Gate order along 4H: [i, f, g, o].
# MXU operand weights are stored in bf16; biases stay f32.
# -----------------------------------------------------------------------------
def init_encoder_params(key, idim, hdim, odim):
    ks = jax.random.split(key, 9)

    def lecun(k, shape, fan_in):
        return jax.random.normal(k, shape, jnp.float32) * (fan_in ** -0.5)

    wi, wf, wg, wo = (lecun(ks[i], (idim, hdim), idim) for i in range(4))
    ui, uf, ug, uo = (lecun(ks[4 + i], (hdim, hdim), hdim) for i in range(4))

    w_cat = jnp.concatenate([wi, wf, wg, wo], axis=1).astype(jnp.bfloat16)
    u_cat = jnp.concatenate([ui, uf, ug, uo], axis=1).astype(jnp.bfloat16)
    b_cat = jnp.zeros((1, 4 * hdim), jnp.float32)

    cpad = _pad_classes(odim)
    wp = lecun(ks[8], (hdim, odim), hdim)
    wp_pad = jnp.pad(wp, ((0, 0), (0, cpad - odim))).astype(jnp.bfloat16)
    bp_pad = jnp.zeros((1, cpad), jnp.float32)
    return (w_cat, b_cat, u_cat, wp_pad, bp_pad)


if __name__ == "__main__":
    B, T, IDIM, HDIM, ODIM = 2, 8, 16, 32, 10   # 4*HDIM = 128 lanes per model

    key = jax.random.PRNGKey(0)
    k_x, k_y, k_ux, k_uy, k_enc, k_ema = jax.random.split(key, 6)

    xs_pad = jax.random.normal(k_x, (B, T, IDIM), jnp.float32)
    ul_xs_pad = jax.random.normal(k_ux, (B, T, IDIM), jnp.float32)

    ys_pad = jax.random.randint(k_y, (B, T), 0, ODIM, jnp.int32)
    ys_pad = ys_pad.at[:, -2:].set(IGNORE_ID)          # some padded targets
    ul_ys_pad = jax.random.randint(k_uy, (B, T), 0, ODIM, jnp.int32)
    ul_ys_pad = ul_ys_pad.at[:, -1:].set(IGNORE_ID)

    enc_params = init_encoder_params(k_enc, IDIM, HDIM, ODIM)
    ema_params = init_encoder_params(k_ema, IDIM, HDIM, ODIM)

    loss, loss_ce, loss_mse, ema_acc = e2e_forward(
        xs_pad, ys_pad, ul_xs_pad, ul_ys_pad,
        enc_params, ema_params, hdim=HDIM, odim=ODIM,
        compute_consistency=True)
    jax.block_until_ready((loss, loss_ce, loss_mse, ema_acc))
    print("KERNEL_OK")
</pallas_src>

<mosaic_0001>
module attributes {stable_mosaic.version = 11 : i64} {
  func.func @lstm_enc_kernel(%arg0: i32, %arg1: memref<8x2x16xf32, #tpu.memory_space<vmem>>, %arg2: memref<16x256xbf16, #tpu.memory_space<vmem>>, %arg3: memref<1x256xf32, #tpu.memory_space<vmem>>, %arg4: memref<2x32x128xbf16, #tpu.memory_space<vmem>>, %arg5: memref<8x2x32xf32, #tpu.memory_space<vmem>>, %arg6: memref<8x2x32xf32, #tpu.memory_space<vmem>>, %arg7: memref<2x2x32xf32, #tpu.memory_space<vmem>>, %arg8: memref<2x2x32xf32, #tpu.memory_space<vmem>>) attributes {dimension_semantics = [#tpu.dimension_semantics<arbitrary>], iteration_bounds = array<i64: 1>, scalar_prefetch = 0 : i64, scratch_operands = 2 : i64, tpu.core_type = #tpu.core_type<tc>, window_params = [{transform_indices = @transform_0, window_bounds = array<i64: 8, 2, 16>}, {pipeline_mode = #tpu.pipeline_mode<synchronous>, transform_indices = @transform_1, window_bounds = array<i64: 16, 256>}, {pipeline_mode = #tpu.pipeline_mode<synchronous>, transform_indices = @transform_2, window_bounds = array<i64: 1, 256>}, {pipeline_mode = #tpu.pipeline_mode<synchronous>, transform_indices = @transform_3, window_bounds = array<i64: 2, 32, 128>}, {transform_indices = @transform_4, window_bounds = array<i64: 8, 2, 32>}, {transform_indices = @transform_5, window_bounds = array<i64: 8, 2, 32>}]} {
    %c0_i32 = arith.constant 0 : i32
    %0 = arith.cmpi eq, %arg0, %c0_i32 : i32
    %1 = arith.extui %0 : i1 to i32
    %c0_i32_0 = arith.constant 0 : i32
    %2 = arith.cmpi ne, %1, %c0_i32_0 : i32
    scf.if %2 {
      %cst_130 = arith.constant 0.000000e+00 : f32
      %562 = vector.broadcast %cst_130 : f32 to vector<2x2x32xf32>
      %c0_131 = arith.constant 0 : index
      %c0_132 = arith.constant 0 : index
      %c0_133 = arith.constant 0 : index
      %563 = vector.load %arg7[%c0_131, %c0_132, %c0_133] : memref<2x2x32xf32, #tpu.memory_space<vmem>>, vector<2x2x32xf32>
      tpu.vector_store %arg7[%c0_131, %c0_132, %c0_133], %562 {strides = array<i32>} : memref<2x2x32xf32, #tpu.memory_space<vmem>>, vector<2x2x32xf32>,
      %cst_134 = arith.constant 0.000000e+00 : f32
      %564 = vector.broadcast %cst_134 : f32 to vector<2x2x32xf32>
      %c0_135 = arith.constant 0 : index
      %c0_136 = arith.constant 0 : index
      %c0_137 = arith.constant 0 : index
      %565 = vector.load %arg8[%c0_135, %c0_136, %c0_137] : memref<2x2x32xf32, #tpu.memory_space<vmem>>, vector<2x2x32xf32>
      tpu.vector_store %arg8[%c0_135, %c0_136, %c0_137], %564 {strides = array<i32>} : memref<2x2x32xf32, #tpu.memory_space<vmem>>, vector<2x2x32xf32>,
    } else {
    }
    %c0 = arith.constant 0 : index
    %c0_1 = arith.constant 0 : index
    %c0_2 = arith.constant 0 : index
    %3 = vector.load %arg1[%c0, %c0_1, %c0_2] : memref<8x2x16xf32, #tpu.memory_space<vmem>>, vector<8x2x16xf32>
    %4 = arith.truncf %3 : vector<8x2x16xf32> to vector<8x2x16xbf16>
    %5 = vector.shape_cast %4 : vector<8x2x16xbf16> to vector<16x16xbf16>
    %c0_3 = arith.constant 0 : index
    %c0_4 = arith.constant 0 : index
    %6 = vector.load %arg2[%c0_3, %c0_4] : memref<16x256xbf16, #tpu.memory_space<vmem>>, vector<16x256xbf16>
    %cst = arith.constant dense<0.000000e+00> : vector<16x256xf32>
    %7 = tpu.matmul %5, %6, %cst {dimension_numbers = #tpu.dot_dimension_numbers<[1], [0], [0], [1], [0, 0, 1, 1], [], []>} : vector<16x16xbf16>, vector<16x256xbf16>, vector<16x256xf32> -> vector<16x256xf32>
    %c0_5 = arith.constant 0 : index
    %c0_6 = arith.constant 0 : index
    %8 = vector.load %arg3[%c0_5, %c0_6] : memref<1x256xf32, #tpu.memory_space<vmem>>, vector<1x256xf32>
    %9 = vector.broadcast %8 : vector<1x256xf32> to vector<16x256xf32>
    %10 = arith.addf %7, %9 : vector<16x256xf32>
    %11 = vector.shape_cast %10 : vector<16x256xf32> to vector<8x2x256xf32>
    %c0_7 = arith.constant 0 : index
    %c0_8 = arith.constant 0 : index
    %c0_9 = arith.constant 0 : index
    %12 = vector.load %arg4[%c0_7, %c0_8, %c0_9] : memref<2x32x128xbf16, #tpu.memory_space<vmem>>, vector<1x32x128xbf16>
    %13 = vector.shape_cast %12 : vector<1x32x128xbf16> to vector<32x128xbf16>
    %c1 = arith.constant 1 : index
    %c0_10 = arith.constant 0 : index
    %c0_11 = arith.constant 0 : index
    %14 = vector.load %arg4[%c1, %c0_10, %c0_11] : memref<2x32x128xbf16, #tpu.memory_space<vmem>>, vector<1x32x128xbf16>
    %15 = vector.shape_cast %14 : vector<1x32x128xbf16> to vector<32x128xbf16>
    %c0_12 = arith.constant 0 : index
    %c0_13 = arith.constant 0 : index
    %c0_14 = arith.constant 0 : index
    %16 = vector.load %arg7[%c0_12, %c0_13, %c0_14] : memref<2x2x32xf32, #tpu.memory_space<vmem>>, vector<2x2x32xf32>
    %c0_15 = arith.constant 0 : index
    %c0_16 = arith.constant 0 : index
    %c0_17 = arith.constant 0 : index
    %17 = vector.load %arg8[%c0_15, %c0_16, %c0_17] : memref<2x2x32xf32, #tpu.memory_space<vmem>>, vector<2x2x32xf32>
    %18 = vector.extract_strided_slice %16 {offsets = [0, 0, 0], sizes = [1, 2, 32], strides = [1, 1, 1]} : vector<2x2x32xf32> to vector<1x2x32xf32>
    %19 = vector.shape_cast %18 : vector<1x2x32xf32> to vector<2x32xf32>
    %20 = vector.extract_strided_slice %16 {offsets = [1, 0, 0], sizes = [1, 2, 32], strides = [1, 1, 1]} : vector<2x2x32xf32> to vector<1x2x32xf32>
    %21 = vector.shape_cast %20 : vector<1x2x32xf32> to vector<2x32xf32>
    %22 = vector.extract_strided_slice %17 {offsets = [0, 0, 0], sizes = [1, 2, 32], strides = [1, 1, 1]} : vector<2x2x32xf32> to vector<1x2x32xf32>
    %23 = vector.shape_cast %22 : vector<1x2x32xf32> to vector<2x32xf32>
    %24 = vector.extract_strided_slice %17 {offsets = [1, 0, 0], sizes = [1, 2, 32], strides = [1, 1, 1]} : vector<2x2x32xf32> to vector<1x2x32xf32>
    %25 = vector.shape_cast %24 : vector<1x2x32xf32> to vector<2x32xf32>
    %26 = vector.extract_strided_slice %11 {offsets = [0, 0, 0], sizes = [1, 2, 256], strides = [1, 1, 1]} : vector<8x2x256xf32> to vector<1x2x256xf32>
    %27 = vector.shape_cast %26 : vector<1x2x256xf32> to vector<2x256xf32>
    %28 = vector.extract_strided_slice %27 {offsets = [0, 0], sizes = [2, 128], strides = [1, 1]} : vector<2x256xf32> to vector<2x128xf32>
    %29 = arith.truncf %19 : vector<2x32xf32> to vector<2x32xbf16>
    %cst_18 = arith.constant dense<0.000000e+00> : vector<2x128xf32>
    %30 = tpu.matmul %29, %13, %cst_18 {dimension_numbers = #tpu.dot_dimension_numbers<[1], [0], [0], [1], [0, 0, 1, 1], [], []>} : vector<2x32xbf16>, vector<32x128xbf16>, vector<2x128xf32> -> vector<2x128xf32>
    %31 = arith.addf %28, %30 : vector<2x128xf32>
    %32 = vector.extract_strided_slice %31 {offsets = [0, 0], sizes = [2, 32], strides = [1, 1]} : vector<2x128xf32> to vector<2x32xf32>
    %33 = arith.negf %32 : vector<2x32xf32>
    %34 = math.exp %33 : vector<2x32xf32>
    %cst_19 = arith.constant 1.000000e+00 : f32
    %35 = vector.broadcast %cst_19 : f32 to vector<2x32xf32>
    %36 = arith.addf %35, %34 : vector<2x32xf32>
    %37 = arith.divf %35, %36 : vector<2x32xf32>
    %38 = vector.extract_strided_slice %31 {offsets = [0, 32], sizes = [2, 32], strides = [1, 1]} : vector<2x128xf32> to vector<2x32xf32>
    %39 = arith.negf %38 : vector<2x32xf32>
    %40 = math.exp %39 : vector<2x32xf32>
    %cst_20 = arith.constant 1.000000e+00 : f32
    %41 = vector.broadcast %cst_20 : f32 to vector<2x32xf32>
    %42 = arith.addf %41, %40 : vector<2x32xf32>
    %43 = arith.divf %41, %42 : vector<2x32xf32>
    %44 = vector.extract_strided_slice %31 {offsets = [0, 64], sizes = [2, 32], strides = [1, 1]} : vector<2x128xf32> to vector<2x32xf32>
    %45 = math.tanh %44 : vector<2x32xf32>
    %46 = vector.extract_strided_slice %31 {offsets = [0, 96], sizes = [2, 32], strides = [1, 1]} : vector<2x128xf32> to vector<2x32xf32>
    %47 = arith.negf %46 : vector<2x32xf32>
    %48 = math.exp %47 : vector<2x32xf32>
    %cst_21 = arith.constant 1.000000e+00 : f32
    %49 = vector.broadcast %cst_21 : f32 to vector<2x32xf32>
    %50 = arith.addf %49, %48 : vector<2x32xf32>
    %51 = arith.divf %49, %50 : vector<2x32xf32>
    %52 = arith.mulf %43, %23 : vector<2x32xf32>
    %53 = arith.mulf %37, %45 : vector<2x32xf32>
    %54 = arith.addf %52, %53 : vector<2x32xf32>
    %55 = math.tanh %54 : vector<2x32xf32>
    %56 = arith.mulf %51, %55 : vector<2x32xf32>
    %c0_22 = arith.constant 0 : index
    %c0_23 = arith.constant 0 : index
    %c0_24 = arith.constant 0 : index
    %57 = vector.load %arg5[%c0_22, %c0_23, %c0_24] : memref<8x2x32xf32, #tpu.memory_space<vmem>>, vector<1x2x32xf32>
    %58 = vector.shape_cast %57 : vector<1x2x32xf32> to vector<2x32xf32>
    %59 = vector.shape_cast %56 : vector<2x32xf32> to vector<1x2x32xf32>
    tpu.vector_store %arg5[%c0_22, %c0_23, %c0_24], %59 {strides = array<i32>} : memref<8x2x32xf32, #tpu.memory_space<vmem>>, vector<1x2x32xf32>,
    %60 = vector.extract_strided_slice %27 {offsets = [0, 128], sizes = [2, 128], strides = [1, 1]} : vector<2x256xf32> to vector<2x128xf32>
    %61 = arith.truncf %21 : vector<2x32xf32> to vector<2x32xbf16>
    %cst_25 = arith.constant dense<0.000000e+00> : vector<2x128xf32>
    %62 = tpu.matmul %61, %15, %cst_25 {dimension_numbers = #tpu.dot_dimension_numbers<[1], [0], [0], [1], [0, 0, 1, 1], [], []>} : vector<2x32xbf16>, vector<32x128xbf16>, vector<2x128xf32> -> vector<2x128xf32>
    %63 = arith.addf %60, %62 : vector<2x128xf32>
    %64 = vector.extract_strided_slice %63 {offsets = [0, 0], sizes = [2, 32], strides = [1, 1]} : vector<2x128xf32> to vector<2x32xf32>
    %65 = arith.negf %64 : vector<2x32xf32>
    %66 = math.exp %65 : vector<2x32xf32>
    %cst_26 = arith.constant 1.000000e+00 : f32
    %67 = vector.broadcast %cst_26 : f32 to vector<2x32xf32>
    %68 = arith.addf %67, %66 : vector<2x32xf32>
    %69 = arith.divf %67, %68 : vector<2x32xf32>
    %70 = vector.extract_strided_slice %63 {offsets = [0, 32], sizes = [2, 32], strides = [1, 1]} : vector<2x128xf32> to vector<2x32xf32>
    %71 = arith.negf %70 : vector<2x32xf32>
    %72 = math.exp %71 : vector<2x32xf32>
    %cst_27 = arith.constant 1.000000e+00 : f32
    %73 = vector.broadcast %cst_27 : f32 to vector<2x32xf32>
    %74 = arith.addf %73, %72 : vector<2x32xf32>
    %75 = arith.divf %73, %74 : vector<2x32xf32>
    %76 = vector.extract_strided_slice %63 {offsets = [0, 64], sizes = [2, 32], strides = [1, 1]} : vector<2x128xf32> to vector<2x32xf32>
    %77 = math.tanh %76 : vector<2x32xf32>
    %78 = vector.extract_strided_slice %63 {offsets = [0, 96], sizes = [2, 32], strides = [1, 1]} : vector<2x128xf32> to vector<2x32xf32>
    %79 = arith.negf %78 : vector<2x32xf32>
    %80 = math.exp %79 : vector<2x32xf32>
    %cst_28 = arith.constant 1.000000e+00 : f32
    %81 = vector.broadcast %cst_28 : f32 to vector<2x32xf32>
    %82 = arith.addf %81, %80 : vector<2x32xf32>
    %83 = arith.divf %81, %82 : vector<2x32xf32>
    %84 = arith.mulf %75, %25 : vector<2x32xf32>
    %85 = arith.mulf %69, %77 : vector<2x32xf32>
    %86 = arith.addf %84, %85 : vector<2x32xf32>
    %87 = math.tanh %86 : vector<2x32xf32>
    %88 = arith.mulf %83, %87 : vector<2x32xf32>
    %c0_29 = arith.constant 0 : index
    %c0_30 = arith.constant 0 : index
    %c0_31 = arith.constant 0 : index
    %89 = vector.load %arg6[%c0_29, %c0_30, %c0_31] : memref<8x2x32xf32, #tpu.memory_space<vmem>>, vector<1x2x32xf32>
    %90 = vector.shape_cast %89 : vector<1x2x32xf32> to vector<2x32xf32>
    %91 = vector.shape_cast %88 : vector<2x32xf32> to vector<1x2x32xf32>
    tpu.vector_store %arg6[%c0_29, %c0_30, %c0_31], %91 {strides = array<i32>} : memref<8x2x32xf32, #tpu.memory_space<vmem>>, vector<1x2x32xf32>,
    %92 = vector.extract_strided_slice %11 {offsets = [1, 0, 0], sizes = [1, 2, 256], strides = [1, 1, 1]} : vector<8x2x256xf32> to vector<1x2x256xf32>
    %93 = vector.shape_cast %92 : vector<1x2x256xf32> to vector<2x256xf32>
    %94 = vector.extract_strided_slice %93 {offsets = [0, 0], sizes = [2, 128], strides = [1, 1]} : vector<2x256xf32> to vector<2x128xf32>
    %95 = arith.truncf %56 : vector<2x32xf32> to vector<2x32xbf16>
    %cst_32 = arith.constant dense<0.000000e+00> : vector<2x128xf32>
    %96 = tpu.matmul %95, %13, %cst_32 {dimension_numbers = #tpu.dot_dimension_numbers<[1], [0], [0], [1], [0, 0, 1, 1], [], []>} : vector<2x32xbf16>, vector<32x128xbf16>, vector<2x128xf32> -> vector<2x128xf32>
    %97 = arith.addf %94, %96 : vector<2x128xf32>
    %98 = vector.extract_strided_slice %97 {offsets = [0, 0], sizes = [2, 32], strides = [1, 1]} : vector<2x128xf32> to vector<2x32xf32>
    %99 = arith.negf %98 : vector<2x32xf32>
    %100 = math.exp %99 : vector<2x32xf32>
    %cst_33 = arith.constant 1.000000e+00 : f32
    %101 = vector.broadcast %cst_33 : f32 to vector<2x32xf32>
    %102 = arith.addf %101, %100 : vector<2x32xf32>
    %103 = arith.divf %101, %102 : vector<2x32xf32>
    %104 = vector.extract_strided_slice %97 {offsets = [0, 32], sizes = [2, 32], strides = [1, 1]} : vector<2x128xf32> to vector<2x32xf32>
    %105 = arith.negf %104 : vector<2x32xf32>
    %106 = math.exp %105 : vector<2x32xf32>
    %cst_34 = arith.constant 1.000000e+00 : f32
    %107 = vector.broadcast %cst_34 : f32 to vector<2x32xf32>
    %108 = arith.addf %107, %106 : vector<2x32xf32>
    %109 = arith.divf %107, %108 : vector<2x32xf32>
    %110 = vector.extract_strided_slice %97 {offsets = [0, 64], sizes = [2, 32], strides = [1, 1]} : vector<2x128xf32> to vector<2x32xf32>
    %111 = math.tanh %110 : vector<2x32xf32>
    %112 = vector.extract_strided_slice %97 {offsets = [0, 96], sizes = [2, 32], strides = [1, 1]} : vector<2x128xf32> to vector<2x32xf32>
    %113 = arith.negf %112 : vector<2x32xf32>
    %114 = math.exp %113 : vector<2x32xf32>
    %cst_35 = arith.constant 1.000000e+00 : f32
    %115 = vector.broadcast %cst_35 : f32 to vector<2x32xf32>
    %116 = arith.addf %115, %114 : vector<2x32xf32>
    %117 = arith.divf %115, %116 : vector<2x32xf32>
    %118 = arith.mulf %109, %54 : vector<2x32xf32>
    %119 = arith.mulf %103, %111 : vector<2x32xf32>
    %120 = arith.addf %118, %119 : vector<2x32xf32>
    %121 = math.tanh %120 : vector<2x32xf32>
    %122 = arith.mulf %117, %121 : vector<2x32xf32>
    %c1_36 = arith.constant 1 : index
    %c0_37 = arith.constant 0 : index
    %c0_38 = arith.constant 0 : index
    %123 = vector.load %arg5[%c1_36, %c0_37, %c0_38] : memref<8x2x32xf32, #tpu.memory_space<vmem>>, vector<1x2x32xf32>
    %124 = vector.shape_cast %123 : vector<1x2x32xf32> to vector<2x32xf32>
    %125 = vector.shape_cast %122 : vector<2x32xf32> to vector<1x2x32xf32>
    tpu.vector_store %arg5[%c1_36, %c0_37, %c0_38], %125 {strides = array<i32>} : memref<8x2x32xf32, #tpu.memory_space<vmem>>, vector<1x2x32xf32>,
    %126 = vector.extract_strided_slice %93 {offsets = [0, 128], sizes = [2, 128], strides = [1, 1]} : vector<2x256xf32> to vector<2x128xf32>
    %127 = arith.truncf %88 : vector<2x32xf32> to vector<2x32xbf16>
    %cst_39 = arith.constant dense<0.000000e+00> : vector<2x128xf32>
    %128 = tpu.matmul %127, %15, %cst_39 {dimension_numbers = #tpu.dot_dimension_numbers<[1], [0], [0], [1], [0, 0, 1, 1], [], []>} : vector<2x32xbf16>, vector<32x128xbf16>, vector<2x128xf32> -> vector<2x128xf32>
    %129 = arith.addf %126, %128 : vector<2x128xf32>
    %130 = vector.extract_strided_slice %129 {offsets = [0, 0], sizes = [2, 32], strides = [1, 1]} : vector<2x128xf32> to vector<2x32xf32>
    %131 = arith.negf %130 : vector<2x32xf32>
    %132 = math.exp %131 : vector<2x32xf32>
    %cst_40 = arith.constant 1.000000e+00 : f32
    %133 = vector.broadcast %cst_40 : f32 to vector<2x32xf32>
    %134 = arith.addf %133, %132 : vector<2x32xf32>
    %135 = arith.divf %133, %134 : vector<2x32xf32>
    %136 = vector.extract_strided_slice %129 {offsets = [0, 32], sizes = [2, 32], strides = [1, 1]} : vector<2x128xf32> to vector<2x32xf32>
    %137 = arith.negf %136 : vector<2x32xf32>
    %138 = math.exp %137 : vector<2x32xf32>
    %cst_41 = arith.constant 1.000000e+00 : f32
    %139 = vector.broadcast %cst_41 : f32 to vector<2x32xf32>
    %140 = arith.addf %139, %138 : vector<2x32xf32>
    %141 = arith.divf %139, %140 : vector<2x32xf32>
    %142 = vector.extract_strided_slice %129 {offsets = [0, 64], sizes = [2, 32], strides = [1, 1]} : vector<2x128xf32> to vector<2x32xf32>
    %143 = math.tanh %142 : vector<2x32xf32>
    %144 = vector.extract_strided_slice %129 {offsets = [0, 96], sizes = [2, 32], strides = [1, 1]} : vector<2x128xf32> to vector<2x32xf32>
    %145 = arith.negf %144 : vector<2x32xf32>
    %146 = math.exp %145 : vector<2x32xf32>
    %cst_42 = arith.constant 1.000000e+00 : f32
    %147 = vector.broadcast %cst_42 : f32 to vector<2x32xf32>
    %148 = arith.addf %147, %146 : vector<2x32xf32>
    %149 = arith.divf %147, %148 : vector<2x32xf32>
    %150 = arith.mulf %141, %86 : vector<2x32xf32>
    %151 = arith.mulf %135, %143 : vector<2x32xf32>
    %152 = arith.addf %150, %151 : vector<2x32xf32>
    %153 = math.tanh %152 : vector<2x32xf32>
    %154 = arith.mulf %149, %153 : vector<2x32xf32>
    %c1_43 = arith.constant 1 : index
    %c0_44 = arith.constant 0 : index
    %c0_45 = arith.constant 0 : index
    %155 = vector.load %arg6[%c1_43, %c0_44, %c0_45] : memref<8x2x32xf32, #tpu.memory_space<vmem>>, vector<1x2x32xf32>
    %156 = vector.shape_cast %155 : vector<1x2x32xf32> to vector<2x32xf32>
    %157 = vector.shape_cast %154 : vector<2x32xf32> to vector<1x2x32xf32>
    tpu.vector_store %arg6[%c1_43, %c0_44, %c0_45], %157 {strides = array<i32>} : memref<8x2x32xf32, #tpu.memory_space<vmem>>, vector<1x2x32xf32>,
    %158 = vector.extract_strided_slice %11 {offsets = [2, 0, 0], sizes = [1, 2, 256], strides = [1, 1, 1]} : vector<8x2x256xf32> to vector<1x2x256xf32>
    %159 = vector.shape_cast %158 : vector<1x2x256xf32> to vector<2x256xf32>
    %160 = vector.extract_strided_slice %159 {offsets = [0, 0], sizes = [2, 128], strides = [1, 1]} : vector<2x256xf32> to vector<2x128xf32>
    %161 = arith.truncf %122 : vector<2x32xf32> to vector<2x32xbf16>
    %cst_46 = arith.constant dense<0.000000e+00> : vector<2x128xf32>
    %162 = tpu.matmul %161, %13, %cst_46 {dimension_numbers = #tpu.dot_dimension_numbers<[1], [0], [0], [1], [0, 0, 1, 1], [], []>} : vector<2x32xbf16>, vector<32x128xbf16>, vector<2x128xf32> -> vector<2x128xf32>
    %163 = arith.addf %160, %162 : vector<2x128xf32>
    %164 = vector.extract_strided_slice %163 {offsets = [0, 0], sizes = [2, 32], strides = [1, 1]} : vector<2x128xf32> to vector<2x32xf32>
    %165 = arith.negf %164 : vector<2x32xf32>
    %166 = math.exp %165 : vector<2x32xf32>
    %cst_47 = arith.constant 1.000000e+00 : f32
    %167 = vector.broadcast %cst_47 : f32 to vector<2x32xf32>
    %168 = arith.addf %167, %166 : vector<2x32xf32>
    %169 = arith.divf %167, %168 : vector<2x32xf32>
    %170 = vector.extract_strided_slice %163 {offsets = [0, 32], sizes = [2, 32], strides = [1, 1]} : vector<2x128xf32> to vector<2x32xf32>
    %171 = arith.negf %170 : vector<2x32xf32>
    %172 = math.exp %171 : vector<2x32xf32>
    %cst_48 = arith.constant 1.000000e+00 : f32
    %173 = vector.broadcast %cst_48 : f32 to vector<2x32xf32>
    %174 = arith.addf %173, %172 : vector<2x32xf32>
    %175 = arith.divf %173, %174 : vector<2x32xf32>
    %176 = vector.extract_strided_slice %163 {offsets = [0, 64], sizes = [2, 32], strides = [1, 1]} : vector<2x128xf32> to vector<2x32xf32>
    %177 = math.tanh %176 : vector<2x32xf32>
    %178 = vector.extract_strided_slice %163 {offsets = [0, 96], sizes = [2, 32], strides = [1, 1]} : vector<2x128xf32> to vector<2x32xf32>
    %179 = arith.negf %178 : vector<2x32xf32>
    %180 = math.exp %179 : vector<2x32xf32>
    %cst_49 = arith.constant 1.000000e+00 : f32
    %181 = vector.broadcast %cst_49 : f32 to vector<2x32xf32>
    %182 = arith.addf %181, %180 : vector<2x32xf32>
    %183 = arith.divf %181, %182 : vector<2x32xf32>
    %184 = arith.mulf %175, %120 : vector<2x32xf32>
    %185 = arith.mulf %169, %177 : vector<2x32xf32>
    %186 = arith.addf %184, %185 : vector<2x32xf32>
    %187 = math.tanh %186 : vector<2x32xf32>
    %188 = arith.mulf %183, %187 : vector<2x32xf32>
    %c2 = arith.constant 2 : index
    %c0_50 = arith.constant 0 : index
    %c0_51 = arith.constant 0 : index
    %189 = vector.load %arg5[%c2, %c0_50, %c0_51] : memref<8x2x32xf32, #tpu.memory_space<vmem>>, vector<1x2x32xf32>
    %190 = vector.shape_cast %189 : vector<1x2x32xf32> to vector<2x32xf32>
    %191 = vector.shape_cast %188 : vector<2x32xf32> to vector<1x2x32xf32>
    tpu.vector_store %arg5[%c2, %c0_50, %c0_51], %191 {strides = array<i32>} : memref<8x2x32xf32, #tpu.memory_space<vmem>>, vector<1x2x32xf32>,
    %192 = vector.extract_strided_slice %159 {offsets = [0, 128], sizes = [2, 128], strides = [1, 1]} : vector<2x256xf32> to vector<2x128xf32>
    %193 = arith.truncf %154 : vector<2x32xf32> to vector<2x32xbf16>
    %cst_52 = arith.constant dense<0.000000e+00> : vector<2x128xf32>
    %194 = tpu.matmul %193, %15, %cst_52 {dimension_numbers = #tpu.dot_dimension_numbers<[1], [0], [0], [1], [0, 0, 1, 1], [], []>} : vector<2x32xbf16>, vector<32x128xbf16>, vector<2x128xf32> -> vector<2x128xf32>
    %195 = arith.addf %192, %194 : vector<2x128xf32>
    %196 = vector.extract_strided_slice %195 {offsets = [0, 0], sizes = [2, 32], strides = [1, 1]} : vector<2x128xf32> to vector<2x32xf32>
    %197 = arith.negf %196 : vector<2x32xf32>
    %198 = math.exp %197 : vector<2x32xf32>
    %cst_53 = arith.constant 1.000000e+00 : f32
    %199 = vector.broadcast %cst_53 : f32 to vector<2x32xf32>
    %200 = arith.addf %199, %198 : vector<2x32xf32>
    %201 = arith.divf %199, %200 : vector<2x32xf32>
    %202 = vector.extract_strided_slice %195 {offsets = [0, 32], sizes = [2, 32], strides = [1, 1]} : vector<2x128xf32> to vector<2x32xf32>
    %203 = arith.negf %202 : vector<2x32xf32>
    %204 = math.exp %203 : vector<2x32xf32>
    %cst_54 = arith.constant 1.000000e+00 : f32
    %205 = vector.broadcast %cst_54 : f32 to vector<2x32xf32>
    %206 = arith.addf %205, %204 : vector<2x32xf32>
    %207 = arith.divf %205, %206 : vector<2x32xf32>
    %208 = vector.extract_strided_slice %195 {offsets = [0, 64], sizes = [2, 32], strides = [1, 1]} : vector<2x128xf32> to vector<2x32xf32>
    %209 = math.tanh %208 : vector<2x32xf32>
    %210 = vector.extract_strided_slice %195 {offsets = [0, 96], sizes = [2, 32], strides = [1, 1]} : vector<2x128xf32> to vector<2x32xf32>
    %211 = arith.negf %210 : vector<2x32xf32>
    %212 = math.exp %211 : vector<2x32xf32>
    %cst_55 = arith.constant 1.000000e+00 : f32
    %213 = vector.broadcast %cst_55 : f32 to vector<2x32xf32>
    %214 = arith.addf %213, %212 : vector<2x32xf32>
    %215 = arith.divf %213, %214 : vector<2x32xf32>
    %216 = arith.mulf %207, %152 : vector<2x32xf32>
    %217 = arith.mulf %201, %209 : vector<2x32xf32>
    %218 = arith.addf %216, %217 : vector<2x32xf32>
    %219 = math.tanh %218 : vector<2x32xf32>
    %220 = arith.mulf %215, %219 : vector<2x32xf32>
    %c2_56 = arith.constant 2 : index
    %c0_57 = arith.constant 0 : index
    %c0_58 = arith.constant 0 : index
    %221 = vector.load %arg6[%c2_56, %c0_57, %c0_58] : memref<8x2x32xf32, #tpu.memory_space<vmem>>, vector<1x2x32xf32>
    %222 = vector.shape_cast %221 : vector<1x2x32xf32> to vector<2x32xf32>
    %223 = vector.shape_cast %220 : vector<2x32xf32> to vector<1x2x32xf32>
    tpu.vector_store %arg6[%c2_56, %c0_57, %c0_58], %223 {strides = array<i32>} : memref<8x2x32xf32, #tpu.memory_space<vmem>>, vector<1x2x32xf32>,
    %224 = vector.extract_strided_slice %11 {offsets = [3, 0, 0], sizes = [1, 2, 256], strides = [1, 1, 1]} : vector<8x2x256xf32> to vector<1x2x256xf32>
    %225 = vector.shape_cast %224 : vector<1x2x256xf32> to vector<2x256xf32>
    %226 = vector.extract_strided_slice %225 {offsets = [0, 0], sizes = [2, 128], strides = [1, 1]} : vector<2x256xf32> to vector<2x128xf32>
    %227 = arith.truncf %188 : vector<2x32xf32> to vector<2x32xbf16>
    %cst_59 = arith.constant dense<0.000000e+00> : vector<2x128xf32>
    %228 = tpu.matmul %227, %13, %cst_59 {dimension_numbers = #tpu.dot_dimension_numbers<[1], [0], [0], [1], [0, 0, 1, 1], [], []>} : vector<2x32xbf16>, vector<32x128xbf16>, vector<2x128xf32> -> vector<2x128xf32>
    %229 = arith.addf %226, %228 : vector<2x128xf32>
    %230 = vector.extract_strided_slice %229 {offsets = [0, 0], sizes = [2, 32], strides = [1, 1]} : vector<2x128xf32> to vector<2x32xf32>
    %231 = arith.negf %230 : vector<2x32xf32>
    %232 = math.exp %231 : vector<2x32xf32>
    %cst_60 = arith.constant 1.000000e+00 : f32
    %233 = vector.broadcast %cst_60 : f32 to vector<2x32xf32>
    %234 = arith.addf %233, %232 : vector<2x32xf32>
    %235 = arith.divf %233, %234 : vector<2x32xf32>
    %236 = vector.extract_strided_slice %229 {offsets = [0, 32], sizes = [2, 32], strides = [1, 1]} : vector<2x128xf32> to vector<2x32xf32>
    %237 = arith.negf %236 : vector<2x32xf32>
    %238 = math.exp %237 : vector<2x32xf32>
    %cst_61 = arith.constant 1.000000e+00 : f32
    %239 = vector.broadcast %cst_61 : f32 to vector<2x32xf32>
    %240 = arith.addf %239, %238 : vector<2x32xf32>
    %241 = arith.divf %239, %240 : vector<2x32xf32>
    %242 = vector.extract_strided_slice %229 {offsets = [0, 64], sizes = [2, 32], strides = [1, 1]} : vector<2x128xf32> to vector<2x32xf32>
    %243 = math.tanh %242 : vector<2x32xf32>
    %244 = vector.extract_strided_slice %229 {offsets = [0, 96], sizes = [2, 32], strides = [1, 1]} : vector<2x128xf32> to vector<2x32xf32>
    %245 = arith.negf %244 : vector<2x32xf32>
    %246 = math.exp %245 : vector<2x32xf32>
    %cst_62 = arith.constant 1.000000e+00 : f32
    %247 = vector.broadcast %cst_62 : f32 to vector<2x32xf32>
    %248 = arith.addf %247, %246 : vector<2x32xf32>
    %249 = arith.divf %247, %248 : vector<2x32xf32>
    %250 = arith.mulf %241, %186 : vector<2x32xf32>
    %251 = arith.mulf %235, %243 : vector<2x32xf32>
    %252 = arith.addf %250, %251 : vector<2x32xf32>
    %253 = math.tanh %252 : vector<2x32xf32>
    %254 = arith.mulf %249, %253 : vector<2x32xf32>
    %c3 = arith.constant 3 : index
    %c0_63 = arith.constant 0 : index
    %c0_64 = arith.constant 0 : index
    %255 = vector.load %arg5[%c3, %c0_63, %c0_64] : memref<8x2x32xf32, #tpu.memory_space<vmem>>, vector<1x2x32xf32>
    %256 = vector.shape_cast %255 : vector<1x2x32xf32> to vector<2x32xf32>
    %257 = vector.shape_cast %254 : vector<2x32xf32> to vector<1x2x32xf32>
    tpu.vector_store %arg5[%c3, %c0_63, %c0_64], %257 {strides = array<i32>} : memref<8x2x32xf32, #tpu.memory_space<vmem>>, vector<1x2x32xf32>,
    %258 = vector.extract_strided_slice %225 {offsets = [0, 128], sizes = [2, 128], strides = [1, 1]} : vector<2x256xf32> to vector<2x128xf32>
    %259 = arith.truncf %220 : vector<2x32xf32> to vector<2x32xbf16>
    %cst_65 = arith.constant dense<0.000000e+00> : vector<2x128xf32>
    %260 = tpu.matmul %259, %15, %cst_65 {dimension_numbers = #tpu.dot_dimension_numbers<[1], [0], [0], [1], [0, 0, 1, 1], [], []>} : vector<2x32xbf16>, vector<32x128xbf16>, vector<2x128xf32> -> vector<2x128xf32>
    %261 = arith.addf %258, %260 : vector<2x128xf32>
    %262 = vector.extract_strided_slice %261 {offsets = [0, 0], sizes = [2, 32], strides = [1, 1]} : vector<2x128xf32> to vector<2x32xf32>
    %263 = arith.negf %262 : vector<2x32xf32>
    %264 = math.exp %263 : vector<2x32xf32>
    %cst_66 = arith.constant 1.000000e+00 : f32
    %265 = vector.broadcast %cst_66 : f32 to vector<2x32xf32>
    %266 = arith.addf %265, %264 : vector<2x32xf32>
    %267 = arith.divf %265, %266 : vector<2x32xf32>
    %268 = vector.extract_strided_slice %261 {offsets = [0, 32], sizes = [2, 32], strides = [1, 1]} : vector<2x128xf32> to vector<2x32xf32>
    %269 = arith.negf %268 : vector<2x32xf32>
    %270 = math.exp %269 : vector<2x32xf32>
    %cst_67 = arith.constant 1.000000e+00 : f32
    %271 = vector.broadcast %cst_67 : f32 to vector<2x32xf32>
    %272 = arith.addf %271, %270 : vector<2x32xf32>
    %273 = arith.divf %271, %272 : vector<2x32xf32>
    %274 = vector.extract_strided_slice %261 {offsets = [0, 64], sizes = [2, 32], strides = [1, 1]} : vector<2x128xf32> to vector<2x32xf32>
    %275 = math.tanh %274 : vector<2x32xf32>
    %276 = vector.extract_strided_slice %261 {offsets = [0, 96], sizes = [2, 32], strides = [1, 1]} : vector<2x128xf32> to vector<2x32xf32>
    %277 = arith.negf %276 : vector<2x32xf32>
    %278 = math.exp %277 : vector<2x32xf32>
    %cst_68 = arith.constant 1.000000e+00 : f32
    %279 = vector.broadcast %cst_68 : f32 to vector<2x32xf32>
    %280 = arith.addf %279, %278 : vector<2x32xf32>
    %281 = arith.divf %279, %280 : vector<2x32xf32>
    %282 = arith.mulf %273, %218 : vector<2x32xf32>
    %283 = arith.mulf %267, %275 : vector<2x32xf32>
    %284 = arith.addf %282, %283 : vector<2x32xf32>
    %285 = math.tanh %284 : vector<2x32xf32>
    %286 = arith.mulf %281, %285 : vector<2x32xf32>
    %c3_69 = arith.constant 3 : index
    %c0_70 = arith.constant 0 : index
    %c0_71 = arith.constant 0 : index
    %287 = vector.load %arg6[%c3_69, %c0_70, %c0_71] : memref<8x2x32xf32, #tpu.memory_space<vmem>>, vector<1x2x32xf32>
    %288 = vector.shape_cast %287 : vector<1x2x32xf32> to vector<2x32xf32>
    %289 = vector.shape_cast %286 : vector<2x32xf32> to vector<1x2x32xf32>
    tpu.vector_store %arg6[%c3_69, %c0_70, %c0_71], %289 {strides = array<i32>} : memref<8x2x32xf32, #tpu.memory_space<vmem>>, vector<1x2x32xf32>,
    %290 = vector.extract_strided_slice %11 {offsets = [4, 0, 0], sizes = [1, 2, 256], strides = [1, 1, 1]} : vector<8x2x256xf32> to vector<1x2x256xf32>
    %291 = vector.shape_cast %290 : vector<1x2x256xf32> to vector<2x256xf32>
    %292 = vector.extract_strided_slice %291 {offsets = [0, 0], sizes = [2, 128], strides = [1, 1]} : vector<2x256xf32> to vector<2x128xf32>
    %293 = arith.truncf %254 : vector<2x32xf32> to vector<2x32xbf16>
    %cst_72 = arith.constant dense<0.000000e+00> : vector<2x128xf32>
    %294 = tpu.matmul %293, %13, %cst_72 {dimension_numbers = #tpu.dot_dimension_numbers<[1], [0], [0], [1], [0, 0, 1, 1], [], []>} : vector<2x32xbf16>, vector<32x128xbf16>, vector<2x128xf32> -> vector<2x128xf32>
    %295 = arith.addf %292, %294 : vector<2x128xf32>
    %296 = vector.extract_strided_slice %295 {offsets = [0, 0], sizes = [2, 32], strides = [1, 1]} : vector<2x128xf32> to vector<2x32xf32>
    %297 = arith.negf %296 : vector<2x32xf32>
    %298 = math.exp %297 : vector<2x32xf32>
    %cst_73 = arith.constant 1.000000e+00 : f32
    %299 = vector.broadcast %cst_73 : f32 to vector<2x32xf32>
    %300 = arith.addf %299, %298 : vector<2x32xf32>
    %301 = arith.divf %299, %300 : vector<2x32xf32>
    %302 = vector.extract_strided_slice %295 {offsets = [0, 32], sizes = [2, 32], strides = [1, 1]} : vector<2x128xf32> to vector<2x32xf32>
    %303 = arith.negf %302 : vector<2x32xf32>
    %304 = math.exp %303 : vector<2x32xf32>
    %cst_74 = arith.constant 1.000000e+00 : f32
    %305 = vector.broadcast %cst_74 : f32 to vector<2x32xf32>
    %306 = arith.addf %305, %304 : vector<2x32xf32>
    %307 = arith.divf %305, %306 : vector<2x32xf32>
    %308 = vector.extract_strided_slice %295 {offsets = [0, 64], sizes = [2, 32], strides = [1, 1]} : vector<2x128xf32> to vector<2x32xf32>
    %309 = math.tanh %308 : vector<2x32xf32>
    %310 = vector.extract_strided_slice %295 {offsets = [0, 96], sizes = [2, 32], strides = [1, 1]} : vector<2x128xf32> to vector<2x32xf32>
    %311 = arith.negf %310 : vector<2x32xf32>
    %312 = math.exp %311 : vector<2x32xf32>
    %cst_75 = arith.constant 1.000000e+00 : f32
    %313 = vector.broadcast %cst_75 : f32 to vector<2x32xf32>
    %314 = arith.addf %313, %312 : vector<2x32xf32>
    %315 = arith.divf %313, %314 : vector<2x32xf32>
    %316 = arith.mulf %307, %252 : vector<2x32xf32>
    %317 = arith.mulf %301, %309 : vector<2x32xf32>
    %318 = arith.addf %316, %317 : vector<2x32xf32>
    %319 = math.tanh %318 : vector<2x32xf32>
    %320 = arith.mulf %315, %319 : vector<2x32xf32>
    %c4 = arith.constant 4 : index
    %c0_76 = arith.constant 0 : index
    %c0_77 = arith.constant 0 : index
    %321 = vector.load %arg5[%c4, %c0_76, %c0_77] : memref<8x2x32xf32, #tpu.memory_space<vmem>>, vector<1x2x32xf32>
    %322 = vector.shape_cast %321 : vector<1x2x32xf32> to vector<2x32xf32>
    %323 = vector.shape_cast %320 : vector<2x32xf32> to vector<1x2x32xf32>
    tpu.vector_store %arg5[%c4, %c0_76, %c0_77], %323 {strides = array<i32>} : memref<8x2x32xf32, #tpu.memory_space<vmem>>, vector<1x2x32xf32>,
    %324 = vector.extract_strided_slice %291 {offsets = [0, 128], sizes = [2, 128], strides = [1, 1]} : vector<2x256xf32> to vector<2x128xf32>
    %325 = arith.truncf %286 : vector<2x32xf32> to vector<2x32xbf16>
    %cst_78 = arith.constant dense<0.000000e+00> : vector<2x128xf32>
    %326 = tpu.matmul %325, %15, %cst_78 {dimension_numbers = #tpu.dot_dimension_numbers<[1], [0], [0], [1], [0, 0, 1, 1], [], []>} : vector<2x32xbf16>, vector<32x128xbf16>, vector<2x128xf32> -> vector<2x128xf32>
    %327 = arith.addf %324, %326 : vector<2x128xf32>
    %328 = vector.extract_strided_slice %327 {offsets = [0, 0], sizes = [2, 32], strides = [1, 1]} : vector<2x128xf32> to vector<2x32xf32>
    %329 = arith.negf %328 : vector<2x32xf32>
    %330 = math.exp %329 : vector<2x32xf32>
    %cst_79 = arith.constant 1.000000e+00 : f32
    %331 = vector.broadcast %cst_79 : f32 to vector<2x32xf32>
    %332 = arith.addf %331, %330 : vector<2x32xf32>
    %333 = arith.divf %331, %332 : vector<2x32xf32>
    %334 = vector.extract_strided_slice %327 {offsets = [0, 32], sizes = [2, 32], strides = [1, 1]} : vector<2x128xf32> to vector<2x32xf32>
    %335 = arith.negf %334 : vector<2x32xf32>
    %336 = math.exp %335 : vector<2x32xf32>
    %cst_80 = arith.constant 1.000000e+00 : f32
    %337 = vector.broadcast %cst_80 : f32 to vector<2x32xf32>
    %338 = arith.addf %337, %336 : vector<2x32xf32>
    %339 = arith.divf %337, %338 : vector<2x32xf32>
    %340 = vector.extract_strided_slice %327 {offsets = [0, 64], sizes = [2, 32], strides = [1, 1]} : vector<2x128xf32> to vector<2x32xf32>
    %341 = math.tanh %340 : vector<2x32xf32>
    %342 = vector.extract_strided_slice %327 {offsets = [0, 96], sizes = [2, 32], strides = [1, 1]} : vector<2x128xf32> to vector<2x32xf32>
    %343 = arith.negf %342 : vector<2x32xf32>
    %344 = math.exp %343 : vector<2x32xf32>
    %cst_81 = arith.constant 1.000000e+00 : f32
    %345 = vector.broadcast %cst_81 : f32 to vector<2x32xf32>
    %346 = arith.addf %345, %344 : vector<2x32xf32>
    %347 = arith.divf %345, %346 : vector<2x32xf32>
    %348 = arith.mulf %339, %284 : vector<2x32xf32>
    %349 = arith.mulf %333, %341 : vector<2x32xf32>
    %350 = arith.addf %348, %349 : vector<2x32xf32>
    %351 = math.tanh %350 : vector<2x32xf32>
    %352 = arith.mulf %347, %351 : vector<2x32xf32>
    %c4_82 = arith.constant 4 : index
    %c0_83 = arith.constant 0 : index
    %c0_84 = arith.constant 0 : index
    %353 = vector.load %arg6[%c4_82, %c0_83, %c0_84] : memref<8x2x32xf32, #tpu.memory_space<vmem>>, vector<1x2x32xf32>
    %354 = vector.shape_cast %353 : vector<1x2x32xf32> to vector<2x32xf32>
    %355 = vector.shape_cast %352 : vector<2x32xf32> to vector<1x2x32xf32>
    tpu.vector_store %arg6[%c4_82, %c0_83, %c0_84], %355 {strides = array<i32>} : memref<8x2x32xf32, #tpu.memory_space<vmem>>, vector<1x2x32xf32>,
    %356 = vector.extract_strided_slice %11 {offsets = [5, 0, 0], sizes = [1, 2, 256], strides = [1, 1, 1]} : vector<8x2x256xf32> to vector<1x2x256xf32>
    %357 = vector.shape_cast %356 : vector<1x2x256xf32> to vector<2x256xf32>
    %358 = vector.extract_strided_slice %357 {offsets = [0, 0], sizes = [2, 128], strides = [1, 1]} : vector<2x256xf32> to vector<2x128xf32>
    %359 = arith.truncf %320 : vector<2x32xf32> to vector<2x32xbf16>
    %cst_85 = arith.constant dense<0.000000e+00> : vector<2x128xf32>
    %360 = tpu.matmul %359, %13, %cst_85 {dimension_numbers = #tpu.dot_dimension_numbers<[1], [0], [0], [1], [0, 0, 1, 1], [], []>} : vector<2x32xbf16>, vector<32x128xbf16>, vector<2x128xf32> -> vector<2x128xf32>
    %361 = arith.addf %358, %360 : vector<2x128xf32>
    %362 = vector.extract_strided_slice %361 {offsets = [0, 0], sizes = [2, 32], strides = [1, 1]} : vector<2x128xf32> to vector<2x32xf32>
    %363 = arith.negf %362 : vector<2x32xf32>
    %364 = math.exp %363 : vector<2x32xf32>
    %cst_86 = arith.constant 1.000000e+00 : f32
    %365 = vector.broadcast %cst_86 : f32 to vector<2x32xf32>
    %366 = arith.addf %365, %364 : vector<2x32xf32>
    %367 = arith.divf %365, %366 : vector<2x32xf32>
    %368 = vector.extract_strided_slice %361 {offsets = [0, 32], sizes = [2, 32], strides = [1, 1]} : vector<2x128xf32> to vector<2x32xf32>
    %369 = arith.negf %368 : vector<2x32xf32>
    %370 = math.exp %369 : vector<2x32xf32>
    %cst_87 = arith.constant 1.000000e+00 : f32
    %371 = vector.broadcast %cst_87 : f32 to vector<2x32xf32>
    %372 = arith.addf %371, %370 : vector<2x32xf32>
    %373 = arith.divf %371, %372 : vector<2x32xf32>
    %374 = vector.extract_strided_slice %361 {offsets = [0, 64], sizes = [2, 32], strides = [1, 1]} : vector<2x128xf32> to vector<2x32xf32>
    %375 = math.tanh %374 : vector<2x32xf32>
    %376 = vector.extract_strided_slice %361 {offsets = [0, 96], sizes = [2, 32], strides = [1, 1]} : vector<2x128xf32> to vector<2x32xf32>
    %377 = arith.negf %376 : vector<2x32xf32>
    %378 = math.exp %377 : vector<2x32xf32>
    %cst_88 = arith.constant 1.000000e+00 : f32
    %379 = vector.broadcast %cst_88 : f32 to vector<2x32xf32>
    %380 = arith.addf %379, %378 : vector<2x32xf32>
    %381 = arith.divf %379, %380 : vector<2x32xf32>
    %382 = arith.mulf %373, %318 : vector<2x32xf32>
    %383 = arith.mulf %367, %375 : vector<2x32xf32>
    %384 = arith.addf %382, %383 : vector<2x32xf32>
    %385 = math.tanh %384 : vector<2x32xf32>
    %386 = arith.mulf %381, %385 : vector<2x32xf32>
    %c5 = arith.constant 5 : index
    %c0_89 = arith.constant 0 : index
    %c0_90 = arith.constant 0 : index
    %387 = vector.load %arg5[%c5, %c0_89, %c0_90] : memref<8x2x32xf32, #tpu.memory_space<vmem>>, vector<1x2x32xf32>
    %388 = vector.shape_cast %387 : vector<1x2x32xf32> to vector<2x32xf32>
    %389 = vector.shape_cast %386 : vector<2x32xf32> to vector<1x2x32xf32>
    tpu.vector_store %arg5[%c5, %c0_89, %c0_90], %389 {strides = array<i32>} : memref<8x2x32xf32, #tpu.memory_space<vmem>>, vector<1x2x32xf32>,
    %390 = vector.extract_strided_slice %357 {offsets = [0, 128], sizes = [2, 128], strides = [1, 1]} : vector<2x256xf32> to vector<2x128xf32>
    %391 = arith.truncf %352 : vector<2x32xf32> to vector<2x32xbf16>
    %cst_91 = arith.constant dense<0.000000e+00> : vector<2x128xf32>
    %392 = tpu.matmul %391, %15, %cst_91 {dimension_numbers = #tpu.dot_dimension_numbers<[1], [0], [0], [1], [0, 0, 1, 1], [], []>} : vector<2x32xbf16>, vector<32x128xbf16>, vector<2x128xf32> -> vector<2x128xf32>
    %393 = arith.addf %390, %392 : vector<2x128xf32>
    %394 = vector.extract_strided_slice %393 {offsets = [0, 0], sizes = [2, 32], strides = [1, 1]} : vector<2x128xf32> to vector<2x32xf32>
    %395 = arith.negf %394 : vector<2x32xf32>
    %396 = math.exp %395 : vector<2x32xf32>
    %cst_92 = arith.constant 1.000000e+00 : f32
    %397 = vector.broadcast %cst_92 : f32 to vector<2x32xf32>
    %398 = arith.addf %397, %396 : vector<2x32xf32>
    %399 = arith.divf %397, %398 : vector<2x32xf32>
    %400 = vector.extract_strided_slice %393 {offsets = [0, 32], sizes = [2, 32], strides = [1, 1]} : vector<2x128xf32> to vector<2x32xf32>
    %401 = arith.negf %400 : vector<2x32xf32>
    %402 = math.exp %401 : vector<2x32xf32>
    %cst_93 = arith.constant 1.000000e+00 : f32
    %403 = vector.broadcast %cst_93 : f32 to vector<2x32xf32>
    %404 = arith.addf %403, %402 : vector<2x32xf32>
    %405 = arith.divf %403, %404 : vector<2x32xf32>
    %406 = vector.extract_strided_slice %393 {offsets = [0, 64], sizes = [2, 32], strides = [1, 1]} : vector<2x128xf32> to vector<2x32xf32>
    %407 = math.tanh %406 : vector<2x32xf32>
    %408 = vector.extract_strided_slice %393 {offsets = [0, 96], sizes = [2, 32], strides = [1, 1]} : vector<2x128xf32> to vector<2x32xf32>
    %409 = arith.negf %408 : vector<2x32xf32>
    %410 = math.exp %409 : vector<2x32xf32>
    %cst_94 = arith.constant 1.000000e+00 : f32
    %411 = vector.broadcast %cst_94 : f32 to vector<2x32xf32>
    %412 = arith.addf %411, %410 : vector<2x32xf32>
    %413 = arith.divf %411, %412 : vector<2x32xf32>
    %414 = arith.mulf %405, %350 : vector<2x32xf32>
    %415 = arith.mulf %399, %407 : vector<2x32xf32>
    %416 = arith.addf %414, %415 : vector<2x32xf32>
    %417 = math.tanh %416 : vector<2x32xf32>
    %418 = arith.mulf %413, %417 : vector<2x32xf32>
    %c5_95 = arith.constant 5 : index
    %c0_96 = arith.constant 0 : index
    %c0_97 = arith.constant 0 : index
    %419 = vector.load %arg6[%c5_95, %c0_96, %c0_97] : memref<8x2x32xf32, #tpu.memory_space<vmem>>, vector<1x2x32xf32>
    %420 = vector.shape_cast %419 : vector<1x2x32xf32> to vector<2x32xf32>
    %421 = vector.shape_cast %418 : vector<2x32xf32> to vector<1x2x32xf32>
    tpu.vector_store %arg6[%c5_95, %c0_96, %c0_97], %421 {strides = array<i32>} : memref<8x2x32xf32, #tpu.memory_space<vmem>>, vector<1x2x32xf32>,
    %422 = vector.extract_strided_slice %11 {offsets = [6, 0, 0], sizes = [1, 2, 256], strides = [1, 1, 1]} : vector<8x2x256xf32> to vector<1x2x256xf32>
    %423 = vector.shape_cast %422 : vector<1x2x256xf32> to vector<2x256xf32>
    %424 = vector.extract_strided_slice %423 {offsets = [0, 0], sizes = [2, 128], strides = [1, 1]} : vector<2x256xf32> to vector<2x128xf32>
    %425 = arith.truncf %386 : vector<2x32xf32> to vector<2x32xbf16>
    %cst_98 = arith.constant dense<0.000000e+00> : vector<2x128xf32>
    %426 = tpu.matmul %425, %13, %cst_98 {dimension_numbers = #tpu.dot_dimension_numbers<[1], [0], [0], [1], [0, 0, 1, 1], [], []>} : vector<2x32xbf16>, vector<32x128xbf16>, vector<2x128xf32> -> vector<2x128xf32>
    %427 = arith.addf %424, %426 : vector<2x128xf32>
    %428 = vector.extract_strided_slice %427 {offsets = [0, 0], sizes = [2, 32], strides = [1, 1]} : vector<2x128xf32> to vector<2x32xf32>
    %429 = arith.negf %428 : vector<2x32xf32>
    %430 = math.exp %429 : vector<2x32xf32>
    %cst_99 = arith.constant 1.000000e+00 : f32
    %431 = vector.broadcast %cst_99 : f32 to vector<2x32xf32>
    %432 = arith.addf %431, %430 : vector<2x32xf32>
    %433 = arith.divf %431, %432 : vector<2x32xf32>
    %434 = vector.extract_strided_slice %427 {offsets = [0, 32], sizes = [2, 32], strides = [1, 1]} : vector<2x128xf32> to vector<2x32xf32>
    %435 = arith.negf %434 : vector<2x32xf32>
    %436 = math.exp %435 : vector<2x32xf32>
    %cst_100 = arith.constant 1.000000e+00 : f32
    %437 = vector.broadcast %cst_100 : f32 to vector<2x32xf32>
    %438 = arith.addf %437, %436 : vector<2x32xf32>
    %439 = arith.divf %437, %438 : vector<2x32xf32>
    %440 = vector.extract_strided_slice %427 {offsets = [0, 64], sizes = [2, 32], strides = [1, 1]} : vector<2x128xf32> to vector<2x32xf32>
    %441 = math.tanh %440 : vector<2x32xf32>
    %442 = vector.extract_strided_slice %427 {offsets = [0, 96], sizes = [2, 32], strides = [1, 1]} : vector<2x128xf32> to vector<2x32xf32>
    %443 = arith.negf %442 : vector<2x32xf32>
    %444 = math.exp %443 : vector<2x32xf32>
    %cst_101 = arith.constant 1.000000e+00 : f32
    %445 = vector.broadcast %cst_101 : f32 to vector<2x32xf32>
    %446 = arith.addf %445, %444 : vector<2x32xf32>
    %447 = arith.divf %445, %446 : vector<2x32xf32>
    %448 = arith.mulf %439, %384 : vector<2x32xf32>
    %449 = arith.mulf %433, %441 : vector<2x32xf32>
    %450 = arith.addf %448, %449 : vector<2x32xf32>
    %451 = math.tanh %450 : vector<2x32xf32>
    %452 = arith.mulf %447, %451 : vector<2x32xf32>
    %c6 = arith.constant 6 : index
    %c0_102 = arith.constant 0 : index
    %c0_103 = arith.constant 0 : index
    %453 = vector.load %arg5[%c6, %c0_102, %c0_103] : memref<8x2x32xf32, #tpu.memory_space<vmem>>, vector<1x2x32xf32>
    %454 = vector.shape_cast %453 : vector<1x2x32xf32> to vector<2x32xf32>
    %455 = vector.shape_cast %452 : vector<2x32xf32> to vector<1x2x32xf32>
    tpu.vector_store %arg5[%c6, %c0_102, %c0_103], %455 {strides = array<i32>} : memref<8x2x32xf32, #tpu.memory_space<vmem>>, vector<1x2x32xf32>,
    %456 = vector.extract_strided_slice %423 {offsets = [0, 128], sizes = [2, 128], strides = [1, 1]} : vector<2x256xf32> to vector<2x128xf32>
    %457 = arith.truncf %418 : vector<2x32xf32> to vector<2x32xbf16>
    %cst_104 = arith.constant dense<0.000000e+00> : vector<2x128xf32>
    %458 = tpu.matmul %457, %15, %cst_104 {dimension_numbers = #tpu.dot_dimension_numbers<[1], [0], [0], [1], [0, 0, 1, 1], [], []>} : vector<2x32xbf16>, vector<32x128xbf16>, vector<2x128xf32> -> vector<2x128xf32>
    %459 = arith.addf %456, %458 : vector<2x128xf32>
    %460 = vector.extract_strided_slice %459 {offsets = [0, 0], sizes = [2, 32], strides = [1, 1]} : vector<2x128xf32> to vector<2x32xf32>
    %461 = arith.negf %460 : vector<2x32xf32>
    %462 = math.exp %461 : vector<2x32xf32>
    %cst_105 = arith.constant 1.000000e+00 : f32
    %463 = vector.broadcast %cst_105 : f32 to vector<2x32xf32>
    %464 = arith.addf %463, %462 : vector<2x32xf32>
    %465 = arith.divf %463, %464 : vector<2x32xf32>
    %466 = vector.extract_strided_slice %459 {offsets = [0, 32], sizes = [2, 32], strides = [1, 1]} : vector<2x128xf32> to vector<2x32xf32>
    %467 = arith.negf %466 : vector<2x32xf32>
    %468 = math.exp %467 : vector<2x32xf32>
    %cst_106 = arith.constant 1.000000e+00 : f32
    %469 = vector.broadcast %cst_106 : f32 to vector<2x32xf32>
    %470 = arith.addf %469, %468 : vector<2x32xf32>
    %471 = arith.divf %469, %470 : vector<2x32xf32>
    %472 = vector.extract_strided_slice %459 {offsets = [0, 64], sizes = [2, 32], strides = [1, 1]} : vector<2x128xf32> to vector<2x32xf32>
    %473 = math.tanh %472 : vector<2x32xf32>
    %474 = vector.extract_strided_slice %459 {offsets = [0, 96], sizes = [2, 32], strides = [1, 1]} : vector<2x128xf32> to vector<2x32xf32>
    %475 = arith.negf %474 : vector<2x32xf32>
    %476 = math.exp %475 : vector<2x32xf32>
    %cst_107 = arith.constant 1.000000e+00 : f32
    %477 = vector.broadcast %cst_107 : f32 to vector<2x32xf32>
    %478 = arith.addf %477, %476 : vector<2x32xf32>
    %479 = arith.divf %477, %478 : vector<2x32xf32>
    %480 = arith.mulf %471, %416 : vector<2x32xf32>
    %481 = arith.mulf %465, %473 : vector<2x32xf32>
    %482 = arith.addf %480, %481 : vector<2x32xf32>
    %483 = math.tanh %482 : vector<2x32xf32>
    %484 = arith.mulf %479, %483 : vector<2x32xf32>
    %c6_108 = arith.constant 6 : index
    %c0_109 = arith.constant 0 : index
    %c0_110 = arith.constant 0 : index
    %485 = vector.load %arg6[%c6_108, %c0_109, %c0_110] : memref<8x2x32xf32, #tpu.memory_space<vmem>>, vector<1x2x32xf32>
    %486 = vector.shape_cast %485 : vector<1x2x32xf32> to vector<2x32xf32>
    %487 = vector.shape_cast %484 : vector<2x32xf32> to vector<1x2x32xf32>
    tpu.vector_store %arg6[%c6_108, %c0_109, %c0_110], %487 {strides = array<i32>} : memref<8x2x32xf32, #tpu.memory_space<vmem>>, vector<1x2x32xf32>,
    %488 = vector.extract_strided_slice %11 {offsets = [7, 0, 0], sizes = [1, 2, 256], strides = [1, 1, 1]} : vector<8x2x256xf32> to vector<1x2x256xf32>
    %489 = vector.shape_cast %488 : vector<1x2x256xf32> to vector<2x256xf32>
    %490 = vector.extract_strided_slice %489 {offsets = [0, 0], sizes = [2, 128], strides = [1, 1]} : vector<2x256xf32> to vector<2x128xf32>
    %491 = arith.truncf %452 : vector<2x32xf32> to vector<2x32xbf16>
    %cst_111 = arith.constant dense<0.000000e+00> : vector<2x128xf32>
    %492 = tpu.matmul %491, %13, %cst_111 {dimension_numbers = #tpu.dot_dimension_numbers<[1], [0], [0], [1], [0, 0, 1, 1], [], []>} : vector<2x32xbf16>, vector<32x128xbf16>, vector<2x128xf32> -> vector<2x128xf32>
    %493 = arith.addf %490, %492 : vector<2x128xf32>
    %494 = vector.extract_strided_slice %493 {offsets = [0, 0], sizes = [2, 32], strides = [1, 1]} : vector<2x128xf32> to vector<2x32xf32>
    %495 = arith.negf %494 : vector<2x32xf32>
    %496 = math.exp %495 : vector<2x32xf32>
    %cst_112 = arith.constant 1.000000e+00 : f32
    %497 = vector.broadcast %cst_112 : f32 to vector<2x32xf32>
    %498 = arith.addf %497, %496 : vector<2x32xf32>
    %499 = arith.divf %497, %498 : vector<2x32xf32>
    %500 = vector.extract_strided_slice %493 {offsets = [0, 32], sizes = [2, 32], strides = [1, 1]} : vector<2x128xf32> to vector<2x32xf32>
    %501 = arith.negf %500 : vector<2x32xf32>
    %502 = math.exp %501 : vector<2x32xf32>
    %cst_113 = arith.constant 1.000000e+00 : f32
    %503 = vector.broadcast %cst_113 : f32 to vector<2x32xf32>
    %504 = arith.addf %503, %502 : vector<2x32xf32>
    %505 = arith.divf %503, %504 : vector<2x32xf32>
    %506 = vector.extract_strided_slice %493 {offsets = [0, 64], sizes = [2, 32], strides = [1, 1]} : vector<2x128xf32> to vector<2x32xf32>
    %507 = math.tanh %506 : vector<2x32xf32>
    %508 = vector.extract_strided_slice %493 {offsets = [0, 96], sizes = [2, 32], strides = [1, 1]} : vector<2x128xf32> to vector<2x32xf32>
    %509 = arith.negf %508 : vector<2x32xf32>
    %510 = math.exp %509 : vector<2x32xf32>
    %cst_114 = arith.constant 1.000000e+00 : f32
    %511 = vector.broadcast %cst_114 : f32 to vector<2x32xf32>
    %512 = arith.addf %511, %510 : vector<2x32xf32>
    %513 = arith.divf %511, %512 : vector<2x32xf32>
    %514 = arith.mulf %505, %450 : vector<2x32xf32>
    %515 = arith.mulf %499, %507 : vector<2x32xf32>
    %516 = arith.addf %514, %515 : vector<2x32xf32>
    %517 = math.tanh %516 : vector<2x32xf32>
    %518 = arith.mulf %513, %517 : vector<2x32xf32>
    %c7 = arith.constant 7 : index
    %c0_115 = arith.constant 0 : index
    %c0_116 = arith.constant 0 : index
    %519 = vector.load %arg5[%c7, %c0_115, %c0_116] : memref<8x2x32xf32, #tpu.memory_space<vmem>>, vector<1x2x32xf32>
    %520 = vector.shape_cast %519 : vector<1x2x32xf32> to vector<2x32xf32>
    %521 = vector.shape_cast %518 : vector<2x32xf32> to vector<1x2x32xf32>
    tpu.vector_store %arg5[%c7, %c0_115, %c0_116], %521 {strides = array<i32>} : memref<8x2x32xf32, #tpu.memory_space<vmem>>, vector<1x2x32xf32>,
    %522 = vector.extract_strided_slice %489 {offsets = [0, 128], sizes = [2, 128], strides = [1, 1]} : vector<2x256xf32> to vector<2x128xf32>
    %523 = arith.truncf %484 : vector<2x32xf32> to vector<2x32xbf16>
    %cst_117 = arith.constant dense<0.000000e+00> : vector<2x128xf32>
    %524 = tpu.matmul %523, %15, %cst_117 {dimension_numbers = #tpu.dot_dimension_numbers<[1], [0], [0], [1], [0, 0, 1, 1], [], []>} : vector<2x32xbf16>, vector<32x128xbf16>, vector<2x128xf32> -> vector<2x128xf32>
    %525 = arith.addf %522, %524 : vector<2x128xf32>
    %526 = vector.extract_strided_slice %525 {offsets = [0, 0], sizes = [2, 32], strides = [1, 1]} : vector<2x128xf32> to vector<2x32xf32>
    %527 = arith.negf %526 : vector<2x32xf32>
    %528 = math.exp %527 : vector<2x32xf32>
    %cst_118 = arith.constant 1.000000e+00 : f32
    %529 = vector.broadcast %cst_118 : f32 to vector<2x32xf32>
    %530 = arith.addf %529, %528 : vector<2x32xf32>
    %531 = arith.divf %529, %530 : vector<2x32xf32>
    %532 = vector.extract_strided_slice %525 {offsets = [0, 32], sizes = [2, 32], strides = [1, 1]} : vector<2x128xf32> to vector<2x32xf32>
    %533 = arith.negf %532 : vector<2x32xf32>
    %534 = math.exp %533 : vector<2x32xf32>
    %cst_119 = arith.constant 1.000000e+00 : f32
    %535 = vector.broadcast %cst_119 : f32 to vector<2x32xf32>
    %536 = arith.addf %535, %534 : vector<2x32xf32>
    %537 = arith.divf %535, %536 : vector<2x32xf32>
    %538 = vector.extract_strided_slice %525 {offsets = [0, 64], sizes = [2, 32], strides = [1, 1]} : vector<2x128xf32> to vector<2x32xf32>
    %539 = math.tanh %538 : vector<2x32xf32>
    %540 = vector.extract_strided_slice %525 {offsets = [0, 96], sizes = [2, 32], strides = [1, 1]} : vector<2x128xf32> to vector<2x32xf32>
    %541 = arith.negf %540 : vector<2x32xf32>
    %542 = math.exp %541 : vector<2x32xf32>
    %cst_120 = arith.constant 1.000000e+00 : f32
    %543 = vector.broadcast %cst_120 : f32 to vector<2x32xf32>
    %544 = arith.addf %543, %542 : vector<2x32xf32>
    %545 = arith.divf %543, %544 : vector<2x32xf32>
    %546 = arith.mulf %537, %482 : vector<2x32xf32>
    %547 = arith.mulf %531, %539 : vector<2x32xf32>
    %548 = arith.addf %546, %547 : vector<2x32xf32>
    %549 = math.tanh %548 : vector<2x32xf32>
    %550 = arith.mulf %545, %549 : vector<2x32xf32>
    %c7_121 = arith.constant 7 : index
    %c0_122 = arith.constant 0 : index
    %c0_123 = arith.constant 0 : index
    %551 = vector.load %arg6[%c7_121, %c0_122, %c0_123] : memref<8x2x32xf32, #tpu.memory_space<vmem>>, vector<1x2x32xf32>
    %552 = vector.shape_cast %551 : vector<1x2x32xf32> to vector<2x32xf32>
    %553 = vector.shape_cast %550 : vector<2x32xf32> to vector<1x2x32xf32>
    tpu.vector_store %arg6[%c7_121, %c0_122, %c0_123], %553 {strides = array<i32>} : memref<8x2x32xf32, #tpu.memory_space<vmem>>, vector<1x2x32xf32>,
    %554 = vector.shape_cast %518 : vector<2x32xf32> to vector<1x2x32xf32>
    %555 = vector.shape_cast %550 : vector<2x32xf32> to vector<1x2x32xf32>
    %556 = tpu.concatenate %554, %555 in 0 : vector<1x2x32xf32>, vector<1x2x32xf32> -> vector<2x2x32xf32>
    %c0_124 = arith.constant 0 : index
    %c0_125 = arith.constant 0 : index
    %c0_126 = arith.constant 0 : index
    %557 = vector.load %arg7[%c0_124, %c0_125, %c0_126] : memref<2x2x32xf32, #tpu.memory_space<vmem>>, vector<2x2x32xf32>
    tpu.vector_store %arg7[%c0_124, %c0_125, %c0_126], %556 {strides = array<i32>} : memref<2x2x32xf32, #tpu.memory_space<vmem>>, vector<2x2x32xf32>,
    %558 = vector.shape_cast %516 : vector<2x32xf32> to vector<1x2x32xf32>
    %559 = vector.shape_cast %548 : vector<2x32xf32> to vector<1x2x32xf32>
    %560 = tpu.concatenate %558, %559 in 0 : vector<1x2x32xf32>, vector<1x2x32xf32> -> vector<2x2x32xf32>
    %c0_127 = arith.constant 0 : index
    %c0_128 = arith.constant 0 : index
    %c0_129 = arith.constant 0 : index
    %561 = vector.load %arg8[%c0_127, %c0_128, %c0_129] : memref<2x2x32xf32, #tpu.memory_space<vmem>>, vector<2x2x32xf32>
    tpu.vector_store %arg8[%c0_127, %c0_128, %c0_129], %560 {strides = array<i32>} : memref<2x2x32xf32, #tpu.memory_space<vmem>>, vector<2x2x32xf32>,
    return
  }
  func.func @transform_0(%arg0: i32) -> (i32, i32, i32) {
    %c0_i32 = arith.constant 0 : i32
    %c0_i32_0 = arith.constant 0 : i32
    %c0_i32_1 = arith.constant 0 : i32
    return %arg0, %c0_i32, %c0_i32_0 : i32, i32, i32
  }
  func.func @transform_1(%arg0: i32) -> (i32, i32) {
    %c0_i32 = arith.constant 0 : i32
    %c0_i32_0 = arith.constant 0 : i32
    %c0_i32_1 = arith.constant 0 : i32
    return %c0_i32, %c0_i32_0 : i32, i32
  }
  func.func @transform_2(%arg0: i32) -> (i32, i32) {
    %c0_i32 = arith.constant 0 : i32
    %c0_i32_0 = arith.constant 0 : i32
    %c0_i32_1 = arith.constant 0 : i32
    return %c0_i32, %c0_i32_0 : i32, i32
  }
  func.func @transform_3(%arg0: i32) -> (i32, i32, i32) {
    %c0_i32 = arith.constant 0 : i32
    %c0_i32_0 = arith.constant 0 : i32
    %c0_i32_1 = arith.constant 0 : i32
    %c0_i32_2 = arith.constant 0 : i32
    return %c0_i32, %c0_i32_0, %c0_i32_1 : i32, i32, i32
  }
  func.func @transform_4(%arg0: i32) -> (i32, i32, i32) {
    %c0_i32 = arith.constant 0 : i32
    %c0_i32_0 = arith.constant 0 : i32
    %c0_i32_1 = arith.constant 0 : i32
    return %arg0, %c0_i32, %c0_i32_0 : i32, i32, i32
  }
  func.func @transform_5(%arg0: i32) -> (i32, i32, i32) {
    %c0_i32 = arith.constant 0 : i32
    %c0_i32_0 = arith.constant 0 : i32
    %c0_i32_1 = arith.constant 0 : i32
    return %arg0, %c0_i32, %c0_i32_0 : i32, i32, i32
  }
}

module attributes {stable_mosaic.version = 11 : i64} {
  func.func @lstm_enc_kernel(%arg0: i32, %arg1: memref<8x2x16xf32, #tpu.memory_space<vmem>>, %arg2: memref<16x128xbf16, #tpu.memory_space<vmem>>, %arg3: memref<1x128xf32, #tpu.memory_space<vmem>>, %arg4: memref<1x32x128xbf16, #tpu.memory_space<vmem>>, %arg5: memref<8x2x32xf32, #tpu.memory_space<vmem>>, %arg6: memref<1x2x32xf32, #tpu.memory_space<vmem>>, %arg7: memref<1x2x32xf32, #tpu.memory_space<vmem>>) attributes {dimension_semantics = [#tpu.dimension_semantics<arbitrary>], iteration_bounds = array<i64: 1>, scalar_prefetch = 0 : i64, scratch_operands = 2 : i64, tpu.core_type = #tpu.core_type<tc>, window_params = [{transform_indices = @transform_0, window_bounds = array<i64: 8, 2, 16>}, {pipeline_mode = #tpu.pipeline_mode<synchronous>, transform_indices = @transform_1, window_bounds = array<i64: 16, 128>}, {pipeline_mode = #tpu.pipeline_mode<synchronous>, transform_indices = @transform_2, window_bounds = array<i64: 1, 128>}, {pipeline_mode = #tpu.pipeline_mode<synchronous>, transform_indices = @transform_3, window_bounds = array<i64: 1, 32, 128>}, {transform_indices = @transform_4, window_bounds = array<i64: 8, 2, 32>}]} {
    %c0_i32 = arith.constant 0 : i32
    %0 = arith.cmpi eq, %arg0, %c0_i32 : i32
    %1 = arith.extui %0 : i1 to i32
    %c0_i32_0 = arith.constant 0 : i32
    %2 = arith.cmpi ne, %1, %c0_i32_0 : i32
    scf.if %2 {
      %cst_71 = arith.constant 0.000000e+00 : f32
      %286 = vector.broadcast %cst_71 : f32 to vector<1x2x32xf32>
      %c0_72 = arith.constant 0 : index
      %c0_73 = arith.constant 0 : index
      %c0_74 = arith.constant 0 : index
      %287 = vector.load %arg6[%c0_72, %c0_73, %c0_74] : memref<1x2x32xf32, #tpu.memory_space<vmem>>, vector<1x2x32xf32>
      tpu.vector_store %arg6[%c0_72, %c0_73, %c0_74], %286 {strides = array<i32>} : memref<1x2x32xf32, #tpu.memory_space<vmem>>, vector<1x2x32xf32>,
      %cst_75 = arith.constant 0.000000e+00 : f32
      %288 = vector.broadcast %cst_75 : f32 to vector<1x2x32xf32>
      %c0_76 = arith.constant 0 : index
      %c0_77 = arith.constant 0 : index
      %c0_78 = arith.constant 0 : index
      %289 = vector.load %arg7[%c0_76, %c0_77, %c0_78] : memref<1x2x32xf32, #tpu.memory_space<vmem>>, vector<1x2x32xf32>
      tpu.vector_store %arg7[%c0_76, %c0_77, %c0_78], %288 {strides = array<i32>} : memref<1x2x32xf32, #tpu.memory_space<vmem>>, vector<1x2x32xf32>,
    } else {
    }
    %c0 = arith.constant 0 : index
    %c0_1 = arith.constant 0 : index
    %c0_2 = arith.constant 0 : index
    %3 = vector.load %arg1[%c0, %c0_1, %c0_2] : memref<8x2x16xf32, #tpu.memory_space<vmem>>, vector<8x2x16xf32>
    %4 = arith.truncf %3 : vector<8x2x16xf32> to vector<8x2x16xbf16>
    %5 = vector.shape_cast %4 : vector<8x2x16xbf16> to vector<16x16xbf16>
    %c0_3 = arith.constant 0 : index
    %c0_4 = arith.constant 0 : index
    %6 = vector.load %arg2[%c0_3, %c0_4] : memref<16x128xbf16, #tpu.memory_space<vmem>>, vector<16x128xbf16>
    %cst = arith.constant dense<0.000000e+00> : vector<16x128xf32>
    %7 = tpu.matmul %5, %6, %cst {dimension_numbers = #tpu.dot_dimension_numbers<[1], [0], [0], [1], [0, 0, 1, 1], [], []>} : vector<16x16xbf16>, vector<16x128xbf16>, vector<16x128xf32> -> vector<16x128xf32>
    %c0_5 = arith.constant 0 : index
    %c0_6 = arith.constant 0 : index
    %8 = vector.load %arg3[%c0_5, %c0_6] : memref<1x128xf32, #tpu.memory_space<vmem>>, vector<1x128xf32>
    %9 = vector.broadcast %8 : vector<1x128xf32> to vector<16x128xf32>
    %10 = arith.addf %7, %9 : vector<16x128xf32>
    %11 = vector.shape_cast %10 : vector<16x128xf32> to vector<8x2x128xf32>
    %c0_7 = arith.constant 0 : index
    %c0_8 = arith.constant 0 : index
    %c0_9 = arith.constant 0 : index
    %12 = vector.load %arg4[%c0_7, %c0_8, %c0_9] : memref<1x32x128xbf16, #tpu.memory_space<vmem>>, vector<1x32x128xbf16>
    %13 = vector.shape_cast %12 : vector<1x32x128xbf16> to vector<32x128xbf16>
    %c0_10 = arith.constant 0 : index
    %c0_11 = arith.constant 0 : index
    %c0_12 = arith.constant 0 : index
    %14 = vector.load %arg6[%c0_10, %c0_11, %c0_12] : memref<1x2x32xf32, #tpu.memory_space<vmem>>, vector<1x2x32xf32>
    %c0_13 = arith.constant 0 : index
    %c0_14 = arith.constant 0 : index
    %c0_15 = arith.constant 0 : index
    %15 = vector.load %arg7[%c0_13, %c0_14, %c0_15] : memref<1x2x32xf32, #tpu.memory_space<vmem>>, vector<1x2x32xf32>
    %16 = vector.shape_cast %14 : vector<1x2x32xf32> to vector<2x32xf32>
    %17 = vector.shape_cast %15 : vector<1x2x32xf32> to vector<2x32xf32>
    %18 = vector.extract_strided_slice %11 {offsets = [0, 0, 0], sizes = [1, 2, 128], strides = [1, 1, 1]} : vector<8x2x128xf32> to vector<1x2x128xf32>
    %19 = vector.shape_cast %18 : vector<1x2x128xf32> to vector<2x128xf32>
    %20 = arith.truncf %16 : vector<2x32xf32> to vector<2x32xbf16>
    %cst_16 = arith.constant dense<0.000000e+00> : vector<2x128xf32>
    %21 = tpu.matmul %20, %13, %cst_16 {dimension_numbers = #tpu.dot_dimension_numbers<[1], [0], [0], [1], [0, 0, 1, 1], [], []>} : vector<2x32xbf16>, vector<32x128xbf16>, vector<2x128xf32> -> vector<2x128xf32>
    %22 = arith.addf %19, %21 : vector<2x128xf32>
    %23 = vector.extract_strided_slice %22 {offsets = [0, 0], sizes = [2, 32], strides = [1, 1]} : vector<2x128xf32> to vector<2x32xf32>
    %24 = arith.negf %23 : vector<2x32xf32>
    %25 = math.exp %24 : vector<2x32xf32>
    %cst_17 = arith.constant 1.000000e+00 : f32
    %26 = vector.broadcast %cst_17 : f32 to vector<2x32xf32>
    %27 = arith.addf %26, %25 : vector<2x32xf32>
    %28 = arith.divf %26, %27 : vector<2x32xf32>
    %29 = vector.extract_strided_slice %22 {offsets = [0, 32], sizes = [2, 32], strides = [1, 1]} : vector<2x128xf32> to vector<2x32xf32>
    %30 = arith.negf %29 : vector<2x32xf32>
    %31 = math.exp %30 : vector<2x32xf32>
    %cst_18 = arith.constant 1.000000e+00 : f32
    %32 = vector.broadcast %cst_18 : f32 to vector<2x32xf32>
    %33 = arith.addf %32, %31 : vector<2x32xf32>
    %34 = arith.divf %32, %33 : vector<2x32xf32>
    %35 = vector.extract_strided_slice %22 {offsets = [0, 64], sizes = [2, 32], strides = [1, 1]} : vector<2x128xf32> to vector<2x32xf32>
    %36 = math.tanh %35 : vector<2x32xf32>
    %37 = vector.extract_strided_slice %22 {offsets = [0, 96], sizes = [2, 32], strides = [1, 1]} : vector<2x128xf32> to vector<2x32xf32>
    %38 = arith.negf %37 : vector<2x32xf32>
    %39 = math.exp %38 : vector<2x32xf32>
    %cst_19 = arith.constant 1.000000e+00 : f32
    %40 = vector.broadcast %cst_19 : f32 to vector<2x32xf32>
    %41 = arith.addf %40, %39 : vector<2x32xf32>
    %42 = arith.divf %40, %41 : vector<2x32xf32>
    %43 = arith.mulf %34, %17 : vector<2x32xf32>
    %44 = arith.mulf %28, %36 : vector<2x32xf32>
    %45 = arith.addf %43, %44 : vector<2x32xf32>
    %46 = math.tanh %45 : vector<2x32xf32>
    %47 = arith.mulf %42, %46 : vector<2x32xf32>
    %c0_20 = arith.constant 0 : index
    %c0_21 = arith.constant 0 : index
    %c0_22 = arith.constant 0 : index
    %48 = vector.load %arg5[%c0_20, %c0_21, %c0_22] : memref<8x2x32xf32, #tpu.memory_space<vmem>>, vector<1x2x32xf32>
    %49 = vector.shape_cast %48 : vector<1x2x32xf32> to vector<2x32xf32>
    %50 = vector.shape_cast %47 : vector<2x32xf32> to vector<1x2x32xf32>
    tpu.vector_store %arg5[%c0_20, %c0_21, %c0_22], %50 {strides = array<i32>} : memref<8x2x32xf32, #tpu.memory_space<vmem>>, vector<1x2x32xf32>,
    %51 = vector.extract_strided_slice %11 {offsets = [1, 0, 0], sizes = [1, 2, 128], strides = [1, 1, 1]} : vector<8x2x128xf32> to vector<1x2x128xf32>
    %52 = vector.shape_cast %51 : vector<1x2x128xf32> to vector<2x128xf32>
    %53 = arith.truncf %47 : vector<2x32xf32> to vector<2x32xbf16>
    %cst_23 = arith.constant dense<0.000000e+00> : vector<2x128xf32>
    %54 = tpu.matmul %53, %13, %cst_23 {dimension_numbers = #tpu.dot_dimension_numbers<[1], [0], [0], [1], [0, 0, 1, 1], [], []>} : vector<2x32xbf16>, vector<32x128xbf16>, vector<2x128xf32> -> vector<2x128xf32>
    %55 = arith.addf %52, %54 : vector<2x128xf32>
    %56 = vector.extract_strided_slice %55 {offsets = [0, 0], sizes = [2, 32], strides = [1, 1]} : vector<2x128xf32> to vector<2x32xf32>
    %57 = arith.negf %56 : vector<2x32xf32>
    %58 = math.exp %57 : vector<2x32xf32>
    %cst_24 = arith.constant 1.000000e+00 : f32
    %59 = vector.broadcast %cst_24 : f32 to vector<2x32xf32>
    %60 = arith.addf %59, %58 : vector<2x32xf32>
    %61 = arith.divf %59, %60 : vector<2x32xf32>
    %62 = vector.extract_strided_slice %55 {offsets = [0, 32], sizes = [2, 32], strides = [1, 1]} : vector<2x128xf32> to vector<2x32xf32>
    %63 = arith.negf %62 : vector<2x32xf32>
    %64 = math.exp %63 : vector<2x32xf32>
    %cst_25 = arith.constant 1.000000e+00 : f32
    %65 = vector.broadcast %cst_25 : f32 to vector<2x32xf32>
    %66 = arith.addf %65, %64 : vector<2x32xf32>
    %67 = arith.divf %65, %66 : vector<2x32xf32>
    %68 = vector.extract_strided_slice %55 {offsets = [0, 64], sizes = [2, 32], strides = [1, 1]} : vector<2x128xf32> to vector<2x32xf32>
    %69 = math.tanh %68 : vector<2x32xf32>
    %70 = vector.extract_strided_slice %55 {offsets = [0, 96], sizes = [2, 32], strides = [1, 1]} : vector<2x128xf32> to vector<2x32xf32>
    %71 = arith.negf %70 : vector<2x32xf32>
    %72 = math.exp %71 : vector<2x32xf32>
    %cst_26 = arith.constant 1.000000e+00 : f32
    %73 = vector.broadcast %cst_26 : f32 to vector<2x32xf32>
    %74 = arith.addf %73, %72 : vector<2x32xf32>
    %75 = arith.divf %73, %74 : vector<2x32xf32>
    %76 = arith.mulf %67, %45 : vector<2x32xf32>
    %77 = arith.mulf %61, %69 : vector<2x32xf32>
    %78 = arith.addf %76, %77 : vector<2x32xf32>
    %79 = math.tanh %78 : vector<2x32xf32>
    %80 = arith.mulf %75, %79 : vector<2x32xf32>
    %c1 = arith.constant 1 : index
    %c0_27 = arith.constant 0 : index
    %c0_28 = arith.constant 0 : index
    %81 = vector.load %arg5[%c1, %c0_27, %c0_28] : memref<8x2x32xf32, #tpu.memory_space<vmem>>, vector<1x2x32xf32>
    %82 = vector.shape_cast %81 : vector<1x2x32xf32> to vector<2x32xf32>
    %83 = vector.shape_cast %80 : vector<2x32xf32> to vector<1x2x32xf32>
    tpu.vector_store %arg5[%c1, %c0_27, %c0_28], %83 {strides = array<i32>} : memref<8x2x32xf32, #tpu.memory_space<vmem>>, vector<1x2x32xf32>,
    %84 = vector.extract_strided_slice %11 {offsets = [2, 0, 0], sizes = [1, 2, 128], strides = [1, 1, 1]} : vector<8x2x128xf32> to vector<1x2x128xf32>
    %85 = vector.shape_cast %84 : vector<1x2x128xf32> to vector<2x128xf32>
    %86 = arith.truncf %80 : vector<2x32xf32> to vector<2x32xbf16>
    %cst_29 = arith.constant dense<0.000000e+00> : vector<2x128xf32>
    %87 = tpu.matmul %86, %13, %cst_29 {dimension_numbers = #tpu.dot_dimension_numbers<[1], [0], [0], [1], [0, 0, 1, 1], [], []>} : vector<2x32xbf16>, vector<32x128xbf16>, vector<2x128xf32> -> vector<2x128xf32>
    %88 = arith.addf %85, %87 : vector<2x128xf32>
    %89 = vector.extract_strided_slice %88 {offsets = [0, 0], sizes = [2, 32], strides = [1, 1]} : vector<2x128xf32> to vector<2x32xf32>
    %90 = arith.negf %89 : vector<2x32xf32>
    %91 = math.exp %90 : vector<2x32xf32>
    %cst_30 = arith.constant 1.000000e+00 : f32
    %92 = vector.broadcast %cst_30 : f32 to vector<2x32xf32>
    %93 = arith.addf %92, %91 : vector<2x32xf32>
    %94 = arith.divf %92, %93 : vector<2x32xf32>
    %95 = vector.extract_strided_slice %88 {offsets = [0, 32], sizes = [2, 32], strides = [1, 1]} : vector<2x128xf32> to vector<2x32xf32>
    %96 = arith.negf %95 : vector<2x32xf32>
    %97 = math.exp %96 : vector<2x32xf32>
    %cst_31 = arith.constant 1.000000e+00 : f32
    %98 = vector.broadcast %cst_31 : f32 to vector<2x32xf32>
    %99 = arith.addf %98, %97 : vector<2x32xf32>
    %100 = arith.divf %98, %99 : vector<2x32xf32>
    %101 = vector.extract_strided_slice %88 {offsets = [0, 64], sizes = [2, 32], strides = [1, 1]} : vector<2x128xf32> to vector<2x32xf32>
    %102 = math.tanh %101 : vector<2x32xf32>
    %103 = vector.extract_strided_slice %88 {offsets = [0, 96], sizes = [2, 32], strides = [1, 1]} : vector<2x128xf32> to vector<2x32xf32>
    %104 = arith.negf %103 : vector<2x32xf32>
    %105 = math.exp %104 : vector<2x32xf32>
    %cst_32 = arith.constant 1.000000e+00 : f32
    %106 = vector.broadcast %cst_32 : f32 to vector<2x32xf32>
    %107 = arith.addf %106, %105 : vector<2x32xf32>
    %108 = arith.divf %106, %107 : vector<2x32xf32>
    %109 = arith.mulf %100, %78 : vector<2x32xf32>
    %110 = arith.mulf %94, %102 : vector<2x32xf32>
    %111 = arith.addf %109, %110 : vector<2x32xf32>
    %112 = math.tanh %111 : vector<2x32xf32>
    %113 = arith.mulf %108, %112 : vector<2x32xf32>
    %c2 = arith.constant 2 : index
    %c0_33 = arith.constant 0 : index
    %c0_34 = arith.constant 0 : index
    %114 = vector.load %arg5[%c2, %c0_33, %c0_34] : memref<8x2x32xf32, #tpu.memory_space<vmem>>, vector<1x2x32xf32>
    %115 = vector.shape_cast %114 : vector<1x2x32xf32> to vector<2x32xf32>
    %116 = vector.shape_cast %113 : vector<2x32xf32> to vector<1x2x32xf32>
    tpu.vector_store %arg5[%c2, %c0_33, %c0_34], %116 {strides = array<i32>} : memref<8x2x32xf32, #tpu.memory_space<vmem>>, vector<1x2x32xf32>,
    %117 = vector.extract_strided_slice %11 {offsets = [3, 0, 0], sizes = [1, 2, 128], strides = [1, 1, 1]} : vector<8x2x128xf32> to vector<1x2x128xf32>
    %118 = vector.shape_cast %117 : vector<1x2x128xf32> to vector<2x128xf32>
    %119 = arith.truncf %113 : vector<2x32xf32> to vector<2x32xbf16>
    %cst_35 = arith.constant dense<0.000000e+00> : vector<2x128xf32>
    %120 = tpu.matmul %119, %13, %cst_35 {dimension_numbers = #tpu.dot_dimension_numbers<[1], [0], [0], [1], [0, 0, 1, 1], [], []>} : vector<2x32xbf16>, vector<32x128xbf16>, vector<2x128xf32> -> vector<2x128xf32>
    %121 = arith.addf %118, %120 : vector<2x128xf32>
    %122 = vector.extract_strided_slice %121 {offsets = [0, 0], sizes = [2, 32], strides = [1, 1]} : vector<2x128xf32> to vector<2x32xf32>
    %123 = arith.negf %122 : vector<2x32xf32>
    %124 = math.exp %123 : vector<2x32xf32>
    %cst_36 = arith.constant 1.000000e+00 : f32
    %125 = vector.broadcast %cst_36 : f32 to vector<2x32xf32>
    %126 = arith.addf %125, %124 : vector<2x32xf32>
    %127 = arith.divf %125, %126 : vector<2x32xf32>
    %128 = vector.extract_strided_slice %121 {offsets = [0, 32], sizes = [2, 32], strides = [1, 1]} : vector<2x128xf32> to vector<2x32xf32>
    %129 = arith.negf %128 : vector<2x32xf32>
    %130 = math.exp %129 : vector<2x32xf32>
    %cst_37 = arith.constant 1.000000e+00 : f32
    %131 = vector.broadcast %cst_37 : f32 to vector<2x32xf32>
    %132 = arith.addf %131, %130 : vector<2x32xf32>
    %133 = arith.divf %131, %132 : vector<2x32xf32>
    %134 = vector.extract_strided_slice %121 {offsets = [0, 64], sizes = [2, 32], strides = [1, 1]} : vector<2x128xf32> to vector<2x32xf32>
    %135 = math.tanh %134 : vector<2x32xf32>
    %136 = vector.extract_strided_slice %121 {offsets = [0, 96], sizes = [2, 32], strides = [1, 1]} : vector<2x128xf32> to vector<2x32xf32>
    %137 = arith.negf %136 : vector<2x32xf32>
    %138 = math.exp %137 : vector<2x32xf32>
    %cst_38 = arith.constant 1.000000e+00 : f32
    %139 = vector.broadcast %cst_38 : f32 to vector<2x32xf32>
    %140 = arith.addf %139, %138 : vector<2x32xf32>
    %141 = arith.divf %139, %140 : vector<2x32xf32>
    %142 = arith.mulf %133, %111 : vector<2x32xf32>
    %143 = arith.mulf %127, %135 : vector<2x32xf32>
    %144 = arith.addf %142, %143 : vector<2x32xf32>
    %145 = math.tanh %144 : vector<2x32xf32>
    %146 = arith.mulf %141, %145 : vector<2x32xf32>
    %c3 = arith.constant 3 : index
    %c0_39 = arith.constant 0 : index
    %c0_40 = arith.constant 0 : index
    %147 = vector.load %arg5[%c3, %c0_39, %c0_40] : memref<8x2x32xf32, #tpu.memory_space<vmem>>, vector<1x2x32xf32>
    %148 = vector.shape_cast %147 : vector<1x2x32xf32> to vector<2x32xf32>
    %149 = vector.shape_cast %146 : vector<2x32xf32> to vector<1x2x32xf32>
    tpu.vector_store %arg5[%c3, %c0_39, %c0_40], %149 {strides = array<i32>} : memref<8x2x32xf32, #tpu.memory_space<vmem>>, vector<1x2x32xf32>,
    %150 = vector.extract_strided_slice %11 {offsets = [4, 0, 0], sizes = [1, 2, 128], strides = [1, 1, 1]} : vector<8x2x128xf32> to vector<1x2x128xf32>
    %151 = vector.shape_cast %150 : vector<1x2x128xf32> to vector<2x128xf32>
    %152 = arith.truncf %146 : vector<2x32xf32> to vector<2x32xbf16>
    %cst_41 = arith.constant dense<0.000000e+00> : vector<2x128xf32>
    %153 = tpu.matmul %152, %13, %cst_41 {dimension_numbers = #tpu.dot_dimension_numbers<[1], [0], [0], [1], [0, 0, 1, 1], [], []>} : vector<2x32xbf16>, vector<32x128xbf16>, vector<2x128xf32> -> vector<2x128xf32>
    %154 = arith.addf %151, %153 : vector<2x128xf32>
    %155 = vector.extract_strided_slice %154 {offsets = [0, 0], sizes = [2, 32], strides = [1, 1]} : vector<2x128xf32> to vector<2x32xf32>
    %156 = arith.negf %155 : vector<2x32xf32>
    %157 = math.exp %156 : vector<2x32xf32>
    %cst_42 = arith.constant 1.000000e+00 : f32
    %158 = vector.broadcast %cst_42 : f32 to vector<2x32xf32>
    %159 = arith.addf %158, %157 : vector<2x32xf32>
    %160 = arith.divf %158, %159 : vector<2x32xf32>
    %161 = vector.extract_strided_slice %154 {offsets = [0, 32], sizes = [2, 32], strides = [1, 1]} : vector<2x128xf32> to vector<2x32xf32>
    %162 = arith.negf %161 : vector<2x32xf32>
    %163 = math.exp %162 : vector<2x32xf32>
    %cst_43 = arith.constant 1.000000e+00 : f32
    %164 = vector.broadcast %cst_43 : f32 to vector<2x32xf32>
    %165 = arith.addf %164, %163 : vector<2x32xf32>
    %166 = arith.divf %164, %165 : vector<2x32xf32>
    %167 = vector.extract_strided_slice %154 {offsets = [0, 64], sizes = [2, 32], strides = [1, 1]} : vector<2x128xf32> to vector<2x32xf32>
    %168 = math.tanh %167 : vector<2x32xf32>
    %169 = vector.extract_strided_slice %154 {offsets = [0, 96], sizes = [2, 32], strides = [1, 1]} : vector<2x128xf32> to vector<2x32xf32>
    %170 = arith.negf %169 : vector<2x32xf32>
    %171 = math.exp %170 : vector<2x32xf32>
    %cst_44 = arith.constant 1.000000e+00 : f32
    %172 = vector.broadcast %cst_44 : f32 to vector<2x32xf32>
    %173 = arith.addf %172, %171 : vector<2x32xf32>
    %174 = arith.divf %172, %173 : vector<2x32xf32>
    %175 = arith.mulf %166, %144 : vector<2x32xf32>
    %176 = arith.mulf %160, %168 : vector<2x32xf32>
    %177 = arith.addf %175, %176 : vector<2x32xf32>
    %178 = math.tanh %177 : vector<2x32xf32>
    %179 = arith.mulf %174, %178 : vector<2x32xf32>
    %c4 = arith.constant 4 : index
    %c0_45 = arith.constant 0 : index
    %c0_46 = arith.constant 0 : index
    %180 = vector.load %arg5[%c4, %c0_45, %c0_46] : memref<8x2x32xf32, #tpu.memory_space<vmem>>, vector<1x2x32xf32>
    %181 = vector.shape_cast %180 : vector<1x2x32xf32> to vector<2x32xf32>
    %182 = vector.shape_cast %179 : vector<2x32xf32> to vector<1x2x32xf32>
    tpu.vector_store %arg5[%c4, %c0_45, %c0_46], %182 {strides = array<i32>} : memref<8x2x32xf32, #tpu.memory_space<vmem>>, vector<1x2x32xf32>,
    %183 = vector.extract_strided_slice %11 {offsets = [5, 0, 0], sizes = [1, 2, 128], strides = [1, 1, 1]} : vector<8x2x128xf32> to vector<1x2x128xf32>
    %184 = vector.shape_cast %183 : vector<1x2x128xf32> to vector<2x128xf32>
    %185 = arith.truncf %179 : vector<2x32xf32> to vector<2x32xbf16>
    %cst_47 = arith.constant dense<0.000000e+00> : vector<2x128xf32>
    %186 = tpu.matmul %185, %13, %cst_47 {dimension_numbers = #tpu.dot_dimension_numbers<[1], [0], [0], [1], [0, 0, 1, 1], [], []>} : vector<2x32xbf16>, vector<32x128xbf16>, vector<2x128xf32> -> vector<2x128xf32>
    %187 = arith.addf %184, %186 : vector<2x128xf32>
    %188 = vector.extract_strided_slice %187 {offsets = [0, 0], sizes = [2, 32], strides = [1, 1]} : vector<2x128xf32> to vector<2x32xf32>
    %189 = arith.negf %188 : vector<2x32xf32>
    %190 = math.exp %189 : vector<2x32xf32>
    %cst_48 = arith.constant 1.000000e+00 : f32
    %191 = vector.broadcast %cst_48 : f32 to vector<2x32xf32>
    %192 = arith.addf %191, %190 : vector<2x32xf32>
    %193 = arith.divf %191, %192 : vector<2x32xf32>
    %194 = vector.extract_strided_slice %187 {offsets = [0, 32], sizes = [2, 32], strides = [1, 1]} : vector<2x128xf32> to vector<2x32xf32>
    %195 = arith.negf %194 : vector<2x32xf32>
    %196 = math.exp %195 : vector<2x32xf32>
    %cst_49 = arith.constant 1.000000e+00 : f32
    %197 = vector.broadcast %cst_49 : f32 to vector<2x32xf32>
    %198 = arith.addf %197, %196 : vector<2x32xf32>
    %199 = arith.divf %197, %198 : vector<2x32xf32>
    %200 = vector.extract_strided_slice %187 {offsets = [0, 64], sizes = [2, 32], strides = [1, 1]} : vector<2x128xf32> to vector<2x32xf32>
    %201 = math.tanh %200 : vector<2x32xf32>
    %202 = vector.extract_strided_slice %187 {offsets = [0, 96], sizes = [2, 32], strides = [1, 1]} : vector<2x128xf32> to vector<2x32xf32>
    %203 = arith.negf %202 : vector<2x32xf32>
    %204 = math.exp %203 : vector<2x32xf32>
    %cst_50 = arith.constant 1.000000e+00 : f32
    %205 = vector.broadcast %cst_50 : f32 to vector<2x32xf32>
    %206 = arith.addf %205, %204 : vector<2x32xf32>
    %207 = arith.divf %205, %206 : vector<2x32xf32>
    %208 = arith.mulf %199, %177 : vector<2x32xf32>
    %209 = arith.mulf %193, %201 : vector<2x32xf32>
    %210 = arith.addf %208, %209 : vector<2x32xf32>
    %211 = math.tanh %210 : vector<2x32xf32>
    %212 = arith.mulf %207, %211 : vector<2x32xf32>
    %c5 = arith.constant 5 : index
    %c0_51 = arith.constant 0 : index
    %c0_52 = arith.constant 0 : index
    %213 = vector.load %arg5[%c5, %c0_51, %c0_52] : memref<8x2x32xf32, #tpu.memory_space<vmem>>, vector<1x2x32xf32>
    %214 = vector.shape_cast %213 : vector<1x2x32xf32> to vector<2x32xf32>
    %215 = vector.shape_cast %212 : vector<2x32xf32> to vector<1x2x32xf32>
    tpu.vector_store %arg5[%c5, %c0_51, %c0_52], %215 {strides = array<i32>} : memref<8x2x32xf32, #tpu.memory_space<vmem>>, vector<1x2x32xf32>,
    %216 = vector.extract_strided_slice %11 {offsets = [6, 0, 0], sizes = [1, 2, 128], strides = [1, 1, 1]} : vector<8x2x128xf32> to vector<1x2x128xf32>
    %217 = vector.shape_cast %216 : vector<1x2x128xf32> to vector<2x128xf32>
    %218 = arith.truncf %212 : vector<2x32xf32> to vector<2x32xbf16>
    %cst_53 = arith.constant dense<0.000000e+00> : vector<2x128xf32>
    %219 = tpu.matmul %218, %13, %cst_53 {dimension_numbers = #tpu.dot_dimension_numbers<[1], [0], [0], [1], [0, 0, 1, 1], [], []>} : vector<2x32xbf16>, vector<32x128xbf16>, vector<2x128xf32> -> vector<2x128xf32>
    %220 = arith.addf %217, %219 : vector<2x128xf32>
    %221 = vector.extract_strided_slice %220 {offsets = [0, 0], sizes = [2, 32], strides = [1, 1]} : vector<2x128xf32> to vector<2x32xf32>
    %222 = arith.negf %221 : vector<2x32xf32>
    %223 = math.exp %222 : vector<2x32xf32>
    %cst_54 = arith.constant 1.000000e+00 : f32
    %224 = vector.broadcast %cst_54 : f32 to vector<2x32xf32>
    %225 = arith.addf %224, %223 : vector<2x32xf32>
    %226 = arith.divf %224, %225 : vector<2x32xf32>
    %227 = vector.extract_strided_slice %220 {offsets = [0, 32], sizes = [2, 32], strides = [1, 1]} : vector<2x128xf32> to vector<2x32xf32>
    %228 = arith.negf %227 : vector<2x32xf32>
    %229 = math.exp %228 : vector<2x32xf32>
    %cst_55 = arith.constant 1.000000e+00 : f32
    %230 = vector.broadcast %cst_55 : f32 to vector<2x32xf32>
    %231 = arith.addf %230, %229 : vector<2x32xf32>
    %232 = arith.divf %230, %231 : vector<2x32xf32>
    %233 = vector.extract_strided_slice %220 {offsets = [0, 64], sizes = [2, 32], strides = [1, 1]} : vector<2x128xf32> to vector<2x32xf32>
    %234 = math.tanh %233 : vector<2x32xf32>
    %235 = vector.extract_strided_slice %220 {offsets = [0, 96], sizes = [2, 32], strides = [1, 1]} : vector<2x128xf32> to vector<2x32xf32>
    %236 = arith.negf %235 : vector<2x32xf32>
    %237 = math.exp %236 : vector<2x32xf32>
    %cst_56 = arith.constant 1.000000e+00 : f32
    %238 = vector.broadcast %cst_56 : f32 to vector<2x32xf32>
    %239 = arith.addf %238, %237 : vector<2x32xf32>
    %240 = arith.divf %238, %239 : vector<2x32xf32>
    %241 = arith.mulf %232, %210 : vector<2x32xf32>
    %242 = arith.mulf %226, %234 : vector<2x32xf32>
    %243 = arith.addf %241, %242 : vector<2x32xf32>
    %244 = math.tanh %243 : vector<2x32xf32>
    %245 = arith.mulf %240, %244 : vector<2x32xf32>
    %c6 = arith.constant 6 : index
    %c0_57 = arith.constant 0 : index
    %c0_58 = arith.constant 0 : index
    %246 = vector.load %arg5[%c6, %c0_57, %c0_58] : memref<8x2x32xf32, #tpu.memory_space<vmem>>, vector<1x2x32xf32>
    %247 = vector.shape_cast %246 : vector<1x2x32xf32> to vector<2x32xf32>
    %248 = vector.shape_cast %245 : vector<2x32xf32> to vector<1x2x32xf32>
    tpu.vector_store %arg5[%c6, %c0_57, %c0_58], %248 {strides = array<i32>} : memref<8x2x32xf32, #tpu.memory_space<vmem>>, vector<1x2x32xf32>,
    %249 = vector.extract_strided_slice %11 {offsets = [7, 0, 0], sizes = [1, 2, 128], strides = [1, 1, 1]} : vector<8x2x128xf32> to vector<1x2x128xf32>
    %250 = vector.shape_cast %249 : vector<1x2x128xf32> to vector<2x128xf32>
    %251 = arith.truncf %245 : vector<2x32xf32> to vector<2x32xbf16>
    %cst_59 = arith.constant dense<0.000000e+00> : vector<2x128xf32>
    %252 = tpu.matmul %251, %13, %cst_59 {dimension_numbers = #tpu.dot_dimension_numbers<[1], [0], [0], [1], [0, 0, 1, 1], [], []>} : vector<2x32xbf16>, vector<32x128xbf16>, vector<2x128xf32> -> vector<2x128xf32>
    %253 = arith.addf %250, %252 : vector<2x128xf32>
    %254 = vector.extract_strided_slice %253 {offsets = [0, 0], sizes = [2, 32], strides = [1, 1]} : vector<2x128xf32> to vector<2x32xf32>
    %255 = arith.negf %254 : vector<2x32xf32>
    %256 = math.exp %255 : vector<2x32xf32>
    %cst_60 = arith.constant 1.000000e+00 : f32
    %257 = vector.broadcast %cst_60 : f32 to vector<2x32xf32>
    %258 = arith.addf %257, %256 : vector<2x32xf32>
    %259 = arith.divf %257, %258 : vector<2x32xf32>
    %260 = vector.extract_strided_slice %253 {offsets = [0, 32], sizes = [2, 32], strides = [1, 1]} : vector<2x128xf32> to vector<2x32xf32>
    %261 = arith.negf %260 : vector<2x32xf32>
    %262 = math.exp %261 : vector<2x32xf32>
    %cst_61 = arith.constant 1.000000e+00 : f32
    %263 = vector.broadcast %cst_61 : f32 to vector<2x32xf32>
    %264 = arith.addf %263, %262 : vector<2x32xf32>
    %265 = arith.divf %263, %264 : vector<2x32xf32>
    %266 = vector.extract_strided_slice %253 {offsets = [0, 64], sizes = [2, 32], strides = [1, 1]} : vector<2x128xf32> to vector<2x32xf32>
    %267 = math.tanh %266 : vector<2x32xf32>
    %268 = vector.extract_strided_slice %253 {offsets = [0, 96], sizes = [2, 32], strides = [1, 1]} : vector<2x128xf32> to vector<2x32xf32>
    %269 = arith.negf %268 : vector<2x32xf32>
    %270 = math.exp %269 : vector<2x32xf32>
    %cst_62 = arith.constant 1.000000e+00 : f32
    %271 = vector.broadcast %cst_62 : f32 to vector<2x32xf32>
    %272 = arith.addf %271, %270 : vector<2x32xf32>
    %273 = arith.divf %271, %272 : vector<2x32xf32>
    %274 = arith.mulf %265, %243 : vector<2x32xf32>
    %275 = arith.mulf %259, %267 : vector<2x32xf32>
    %276 = arith.addf %274, %275 : vector<2x32xf32>
    %277 = math.tanh %276 : vector<2x32xf32>
    %278 = arith.mulf %273, %277 : vector<2x32xf32>
    %c7 = arith.constant 7 : index
    %c0_63 = arith.constant 0 : index
    %c0_64 = arith.constant 0 : index
    %279 = vector.load %arg5[%c7, %c0_63, %c0_64] : memref<8x2x32xf32, #tpu.memory_space<vmem>>, vector<1x2x32xf32>
    %280 = vector.shape_cast %279 : vector<1x2x32xf32> to vector<2x32xf32>
    %281 = vector.shape_cast %278 : vector<2x32xf32> to vector<1x2x32xf32>
    tpu.vector_store %arg5[%c7, %c0_63, %c0_64], %281 {strides = array<i32>} : memref<8x2x32xf32, #tpu.memory_space<vmem>>, vector<1x2x32xf32>,
    %282 = vector.shape_cast %278 : vector<2x32xf32> to vector<1x2x32xf32>
    %c0_65 = arith.constant 0 : index
    %c0_66 = arith.constant 0 : index
    %c0_67 = arith.constant 0 : index
    %283 = vector.load %arg6[%c0_65, %c0_66, %c0_67] : memref<1x2x32xf32, #tpu.memory_space<vmem>>, vector<1x2x32xf32>
    tpu.vector_store %arg6[%c0_65, %c0_66, %c0_67], %282 {strides = array<i32>} : memref<1x2x32xf32, #tpu.memory_space<vmem>>, vector<1x2x32xf32>,
    %284 = vector.shape_cast %276 : vector<2x32xf32> to vector<1x2x32xf32>
    %c0_68 = arith.constant 0 : index
    %c0_69 = arith.constant 0 : index
    %c0_70 = arith.constant 0 : index
    %285 = vector.load %arg7[%c0_68, %c0_69, %c0_70] : memref<1x2x32xf32, #tpu.memory_space<vmem>>, vector<1x2x32xf32>
    tpu.vector_store %arg7[%c0_68, %c0_69, %c0_70], %284 {strides = array<i32>} : memref<1x2x32xf32, #tpu.memory_space<vmem>>, vector<1x2x32xf32>,
    return
  }
  func.func @transform_0(%arg0: i32) -> (i32, i32, i32) {
    %c0_i32 = arith.constant 0 : i32
    %c0_i32_0 = arith.constant 0 : i32
    %c0_i32_1 = arith.constant 0 : i32
    return %arg0, %c0_i32, %c0_i32_0 : i32, i32, i32
  }
  func.func @transform_1(%arg0: i32) -> (i32, i32) {
    %c0_i32 = arith.constant 0 : i32
    %c0_i32_0 = arith.constant 0 : i32
    %c0_i32_1 = arith.constant 0 : i32
    return %c0_i32, %c0_i32_0 : i32, i32
  }
  func.func @transform_2(%arg0: i32) -> (i32, i32) {
    %c0_i32 = arith.constant 0 : i32
    %c0_i32_0 = arith.constant 0 : i32
    %c0_i32_1 = arith.constant 0 : i32
    return %c0_i32, %c0_i32_0 : i32, i32
  }
  func.func @transform_3(%arg0: i32) -> (i32, i32, i32) {
    %c0_i32 = arith.constant 0 : i32
    %c0_i32_0 = arith.constant 0 : i32
    %c0_i32_1 = arith.constant 0 : i32
    %c0_i32_2 = arith.constant 0 : i32
    return %c0_i32, %c0_i32_0, %c0_i32_1 : i32, i32, i32
  }
  func.func @transform_4(%arg0: i32) -> (i32, i32, i32) {
    %c0_i32 = arith.constant 0 : i32
    %c0_i32_0 = arith.constant 0 : i32
    %c0_i32_1 = arith.constant 0 : i32
    return %arg0, %c0_i32, %c0_i32_0 : i32, i32, i32
  }
}

module attributes {stable_mosaic.version = 11 : i64} {
  func.func @acc_mse_fused_kernel(%arg0: i32, %arg1: memref<16x32xf32, #tpu.memory_space<vmem>>, %arg2: memref<16x32xf32, #tpu.memory_space<vmem>>, %arg3: memref<32x128xbf16, #tpu.memory_space<vmem>>, %arg4: memref<1x128xf32, #tpu.memory_space<vmem>>, %arg5: memref<32x128xbf16, #tpu.memory_space<vmem>>, %arg6: memref<1x128xf32, #tpu.memory_space<vmem>>, %arg7: memref<16x1xi32, #tpu.memory_space<vmem>>, %arg8: memref<1x1xf32, #tpu.memory_space<vmem>>, %arg9: memref<1x1xf32, #tpu.memory_space<vmem>>, %arg10: memref<1x1xf32, #tpu.memory_space<vmem>>) attributes {dimension_semantics = [#tpu.dimension_semantics<arbitrary>], iteration_bounds = array<i64: 1>, scalar_prefetch = 0 : i64, scratch_operands = 0 : i64, tpu.core_type = #tpu.core_type<tc>, window_params = [{transform_indices = @transform_0, window_bounds = array<i64: 16, 32>}, {transform_indices = @transform_1, window_bounds = array<i64: 16, 32>}, {pipeline_mode = #tpu.pipeline_mode<synchronous>, transform_indices = @transform_2, window_bounds = array<i64: 32, 128>}, {pipeline_mode = #tpu.pipeline_mode<synchronous>, transform_indices = @transform_3, window_bounds = array<i64: 1, 128>}, {pipeline_mode = #tpu.pipeline_mode<synchronous>, transform_indices = @transform_4, window_bounds = array<i64: 32, 128>}, {pipeline_mode = #tpu.pipeline_mode<synchronous>, transform_indices = @transform_5, window_bounds = array<i64: 1, 128>}, {transform_indices = @transform_6, window_bounds = array<i64: 16, 1>}, {pipeline_mode = #tpu.pipeline_mode<synchronous>, transform_indices = @transform_7, window_bounds = array<i64: 1, 1>}, {pipeline_mode = #tpu.pipeline_mode<synchronous>, transform_indices = @transform_8, window_bounds = array<i64: 1, 1>}, {pipeline_mode = #tpu.pipeline_mode<synchronous>, transform_indices = @transform_9, window_bounds = array<i64: 1, 1>}]} {
    %c0_i32 = arith.constant 0 : i32
    %0 = arith.cmpi eq, %arg0, %c0_i32 : i32
    %1 = arith.extui %0 : i1 to i32
    %c0_i32_0 = arith.constant 0 : i32
    %2 = arith.cmpi ne, %1, %c0_i32_0 : i32
    scf.if %2 {
      %cst_40 = arith.constant 0.000000e+00 : f32
      %94 = vector.broadcast %cst_40 : f32 to vector<1x1xf32>
      %c0_41 = arith.constant 0 : index
      %c0_42 = arith.constant 0 : index
      %95 = vector.load %arg8[%c0_41, %c0_42] : memref<1x1xf32, #tpu.memory_space<vmem>>, vector<1x1xf32>
      tpu.vector_store %arg8[%c0_41, %c0_42], %94 {strides = array<i32>} : memref<1x1xf32, #tpu.memory_space<vmem>>, vector<1x1xf32>,
      %cst_43 = arith.constant 0.000000e+00 : f32
      %96 = vector.broadcast %cst_43 : f32 to vector<1x1xf32>
      %c0_44 = arith.constant 0 : index
      %c0_45 = arith.constant 0 : index
      %97 = vector.load %arg9[%c0_44, %c0_45] : memref<1x1xf32, #tpu.memory_space<vmem>>, vector<1x1xf32>
      tpu.vector_store %arg9[%c0_44, %c0_45], %96 {strides = array<i32>} : memref<1x1xf32, #tpu.memory_space<vmem>>, vector<1x1xf32>,
      %cst_46 = arith.constant 0.000000e+00 : f32
      %98 = vector.broadcast %cst_46 : f32 to vector<1x1xf32>
      %c0_47 = arith.constant 0 : index
      %c0_48 = arith.constant 0 : index
      %99 = vector.load %arg10[%c0_47, %c0_48] : memref<1x1xf32, #tpu.memory_space<vmem>>, vector<1x1xf32>
      tpu.vector_store %arg10[%c0_47, %c0_48], %98 {strides = array<i32>} : memref<1x1xf32, #tpu.memory_space<vmem>>, vector<1x1xf32>,
    } else {
    }
    %c0 = arith.constant 0 : index
    %c0_1 = arith.constant 0 : index
    %3 = vector.load %arg1[%c0, %c0_1] : memref<16x32xf32, #tpu.memory_space<vmem>>, vector<16x32xf32>
    %4 = arith.truncf %3 : vector<16x32xf32> to vector<16x32xbf16>
    %c0_2 = arith.constant 0 : index
    %c0_3 = arith.constant 0 : index
    %5 = vector.load %arg3[%c0_2, %c0_3] : memref<32x128xbf16, #tpu.memory_space<vmem>>, vector<32x128xbf16>
    %cst = arith.constant dense<0.000000e+00> : vector<16x128xf32>
    %6 = tpu.matmul %4, %5, %cst {dimension_numbers = #tpu.dot_dimension_numbers<[1], [0], [0], [1], [0, 0, 1, 1], [], []>} : vector<16x32xbf16>, vector<32x128xbf16>, vector<16x128xf32> -> vector<16x128xf32>
    %c0_4 = arith.constant 0 : index
    %c0_5 = arith.constant 0 : index
    %7 = vector.load %arg4[%c0_4, %c0_5] : memref<1x128xf32, #tpu.memory_space<vmem>>, vector<1x128xf32>
    %8 = vector.broadcast %7 : vector<1x128xf32> to vector<16x128xf32>
    %9 = arith.addf %6, %8 : vector<16x128xf32>
    %c0_6 = arith.constant 0 : index
    %c0_7 = arith.constant 0 : index
    %10 = vector.load %arg2[%c0_6, %c0_7] : memref<16x32xf32, #tpu.memory_space<vmem>>, vector<16x32xf32>
    %11 = arith.truncf %10 : vector<16x32xf32> to vector<16x32xbf16>
    %c0_8 = arith.constant 0 : index
    %c0_9 = arith.constant 0 : index
    %12 = vector.load %arg5[%c0_8, %c0_9] : memref<32x128xbf16, #tpu.memory_space<vmem>>, vector<32x128xbf16>
    %cst_10 = arith.constant dense<0.000000e+00> : vector<16x128xf32>
    %13 = tpu.matmul %11, %12, %cst_10 {dimension_numbers = #tpu.dot_dimension_numbers<[1], [0], [0], [1], [0, 0, 1, 1], [], []>} : vector<16x32xbf16>, vector<32x128xbf16>, vector<16x128xf32> -> vector<16x128xf32>
    %c0_11 = arith.constant 0 : index
    %c0_12 = arith.constant 0 : index
    %14 = vector.load %arg6[%c0_11, %c0_12] : memref<1x128xf32, #tpu.memory_space<vmem>>, vector<1x128xf32>
    %15 = vector.broadcast %14 : vector<1x128xf32> to vector<16x128xf32>
    %16 = arith.addf %13, %15 : vector<16x128xf32>
    %c0_13 = arith.constant 0 : index
    %c0_14 = arith.constant 0 : index
    %17 = vector.load %arg7[%c0_13, %c0_14] : memref<16x1xi32, #tpu.memory_space<vmem>>, vector<16x1xi32>
    %18 = tpu.iota {dimensions = array<i32: 1>} : vector<16x128xi32>
    %c10_i32 = arith.constant 10 : i32
    %19 = vector.broadcast %c10_i32 : i32 to vector<16x128xi32>
    %20 = arith.cmpi slt, %18, %19 : vector<16x128xi32>
    %cst_15 = arith.constant -1.000000e+30 : f32
    %21 = vector.broadcast %cst_15 : f32 to vector<16x128xf32>
    %22 = arith.select %20, %9, %21 : vector<16x128xi1>, vector<16x128xf32>
    %cst_16 = arith.constant -1.000000e+30 : f32
    %23 = vector.broadcast %cst_16 : f32 to vector<16x128xf32>
    %24 = arith.select %20, %16, %23 : vector<16x128xi1>, vector<16x128xf32>
    %cst_17 = arith.constant dense<0xFF800000> : vector<16xf32>
    %25 = vector.multi_reduction <maximumf>, %24, %cst_17 [1] : vector<16x128xf32> to vector<16xf32>
    %26 = vector.shape_cast %25 : vector<16xf32> to vector<16x1xf32>
    %27 = vector.broadcast %26 : vector<16x1xf32> to vector<16x128xf32>
    %28 = arith.cmpf oeq, %24, %27 : vector<16x128xf32>
    %c128_i32 = arith.constant 128 : i32
    %29 = vector.broadcast %c128_i32 : i32 to vector<16x128xi32>
    %30 = arith.select %28, %18, %29 : vector<16x128xi1>, vector<16x128xi32>
    %cst_18 = arith.constant dense<2147483647> : vector<16xi32>
    %31 = vector.multi_reduction <minsi>, %30, %cst_18 [1] : vector<16x128xi32> to vector<16xi32>
    %32 = vector.shape_cast %31 : vector<16xi32> to vector<16x1xi32>
    %c-1_i32 = arith.constant -1 : i32
    %33 = vector.broadcast %c-1_i32 : i32 to vector<16x1xi32>
    %34 = arith.cmpi ne, %17, %33 : vector<16x1xi32>
    %c0_19 = arith.constant 0 : index
    %c0_20 = arith.constant 0 : index
    %35 = vector.load %arg8[%c0_19, %c0_20] : memref<1x1xf32, #tpu.memory_space<vmem>>, vector<1x1xf32>
    %36 = arith.cmpi eq, %32, %17 : vector<16x1xi32>
    %37 = arith.andi %34, %36 : vector<16x1xi1>
    %cst_21 = arith.constant 1.000000e+00 : f32
    %cst_22 = arith.constant 0.000000e+00 : f32
    %38 = vector.broadcast %cst_21 : f32 to vector<16x1xf32>
    %39 = vector.broadcast %cst_22 : f32 to vector<16x1xf32>
    %40 = arith.select %37, %38, %39 : vector<16x1xi1>, vector<16x1xf32>
    %41 = vector.shape_cast %40 : vector<16x1xf32> to vector<1x16x1xf32>
    %cst_23 = arith.constant dense<0.000000e+00> : vector<1xf32>
    %42 = vector.multi_reduction <add>, %41, %cst_23 [1, 2] : vector<1x16x1xf32> to vector<1xf32>
    %43 = vector.shape_cast %42 : vector<1xf32> to vector<1x1x1xf32>
    %44 = vector.extract %43[0, 0, 0] : f32 from vector<1x1x1xf32>
    %45 = vector.broadcast %44 : f32 to vector<1x1xf32>
    %46 = arith.addf %35, %45 : vector<1x1xf32>
    %c0_24 = arith.constant 0 : index
    %c0_25 = arith.constant 0 : index
    %47 = vector.load %arg8[%c0_24, %c0_25] : memref<1x1xf32, #tpu.memory_space<vmem>>, vector<1x1xf32>
    tpu.vector_store %arg8[%c0_24, %c0_25], %46 {strides = array<i32>} : memref<1x1xf32, #tpu.memory_space<vmem>>, vector<1x1xf32>,
    %c0_26 = arith.constant 0 : index
    %c0_27 = arith.constant 0 : index
    %48 = vector.load %arg9[%c0_26, %c0_27] : memref<1x1xf32, #tpu.memory_space<vmem>>, vector<1x1xf32>
    %49 = arith.extui %34 : vector<16x1xi1> to vector<16x1xi32>
    %50 = arith.sitofp %49 : vector<16x1xi32> to vector<16x1xf32>
    %51 = vector.shape_cast %50 : vector<16x1xf32> to vector<1x16x1xf32>
    %cst_28 = arith.constant dense<0.000000e+00> : vector<1xf32>
    %52 = vector.multi_reduction <add>, %51, %cst_28 [1, 2] : vector<1x16x1xf32> to vector<1xf32>
    %53 = vector.shape_cast %52 : vector<1xf32> to vector<1x1x1xf32>
    %54 = vector.extract %53[0, 0, 0] : f32 from vector<1x1x1xf32>
    %55 = vector.broadcast %54 : f32 to vector<1x1xf32>
    %56 = arith.addf %48, %55 : vector<1x1xf32>
    %c0_29 = arith.constant 0 : index
    %c0_30 = arith.constant 0 : index
    %57 = vector.load %arg9[%c0_29, %c0_30] : memref<1x1xf32, #tpu.memory_space<vmem>>, vector<1x1xf32>
    tpu.vector_store %arg9[%c0_29, %c0_30], %56 {strides = array<i32>} : memref<1x1xf32, #tpu.memory_space<vmem>>, vector<1x1xf32>,
    %cst_31 = arith.constant dense<0xFF800000> : vector<16xf32>
    %58 = vector.multi_reduction <maximumf>, %22, %cst_31 [1] : vector<16x128xf32> to vector<16xf32>
    %59 = vector.shape_cast %58 : vector<16xf32> to vector<16x1xf32>
    %60 = vector.broadcast %59 : vector<16x1xf32> to vector<16x128xf32>
    %61 = arith.subf %22, %60 : vector<16x128xf32>
    %62 = math.exp %61 : vector<16x128xf32>
    %63 = vector.broadcast %26 : vector<16x1xf32> to vector<16x128xf32>
    %64 = arith.subf %24, %63 : vector<16x128xf32>
    %65 = math.exp %64 : vector<16x128xf32>
    %cst_32 = arith.constant dense<0.000000e+00> : vector<16xf32>
    %66 = vector.multi_reduction <add>, %62, %cst_32 [1] : vector<16x128xf32> to vector<16xf32>
    %67 = vector.shape_cast %66 : vector<16xf32> to vector<16x1xf32>
    %68 = vector.broadcast %67 : vector<16x1xf32> to vector<16x128xf32>
    %69 = arith.divf %62, %68 : vector<16x128xf32>
    %cst_33 = arith.constant dense<0.000000e+00> : vector<16xf32>
    %70 = vector.multi_reduction <add>, %65, %cst_33 [1] : vector<16x128xf32> to vector<16xf32>
    %71 = vector.shape_cast %70 : vector<16xf32> to vector<16x1xf32>
    %72 = vector.broadcast %71 : vector<16x1xf32> to vector<16x128xf32>
    %73 = arith.divf %65, %72 : vector<16x128xf32>
    %c16_i32 = arith.constant 16 : i32
    %74 = arith.muli %arg0, %c16_i32 : i32
    %75 = tpu.iota {dimensions = array<i32: 0>} : vector<16x1xi32>
    %76 = vector.broadcast %74 : i32 to vector<16x1xi32>
    %77 = arith.addi %76, %75 : vector<16x1xi32>
    %c16_i32_34 = arith.constant 16 : i32
    %78 = vector.broadcast %c16_i32_34 : i32 to vector<16x1xi32>
    %79 = arith.cmpi slt, %77, %78 : vector<16x1xi32>
    %80 = arith.extui %79 : vector<16x1xi1> to vector<16x1xi32>
    %81 = arith.sitofp %80 : vector<16x1xi32> to vector<16x1xf32>
    %82 = arith.subf %69, %73 : vector<16x128xf32>
    %c0_35 = arith.constant 0 : index
    %c0_36 = arith.constant 0 : index
    %83 = vector.load %arg10[%c0_35, %c0_36] : memref<1x1xf32, #tpu.memory_space<vmem>>, vector<1x1xf32>
    %84 = arith.mulf %82, %82 : vector<16x128xf32>
    %85 = vector.broadcast %81 : vector<16x1xf32> to vector<16x128xf32>
    %86 = arith.mulf %84, %85 : vector<16x128xf32>
    %87 = vector.shape_cast %86 : vector<16x128xf32> to vector<1x16x128xf32>
    %cst_37 = arith.constant dense<0.000000e+00> : vector<1xf32>
    %88 = vector.multi_reduction <add>, %87, %cst_37 [1, 2] : vector<1x16x128xf32> to vector<1xf32>
    %89 = vector.shape_cast %88 : vector<1xf32> to vector<1x1x1xf32>
    %90 = vector.extract %89[0, 0, 0] : f32 from vector<1x1x1xf32>
    %91 = vector.broadcast %90 : f32 to vector<1x1xf32>
    %92 = arith.addf %83, %91 : vector<1x1xf32>
    %c0_38 = arith.constant 0 : index
    %c0_39 = arith.constant 0 : index
    %93 = vector.load %arg10[%c0_38, %c0_39] : memref<1x1xf32, #tpu.memory_space<vmem>>, vector<1x1xf32>
    tpu.vector_store %arg10[%c0_38, %c0_39], %92 {strides = array<i32>} : memref<1x1xf32, #tpu.memory_space<vmem>>, vector<1x1xf32>,
    return
  }
  func.func @transform_0(%arg0: i32) -> (i32, i32) {
    %c0_i32 = arith.constant 0 : i32
    %c0_i32_0 = arith.constant 0 : i32
    return %arg0, %c0_i32 : i32, i32
  }
  func.func @transform_1(%arg0: i32) -> (i32, i32) {
    %c0_i32 = arith.constant 0 : i32
    %c0_i32_0 = arith.constant 0 : i32
    return %arg0, %c0_i32 : i32, i32
  }
  func.func @transform_2(%arg0: i32) -> (i32, i32) {
    %c0_i32 = arith.constant 0 : i32
    %c0_i32_0 = arith.constant 0 : i32
    %c0_i32_1 = arith.constant 0 : i32
    return %c0_i32, %c0_i32_0 : i32, i32
  }
  func.func @transform_3(%arg0: i32) -> (i32, i32) {
    %c0_i32 = arith.constant 0 : i32
    %c0_i32_0 = arith.constant 0 : i32
    %c0_i32_1 = arith.constant 0 : i32
    return %c0_i32, %c0_i32_0 : i32, i32
  }
  func.func @transform_4(%arg0: i32) -> (i32, i32) {
    %c0_i32 = arith.constant 0 : i32
    %c0_i32_0 = arith.constant 0 : i32
    %c0_i32_1 = arith.constant 0 : i32
    return %c0_i32, %c0_i32_0 : i32, i32
  }
  func.func @transform_5(%arg0: i32) -> (i32, i32) {
    %c0_i32 = arith.constant 0 : i32
    %c0_i32_0 = arith.constant 0 : i32
    %c0_i32_1 = arith.constant 0 : i32
    return %c0_i32, %c0_i32_0 : i32, i32
  }
  func.func @transform_6(%arg0: i32) -> (i32, i32) {
    %c0_i32 = arith.constant 0 : i32
    %c0_i32_0 = arith.constant 0 : i32
    return %arg0, %c0_i32 : i32, i32
  }
  func.func @transform_7(%arg0: i32) -> (i32, i32) {
    %c0_i32 = arith.constant 0 : i32
    %c0_i32_0 = arith.constant 0 : i32
    %c0_i32_1 = arith.constant 0 : i32
    return %c0_i32, %c0_i32_0 : i32, i32
  }
  func.func @transform_8(%arg0: i32) -> (i32, i32) {
    %c0_i32 = arith.constant 0 : i32
    %c0_i32_0 = arith.constant 0 : i32
    %c0_i32_1 = arith.constant 0 : i32
    return %c0_i32, %c0_i32_0 : i32, i32
  }
  func.func @transform_9(%arg0: i32) -> (i32, i32) {
    %c0_i32 = arith.constant 0 : i32
    %c0_i32_0 = arith.constant 0 : i32
    %c0_i32_1 = arith.constant 0 : i32
    return %c0_i32, %c0_i32_0 : i32, i32
  }
}

module attributes {stable_mosaic.version = 11 : i64} {
  func.func @ce_fused_kernel(%arg0: i32, %arg1: memref<16x32xf32, #tpu.memory_space<vmem>>, %arg2: memref<32x128xbf16, #tpu.memory_space<vmem>>, %arg3: memref<1x128xf32, #tpu.memory_space<vmem>>, %arg4: memref<16x1xi32, #tpu.memory_space<vmem>>, %arg5: memref<1x1xf32, #tpu.memory_space<vmem>>, %arg6: memref<1x1xf32, #tpu.memory_space<vmem>>) attributes {dimension_semantics = [#tpu.dimension_semantics<arbitrary>], iteration_bounds = array<i64: 1>, scalar_prefetch = 0 : i64, scratch_operands = 0 : i64, tpu.core_type = #tpu.core_type<tc>, window_params = [{transform_indices = @transform_0, window_bounds = array<i64: 16, 32>}, {pipeline_mode = #tpu.pipeline_mode<synchronous>, transform_indices = @transform_1, window_bounds = array<i64: 32, 128>}, {pipeline_mode = #tpu.pipeline_mode<synchronous>, transform_indices = @transform_2, window_bounds = array<i64: 1, 128>}, {transform_indices = @transform_3, window_bounds = array<i64: 16, 1>}, {pipeline_mode = #tpu.pipeline_mode<synchronous>, transform_indices = @transform_4, window_bounds = array<i64: 1, 1>}, {pipeline_mode = #tpu.pipeline_mode<synchronous>, transform_indices = @transform_5, window_bounds = array<i64: 1, 1>}]} {
    %c0_i32 = arith.constant 0 : i32
    %0 = arith.cmpi eq, %arg0, %c0_i32 : i32
    %1 = arith.extui %0 : i1 to i32
    %c0_i32_0 = arith.constant 0 : i32
    %2 = arith.cmpi ne, %1, %c0_i32_0 : i32
    scf.if %2 {
      %cst_23 = arith.constant 0.000000e+00 : f32
      %53 = vector.broadcast %cst_23 : f32 to vector<1x1xf32>
      %c0_24 = arith.constant 0 : index
      %c0_25 = arith.constant 0 : index
      %54 = vector.load %arg5[%c0_24, %c0_25] : memref<1x1xf32, #tpu.memory_space<vmem>>, vector<1x1xf32>
      tpu.vector_store %arg5[%c0_24, %c0_25], %53 {strides = array<i32>} : memref<1x1xf32, #tpu.memory_space<vmem>>, vector<1x1xf32>,
      %cst_26 = arith.constant 0.000000e+00 : f32
      %55 = vector.broadcast %cst_26 : f32 to vector<1x1xf32>
      %c0_27 = arith.constant 0 : index
      %c0_28 = arith.constant 0 : index
      %56 = vector.load %arg6[%c0_27, %c0_28] : memref<1x1xf32, #tpu.memory_space<vmem>>, vector<1x1xf32>
      tpu.vector_store %arg6[%c0_27, %c0_28], %55 {strides = array<i32>} : memref<1x1xf32, #tpu.memory_space<vmem>>, vector<1x1xf32>,
    } else {
    }
    %c0 = arith.constant 0 : index
    %c0_1 = arith.constant 0 : index
    %3 = vector.load %arg1[%c0, %c0_1] : memref<16x32xf32, #tpu.memory_space<vmem>>, vector<16x32xf32>
    %4 = arith.truncf %3 : vector<16x32xf32> to vector<16x32xbf16>
    %c0_2 = arith.constant 0 : index
    %c0_3 = arith.constant 0 : index
    %5 = vector.load %arg2[%c0_2, %c0_3] : memref<32x128xbf16, #tpu.memory_space<vmem>>, vector<32x128xbf16>
    %cst = arith.constant dense<0.000000e+00> : vector<16x128xf32>
    %6 = tpu.matmul %4, %5, %cst {dimension_numbers = #tpu.dot_dimension_numbers<[1], [0], [0], [1], [0, 0, 1, 1], [], []>} : vector<16x32xbf16>, vector<32x128xbf16>, vector<16x128xf32> -> vector<16x128xf32>
    %c0_4 = arith.constant 0 : index
    %c0_5 = arith.constant 0 : index
    %7 = vector.load %arg3[%c0_4, %c0_5] : memref<1x128xf32, #tpu.memory_space<vmem>>, vector<1x128xf32>
    %8 = vector.broadcast %7 : vector<1x128xf32> to vector<16x128xf32>
    %9 = arith.addf %6, %8 : vector<16x128xf32>
    %c0_6 = arith.constant 0 : index
    %c0_7 = arith.constant 0 : index
    %10 = vector.load %arg4[%c0_6, %c0_7] : memref<16x1xi32, #tpu.memory_space<vmem>>, vector<16x1xi32>
    %11 = tpu.iota {dimensions = array<i32: 1>} : vector<16x128xi32>
    %c10_i32 = arith.constant 10 : i32
    %12 = vector.broadcast %c10_i32 : i32 to vector<16x128xi32>
    %13 = arith.cmpi slt, %11, %12 : vector<16x128xi32>
    %cst_8 = arith.constant -1.000000e+30 : f32
    %14 = vector.broadcast %cst_8 : f32 to vector<16x128xf32>
    %15 = arith.select %13, %9, %14 : vector<16x128xi1>, vector<16x128xf32>
    %cst_9 = arith.constant dense<0xFF800000> : vector<16xf32>
    %16 = vector.multi_reduction <maximumf>, %15, %cst_9 [1] : vector<16x128xf32> to vector<16xf32>
    %17 = vector.shape_cast %16 : vector<16xf32> to vector<16x1xf32>
    %18 = vector.broadcast %17 : vector<16x1xf32> to vector<16x128xf32>
    %19 = arith.subf %15, %18 : vector<16x128xf32>
    %20 = math.exp %19 : vector<16x128xf32>
    %cst_10 = arith.constant dense<0.000000e+00> : vector<16xf32>
    %21 = vector.multi_reduction <add>, %20, %cst_10 [1] : vector<16x128xf32> to vector<16xf32>
    %22 = vector.shape_cast %21 : vector<16xf32> to vector<16x1xf32>
    %23 = math.log %22 : vector<16x1xf32>
    %24 = arith.addf %17, %23 : vector<16x1xf32>
    %25 = vector.broadcast %10 : vector<16x1xi32> to vector<16x128xi32>
    %26 = arith.cmpi eq, %11, %25 : vector<16x128xi32>
    %cst_11 = arith.constant 0.000000e+00 : f32
    %27 = vector.broadcast %cst_11 : f32 to vector<16x128xf32>
    %28 = arith.select %26, %9, %27 : vector<16x128xi1>, vector<16x128xf32>
    %cst_12 = arith.constant dense<0.000000e+00> : vector<16xf32>
    %29 = vector.multi_reduction <add>, %28, %cst_12 [1] : vector<16x128xf32> to vector<16xf32>
    %30 = vector.shape_cast %29 : vector<16xf32> to vector<16x1xf32>
    %c-1_i32 = arith.constant -1 : i32
    %31 = vector.broadcast %c-1_i32 : i32 to vector<16x1xi32>
    %32 = arith.cmpi ne, %10, %31 : vector<16x1xi32>
    %33 = arith.extui %32 : vector<16x1xi1> to vector<16x1xi32>
    %34 = arith.sitofp %33 : vector<16x1xi32> to vector<16x1xf32>
    %c0_13 = arith.constant 0 : index
    %c0_14 = arith.constant 0 : index
    %35 = vector.load %arg5[%c0_13, %c0_14] : memref<1x1xf32, #tpu.memory_space<vmem>>, vector<1x1xf32>
    %36 = arith.subf %24, %30 : vector<16x1xf32>
    %37 = arith.mulf %36, %34 : vector<16x1xf32>
    %38 = vector.shape_cast %37 : vector<16x1xf32> to vector<1x16x1xf32>
    %cst_15 = arith.constant dense<0.000000e+00> : vector<1xf32>
    %39 = vector.multi_reduction <add>, %38, %cst_15 [1, 2] : vector<1x16x1xf32> to vector<1xf32>
    %40 = vector.shape_cast %39 : vector<1xf32> to vector<1x1x1xf32>
    %41 = vector.extract %40[0, 0, 0] : f32 from vector<1x1x1xf32>
    %42 = vector.broadcast %41 : f32 to vector<1x1xf32>
    %43 = arith.addf %35, %42 : vector<1x1xf32>
    %c0_16 = arith.constant 0 : index
    %c0_17 = arith.constant 0 : index
    %44 = vector.load %arg5[%c0_16, %c0_17] : memref<1x1xf32, #tpu.memory_space<vmem>>, vector<1x1xf32>
    tpu.vector_store %arg5[%c0_16, %c0_17], %43 {strides = array<i32>} : memref<1x1xf32, #tpu.memory_space<vmem>>, vector<1x1xf32>,
    %c0_18 = arith.constant 0 : index
    %c0_19 = arith.constant 0 : index
    %45 = vector.load %arg6[%c0_18, %c0_19] : memref<1x1xf32, #tpu.memory_space<vmem>>, vector<1x1xf32>
    %46 = vector.shape_cast %34 : vector<16x1xf32> to vector<1x16x1xf32>
    %cst_20 = arith.constant dense<0.000000e+00> : vector<1xf32>
    %47 = vector.multi_reduction <add>, %46, %cst_20 [1, 2] : vector<1x16x1xf32> to vector<1xf32>
    %48 = vector.shape_cast %47 : vector<1xf32> to vector<1x1x1xf32>
    %49 = vector.extract %48[0, 0, 0] : f32 from vector<1x1x1xf32>
    %50 = vector.broadcast %49 : f32 to vector<1x1xf32>
    %51 = arith.addf %45, %50 : vector<1x1xf32>
    %c0_21 = arith.constant 0 : index
    %c0_22 = arith.constant 0 : index
    %52 = vector.load %arg6[%c0_21, %c0_22] : memref<1x1xf32, #tpu.memory_space<vmem>>, vector<1x1xf32>
    tpu.vector_store %arg6[%c0_21, %c0_22], %51 {strides = array<i32>} : memref<1x1xf32, #tpu.memory_space<vmem>>, vector<1x1xf32>,
    return
  }
  func.func @transform_0(%arg0: i32) -> (i32, i32) {
    %c0_i32 = arith.constant 0 : i32
    %c0_i32_0 = arith.constant 0 : i32
    return %arg0, %c0_i32 : i32, i32
  }
  func.func @transform_1(%arg0: i32) -> (i32, i32) {
    %c0_i32 = arith.constant 0 : i32
    %c0_i32_0 = arith.constant 0 : i32
    %c0_i32_1 = arith.constant 0 : i32
    return %c0_i32, %c0_i32_0 : i32, i32
  }
  func.func @transform_2(%arg0: i32) -> (i32, i32) {
    %c0_i32 = arith.constant 0 : i32
    %c0_i32_0 = arith.constant 0 : i32
    %c0_i32_1 = arith.constant 0 : i32
    return %c0_i32, %c0_i32_0 : i32, i32
  }
  func.func @transform_3(%arg0: i32) -> (i32, i32) {
    %c0_i32 = arith.constant 0 : i32
    %c0_i32_0 = arith.constant 0 : i32
    return %arg0, %c0_i32 : i32, i32
  }
  func.func @transform_4(%arg0: i32) -> (i32, i32) {
    %c0_i32 = arith.constant 0 : i32
    %c0_i32_0 = arith.constant 0 : i32
    %c0_i32_1 = arith.constant 0 : i32
    return %c0_i32, %c0_i32_0 : i32, i32
  }
  func.func @transform_5(%arg0: i32) -> (i32, i32) {
    %c0_i32 = arith.constant 0 : i32
    %c0_i32_0 = arith.constant 0 : i32
    %c0_i32_1 = arith.constant 0 : i32
    return %c0_i32, %c0_i32_0 : i32, i32
  }
}

</mosaic_0001>

<llo_original>
// kernel: e2e_forward.5
$region0: #{e2e_forward.5}
  #allocation0 [shape = 'u32[]', space=smem, size = 0x4, offset = 0x4, fixed_abs, tag = 'smem constant byte address 0x4 - core index']
  #allocation1 [shape = 'u32[144,128]{1,0:T(1,128)}', space=vmem, size = 0x12000, scoped, tag = 'internal scratch']
  %s0 = inlined_call_operand.vmem [shape: f32[16,32], index: 0, kind: input, shape index: {}]
  %s1 = inlined_call_operand.vmem [shape: bf16[32,128], index: 1, kind: input, shape index: {}]
  %s2 = inlined_call_operand.vmem [shape: f32[1,128], index: 2, kind: input, shape index: {}]
  %s3 = inlined_call_operand.vmem [shape: s32[16,1], index: 3, kind: input, shape index: {}]
  %s4 = inlined_call_operand.hbm [shape: f32[1,1], index: 4, kind: output, shape index: {0}]
  %s5 = inlined_call_operand.hbm [shape: f32[1,1], index: 5, kind: output, shape index: {1}]
  %6 = xla_tuple %s4, %s5
  %s7 = sld [smem:[#allocation0]]
  $region38: #{e2e_forward.5} parent=0
    _
  %s9 = ssub.s32 1, %s7
  %s10 = scalar_select 0, %s9, %s7
  $region1: #{e2e_forward.5} parent=0
    #allocation2 [shape = 'u8[512]{0}', space=vmem, size = 0x400, scoped, tag = 'output window, operand 0, single buffered']
    #allocation3 [shape = 's32[1]{0}', space=sflag, size = 0x4, scoped, tag = 'scoped memory for e2e_forward.5']
    #allocation4 [shape = 'u8[512]{0}', space=vmem, size = 0x400, scoped, tag = 'output window, operand 1, single buffered']
    #allocation5 [shape = 's32[1]{0}', space=sflag, size = 0x4, scoped, tag = 'scoped memory for e2e_forward.5']
    %11 = vsyncpa [#allocation3], 0
    %12 = vsyncpa [#allocation5], 0
    // Predicated region
    $region2: #{e2e_forward.5} parent=1 // pred_check
      _
    $region3: #{e2e_forward.5} parent=1 // pred_check_branch
      %14 = sbr.rel (0) target = $region5
    $region4: #{e2e_forward.5} parent=1 // pred_region
      _
    $region5: #{e2e_forward.5} parent=1 // pred_fallthru
      _
    // Predicated region
    $region6: #{e2e_forward.5} parent=1 // pred_check
      _
    $region7: #{e2e_forward.5} parent=1 // pred_check_branch
      %16 = sbr.rel (0) target = $region9
    $region8: #{e2e_forward.5} parent=1 // pred_region
      _
    $region9: #{e2e_forward.5} parent=1 // pred_fallthru
      _
    // Predicated region
    $region10: #{e2e_forward.5} parent=1 // pred_check
      _
    $region11: #{e2e_forward.5} parent=1 // pred_check_branch
      %18 = sbr.rel (0) target = $region13
    $region12: #{e2e_forward.5} parent=1 // pred_region
      _
    $region13: #{e2e_forward.5} parent=1 // pred_fallthru
      _
    // Predicated region
    $region14: #{e2e_forward.5} parent=1 // pred_check
      _
    $region15: #{e2e_forward.5} parent=1 // pred_check_branch
      %20 = sbr.rel (0) target = $region17
    $region16: #{e2e_forward.5} parent=1 // pred_region
      _
    $region17: #{e2e_forward.5} parent=1 // pred_fallthru
      _
    %p22 = scmp.eq.s32.totalorder 0, 0
    // Predicated region
    $region18: #{e2e_forward.5} parent=1 // pred_check
      %p23 = pneg %p22
    $region19: #{e2e_forward.5} parent=1 // pred_check_branch
      %25 = sbr.rel (%p23) target = $region21
    $region20: #{e2e_forward.5} parent=1 // pred_region
      %vm26 = vcmask 0
      %27 = vst.msk [vmem:[#allocation2] sm:$0x1] %vm26, 0.0
      %28 = vst.msk [vmem:[#allocation4] sm:$0x1] %vm26, 0.0
    $region21: #{e2e_forward.5} parent=1 // pred_fallthru
      _
    %v29 = vld [vmem:[%s0] sm:$0xff]
    %v30 = vld [vmem:[%s0 + $0x8] sm:$0xff]
    %v31 = vpack.c.bf16 %v30, %v29
    %v32 = vld [vmem:[%s1] sm:$0xf]
    %v33 = vld [vmem:[%s1 + $0x4] sm:$0xf]
    %v34 = vld [vmem:[%s1 + $0x8] sm:$0xf]
    %v35 = vld [vmem:[%s1 + $0xc] sm:$0xf]
    %v36 = vld [vmem:[%s2] sm:$0x1]
    %v38 = vlaneseq
    %v39 = vshrl.u32 %v38, 7
    %v40 = vsub.s32 0, %v39
    %v41 = vrot.slane %v36, %v40
    %v47 = vunpack.c.l.b16 %v32
    %v48 = vunpack.c.l.b16 %v33
    %v49 = vunpack.c.l.b16 %v34
    %v50 = vunpack.c.l.b16 %v35
    %v51 = vpack.c.b16 %v48, %v47
    %v52 = vpack.c.b16 %v50, %v49
    %vm55 = vcmask 261120
    %v57 = vsel %vm55, %v31, 0
    %59 = vmatprep.subr.bf16.mxu0 0
    %60 = vmatpush1.bf16.msra.mxu0 %v51
    %61 = vmatprep.subr.bf16.mxu0 0
    %62 = vmatpush1.bf16.msra.mxu0 %v52
    %63 = vmatprep.subr.bf16.mxu0 0
    %64 = vmatpush1.bf16.msra.mxu0 0
    %65 = vmatprep.subr.bf16.mxu0 0
    %66 = vmatpush1.bf16.msra.mxu0 0
    %67 = vmatprep.subr.bf16.mxu0 0
    %68 = vmatpush1.bf16.msra.mxu0 0
    %69 = vmatprep.subr.bf16.mxu0 0
    %70 = vmatpush1.bf16.msra.mxu0 0
    %71 = vmatprep.subr.bf16.mxu0 0
    %72 = vmatpush1.bf16.msra.mxu0 0
    %73 = vmatprep.subr.bf16.mxu0 0
    %74 = vmatpush1.bf16.msra.mxu0 0
    %75 = vmatprep.subr.bf16.mxu0 0
    %76 = vmatpush1.bf16.msra.mxu0 0
    %77 = vmatprep.subr.bf16.mxu0 0
    %78 = vmatpush1.bf16.msra.mxu0 0
    %79 = vmatprep.subr.bf16.mxu0 0
    %80 = vmatpush1.bf16.msra.mxu0 0
    %81 = vmatprep.subr.bf16.mxu0 0
    %82 = vmatpush1.bf16.msra.mxu0 0
    %83 = vmatprep.subr.bf16.mxu0 0
    %84 = vmatpush1.bf16.msra.mxu0 0
    %85 = vmatprep.subr.bf16.mxu0 0
    %86 = vmatpush1.bf16.msra.mxu0 0
    %87 = vmatprep.subr.bf16.mxu0 0
    %88 = vmatpush1.bf16.msra.mxu0 0
    %89 = vmatprep.subr.bf16.mxu0 0
    %90 = vmatpush1.bf16.msra.mxu0 0
    %91 = vmatprep.mubr.bf16.mxu0 0
    %92 = vmatmul.mubr.bf16.gmra.mrb[0].mxu0 %v57
    %v93 = vpop.f32.mrb[0].mxu0
    %v94 = vadd.f32 %v41, %v93
    %v95 = vpop.f32.mrb[0].mxu0
    %v96 = vpop.f32.mrb[0].mxu0
    %v97 = vadd.f32 %v41, %v96
    %v98 = vpop.f32.mrb[0].mxu0
    %99 = vdwg.mxu0
    %v100 = vld [vmem:[%s3] sm:$0xff]
    %v101 = vld [vmem:[%s3 + $0x8] sm:$0xff]
    %v102 = vlaneseq
    %v103 = vand.u32 %v102, 127
    %vm104 = vcmp.lt.s32.totalorder %v103, 10
    %v105 = vsel %vm104, %v94, -1e+30
    %v106 = vsel %vm104, %v97, -1e+30
    %107 = vmax.xlane.f32.xlu0 %v105
    %v108 = vpop.xlane.xlu0 %107
    %109 = vmax.xlane.f32.xlu0 %v106
    %v110 = vpop.xlane.xlu0 %109
    %v111 = vsub.f32 %v105, %v108
    %v112 = vsub.f32 %v106, %v110
    %v113 = vmul.f32 %v111, 1.442695
    %v114 = vpow.pop %v113
    %v115 = vmul.f32 %v112, 1.442695
    %v116 = vpow.pop %v115
    %117 = vadd.xlane.f32.xlu0 %v114
    %v118 = vpop.xlane.xlu0 %117
    %119 = vadd.xlane.f32.xlu0 %v116
    %v120 = vpop.xlane.xlu0 %119
    %v121 = vlog2.pop %v118
    %v122 = vmul.f32 %v121, 0.6931472
    %v123 = vlog2.pop %v120
    %v124 = vmul.f32 %v123, 0.6931472
    %v125 = vadd.f32 %v108, %v122
    %v126 = vadd.f32 %v110, %v124
    %127 = vset.pattern.permute.xlu0 0
    %128 = vperm.xlu0 %127, %v100
    %v129 = vpop.permute.xlu0 %128
    %130 = vset.pattern.permute.xlu0 0
    %131 = vperm.xlu0 %130, %v101
    %v132 = vpop.permute.xlu0 %131
    %vm133 = vcmp.eq.s32.totalorder %v103, %v129
    %vm134 = vcmp.eq.s32.totalorder %v103, %v132
    %v135 = vsel %vm133, %v94, 0.0
    %v136 = vsel %vm134, %v97, 0.0
    %137 = vadd.xlane.f32.xlu0 %v135
    %v138 = vpop.xlane.xlu0 %137
    %139 = vadd.xlane.f32.xlu0 %v136
    %v140 = vpop.xlane.xlu0 %139
    %vm141 = vcmp.ne.s32.totalorder %v100, 4294967295
    %vm142 = vcmp.ne.s32.totalorder %v101, 4294967295
    %v143 = vsel %vm141, 1, 0
    %v144 = vsel %vm142, 1, 0
    %v145 = vcvt.s32.f32 %v143
    %v146 = vcvt.s32.f32 %v144
    %v147 = vld [vmem:[#allocation2] sm:$0x1]
    %v148 = vsub.f32 %v125, %v138
    %v149 = vsub.f32 %v126, %v140
    %v150 = vmul.f32 %v148, %v145
    %v151 = vmul.f32 %v149, %v146
    %vm152 = vcmask 7168
    %v153 = vsel %vm152, %v150, 0.0
    %v154 = vsel %vm152, %v151, 0.0
    %v155 = vadd.f32 %v153, %v154
    %156 = vadd.xlane.f32.xlu0 %v155
    %v157 = vpop.xlane.xlu0 %156
    %v158 = vrot.slane %v157, 4
    %v159 = vadd.f32 %v157, %v158
    %v160 = vrot.slane %v159, 2
    %v161 = vadd.f32 %v159, %v160
    %v162 = vrot.slane %v161, 1
    %v163 = vadd.f32 %v161, %v162
    %s164 = vtos %v163
    %v165 = vstv %s164
    %v166 = vadd.f32 %v147, %v165
    %vm167 = vcmask 0
    %168 = vst.msk [vmem:[#allocation2] sm:$0x1] %vm167, %v166
    %v169 = vld [vmem:[#allocation4] sm:$0x1]
    %v170 = vsel %vm152, %v145, 0.0
    %v171 = vsel %vm152, %v146, 0.0
    %v172 = vadd.f32 %v170, %v171
    %173 = vadd.xlane.f32.xlu0 %v172
    %v174 = vpop.xlane.xlu0 %173
    %v175 = vrot.slane %v174, 4
    %v176 = vadd.f32 %v174, %v175
    %v177 = vrot.slane %v176, 2
    %v178 = vadd.f32 %v176, %v177
    %v179 = vrot.slane %v178, 1
    %v180 = vadd.f32 %v178, %v179
    %s181 = vtos %v180
    %v182 = vstv %s181
    %v183 = vadd.f32 %v169, %v182
    %184 = vst.msk [vmem:[#allocation4] sm:$0x1] %vm167, %v183
    // Predicated region
    $region22: #{e2e_forward.5} parent=1 // pred_check
      _
    $region23: #{e2e_forward.5} parent=1 // pred_check_branch
      %186 = sbr.rel (0) target = $region25
    $region24: #{e2e_forward.5} parent=1 // pred_region
      %s188 = ssub.s32 16, 16
      %189 = vsyncadd [#allocation3], %s188
      %s191 = sshll.u32 [#allocation2], 4
      %s192 = int_to_ptr.vmem [resolvable:$true] %s191
      %194 = dma.vmem_to_hbm [thread:$0]  %s192, 16, %s4, [#allocation3]
    $region25: #{e2e_forward.5} parent=1 // pred_fallthru
      _
    // Predicated region
    $region26: #{e2e_forward.5} parent=1 // pred_check
      _
    $region27: #{e2e_forward.5} parent=1 // pred_check_branch
      %196 = sbr.rel (0) target = $region29
    $region28: #{e2e_forward.5} parent=1 // pred_region
      %s198 = ssub.s32 16, 16
      %199 = vsyncadd [#allocation5], %s198
      %s201 = sshll.u32 [#allocation4], 4
      %s202 = int_to_ptr.vmem [resolvable:$true] %s201
      %204 = dma.vmem_to_hbm [thread:$0]  %s202, 16, %s5, [#allocation5]
    $region29: #{e2e_forward.5} parent=1 // pred_fallthru
      _
    // Predicated region
    $region30: #{e2e_forward.5} parent=1 // pred_check
      _
    $region31: #{e2e_forward.5} parent=1 // pred_check_branch
      %206 = sbr.rel (0) target = $region33
    $region32: #{e2e_forward.5} parent=1 // pred_region
      %207 = dma.done [#allocation3], 16
    $region33: #{e2e_forward.5} parent=1 // pred_fallthru
      _
    // Predicated region
    $region34: #{e2e_forward.5} parent=1 // pred_check
      _
    $region35: #{e2e_forward.5} parent=1 // pred_check_branch
      %209 = sbr.rel (0) target = $region37
    $region36: #{e2e_forward.5} parent=1 // pred_region
      %210 = dma.done [#allocation5], 16
    $region37: #{e2e_forward.5} parent=1 // pred_fallthru
      _
    %211 = vsyncpa [#allocation3], 1
    %212 = vsyncpa [#allocation5], 1

// kernel: e2e_forward.7
$region0: #{e2e_forward.7}
  #allocation0 [shape = 'u32[]', space=smem, size = 0x4, offset = 0x4, fixed_abs, tag = 'smem constant byte address 0x4 - core index']
  #allocation1 [shape = 'u32[144,128]{1,0:T(1,128)}', space=vmem, size = 0x12000, scoped, tag = 'internal scratch']
  %s0 = inlined_call_operand.vmem [shape: f32[16,32], index: 0, kind: input, shape index: {}]
  %s1 = inlined_call_operand.vmem [shape: f32[16,32], index: 1, kind: input, shape index: {}]
  %s2 = inlined_call_operand.vmem [shape: bf16[32,128], index: 2, kind: input, shape index: {}]
  %s3 = inlined_call_operand.vmem [shape: f32[1,128], index: 3, kind: input, shape index: {}]
  %s4 = inlined_call_operand.vmem [shape: bf16[32,128], index: 4, kind: input, shape index: {}]
  %s5 = inlined_call_operand.vmem [shape: f32[1,128], index: 5, kind: input, shape index: {}]
  %s6 = inlined_call_operand.vmem [shape: s32[16,1], index: 6, kind: input, shape index: {}]
  %s7 = inlined_call_operand.hbm [shape: f32[1,1], index: 7, kind: output, shape index: {0}]
  %s8 = inlined_call_operand.hbm [shape: f32[1,1], index: 8, kind: output, shape index: {1}]
  %s9 = inlined_call_operand.hbm [shape: f32[1,1], index: 9, kind: output, shape index: {2}]
  %10 = xla_tuple %s7, %s8, %s9
  %s11 = sld [smem:[#allocation0]]
  $region58: #{e2e_forward.7} parent=0
    _
  %s13 = ssub.s32 1, %s11
  %s14 = scalar_select 0, %s13, %s11
  $region1: #{e2e_forward.7} parent=0
    #allocation2 [shape = 'u8[512]{0}', space=vmem, size = 0x400, scoped, tag = 'output window, operand 0, single buffered']
    #allocation3 [shape = 's32[1]{0}', space=sflag, size = 0x4, scoped, tag = 'scoped memory for e2e_forward.7']
    #allocation4 [shape = 'u8[512]{0}', space=vmem, size = 0x400, scoped, tag = 'output window, operand 1, single buffered']
    #allocation5 [shape = 's32[1]{0}', space=sflag, size = 0x4, scoped, tag = 'scoped memory for e2e_forward.7']
    #allocation6 [shape = 'u8[512]{0}', space=vmem, size = 0x400, scoped, tag = 'output window, operand 2, single buffered']
    %15 = vsyncpa [#allocation3], 0
    %16 = vsyncpa [#allocation5], 0
    // Predicated region
    $region2: #{e2e_forward.7} parent=1 // pred_check
      _
    $region3: #{e2e_forward.7} parent=1 // pred_check_branch
      %18 = sbr.rel (0) target = $region5
    $region4: #{e2e_forward.7} parent=1 // pred_region
      _
    $region5: #{e2e_forward.7} parent=1 // pred_fallthru
      _
    // Predicated region
    $region6: #{e2e_forward.7} parent=1 // pred_check
      _
    $region7: #{e2e_forward.7} parent=1 // pred_check_branch
      %20 = sbr.rel (0) target = $region9
    $region8: #{e2e_forward.7} parent=1 // pred_region
      _
    $region9: #{e2e_forward.7} parent=1 // pred_fallthru
      _
    // Predicated region
    $region10: #{e2e_forward.7} parent=1 // pred_check
      _
    $region11: #{e2e_forward.7} parent=1 // pred_check_branch
      %22 = sbr.rel (0) target = $region13
    $region12: #{e2e_forward.7} parent=1 // pred_region
      _
    $region13: #{e2e_forward.7} parent=1 // pred_fallthru
      _
    // Predicated region
    $region14: #{e2e_forward.7} parent=1 // pred_check
      _
    $region15: #{e2e_forward.7} parent=1 // pred_check_branch
      %24 = sbr.rel (0) target = $region17
    $region16: #{e2e_forward.7} parent=1 // pred_region
      _
    $region17: #{e2e_forward.7} parent=1 // pred_fallthru
      _
    // Predicated region
    $region18: #{e2e_forward.7} parent=1 // pred_check
      _
    $region19: #{e2e_forward.7} parent=1 // pred_check_branch
      %26 = sbr.rel (0) target = $region21
    $region20: #{e2e_forward.7} parent=1 // pred_region
      _
    $region21: #{e2e_forward.7} parent=1 // pred_fallthru
      _
    // Predicated region
    $region22: #{e2e_forward.7} parent=1 // pred_check
      _
    $region23: #{e2e_forward.7} parent=1 // pred_check_branch
      %28 = sbr.rel (0) target = $region25
    $region24: #{e2e_forward.7} parent=1 // pred_region
      _
    $region25: #{e2e_forward.7} parent=1 // pred_fallthru
      _
    // Predicated region
    $region26: #{e2e_forward.7} parent=1 // pred_check
      _
    $region27: #{e2e_forward.7} parent=1 // pred_check_branch
      %30 = sbr.rel (0) target = $region29
    $region28: #{e2e_forward.7} parent=1 // pred_region
      _
    $region29: #{e2e_forward.7} parent=1 // pred_fallthru
      _
    %p32 = scmp.eq.s32.totalorder 0, 0
    // Predicated region
    $region30: #{e2e_forward.7} parent=1 // pred_check
      %p33 = pneg %p32
    $region31: #{e2e_forward.7} parent=1 // pred_check_branch
      %35 = sbr.rel (%p33) target = $region33
    $region32: #{e2e_forward.7} parent=1 // pred_region
      %vm36 = vcmask 0
      %37 = vst.msk [vmem:[#allocation2] sm:$0x1] %vm36, 0.0
      %38 = vst.msk [vmem:[#allocation4] sm:$0x1] %vm36, 0.0
      %39 = vst.msk [vmem:[#allocation6] sm:$0x1] %vm36, 0.0
    $region33: #{e2e_forward.7} parent=1 // pred_fallthru
      _
    %v40 = vld [vmem:[%s0] sm:$0xff]
    %v41 = vld [vmem:[%s0 + $0x8] sm:$0xff]
    %v42 = vpack.c.bf16 %v41, %v40
    %v43 = vld [vmem:[%s2] sm:$0xf]
    %v44 = vld [vmem:[%s2 + $0x4] sm:$0xf]
    %v45 = vld [vmem:[%s2 + $0x8] sm:$0xf]
    %v46 = vld [vmem:[%s2 + $0xc] sm:$0xf]
    %v47 = vld [vmem:[%s3] sm:$0x1]
    %v49 = vlaneseq
    %v50 = vshrl.u32 %v49, 7
    %v51 = vsub.s32 0, %v50
    %v52 = vrot.slane %v47, %v51
    %v58 = vunpack.c.l.b16 %v43
    %v59 = vunpack.c.l.b16 %v44
    %v60 = vunpack.c.l.b16 %v45
    %v61 = vunpack.c.l.b16 %v46
    %v62 = vpack.c.b16 %v59, %v58
    %v63 = vpack.c.b16 %v61, %v60
    %vm66 = vcmask 261120
    %v68 = vsel %vm66, %v42, 0
    %70 = vmatprep.subr.bf16.mxu0 0
    %71 = vmatpush1.bf16.msra.mxu0 %v62
    %72 = vmatprep.subr.bf16.mxu0 0
    %73 = vmatpush1.bf16.msra.mxu0 %v63
    %74 = vmatprep.subr.bf16.mxu0 0
    %75 = vmatpush1.bf16.msra.mxu0 0
    %76 = vmatprep.subr.bf16.mxu0 0
    %77 = vmatpush1.bf16.msra.mxu0 0
    %78 = vmatprep.subr.bf16.mxu0 0
    %79 = vmatpush1.bf16.msra.mxu0 0
    %80 = vmatprep.subr.bf16.mxu0 0
    %81 = vmatpush1.bf16.msra.mxu0 0
    %82 = vmatprep.subr.bf16.mxu0 0
    %83 = vmatpush1.bf16.msra.mxu0 0
    %84 = vmatprep.subr.bf16.mxu0 0
    %85 = vmatpush1.bf16.msra.mxu0 0
    %86 = vmatprep.subr.bf16.mxu0 0
    %87 = vmatpush1.bf16.msra.mxu0 0
    %88 = vmatprep.subr.bf16.mxu0 0
    %89 = vmatpush1.bf16.msra.mxu0 0
    %90 = vmatprep.subr.bf16.mxu0 0
    %91 = vmatpush1.bf16.msra.mxu0 0
    %92 = vmatprep.subr.bf16.mxu0 0
    %93 = vmatpush1.bf16.msra.mxu0 0
    %94 = vmatprep.subr.bf16.mxu0 0
    %95 = vmatpush1.bf16.msra.mxu0 0
    %96 = vmatprep.subr.bf16.mxu0 0
    %97 = vmatpush1.bf16.msra.mxu0 0
    %98 = vmatprep.subr.bf16.mxu0 0
    %99 = vmatpush1.bf16.msra.mxu0 0
    %100 = vmatprep.subr.bf16.mxu0 0
    %101 = vmatpush1.bf16.msra.mxu0 0
    %102 = vmatprep.mubr.bf16.mxu0 0
    %103 = vmatmul.mubr.bf16.gmra.mrb[0].mxu0 %v68
    %v104 = vpop.f32.mrb[0].mxu0
    %v105 = vadd.f32 %v52, %v104
    %v106 = vpop.f32.mrb[0].mxu0
    %v107 = vpop.f32.mrb[0].mxu0
    %v108 = vadd.f32 %v52, %v107
    %v109 = vpop.f32.mrb[0].mxu0
    %110 = vdwg.mxu0
    %v111 = vld [vmem:[%s1] sm:$0xff]
    %v112 = vld [vmem:[%s1 + $0x8] sm:$0xff]
    %v113 = vpack.c.bf16 %v112, %v111
    %v114 = vld [vmem:[%s4] sm:$0xf]
    %v115 = vld [vmem:[%s4 + $0x4] sm:$0xf]
    %v116 = vld [vmem:[%s4 + $0x8] sm:$0xf]
    %v117 = vld [vmem:[%s4 + $0xc] sm:$0xf]
    %v118 = vld [vmem:[%s5] sm:$0x1]
    %v120 = vlaneseq
    %v121 = vshrl.u32 %v120, 7
    %v122 = vsub.s32 0, %v121
    %v123 = vrot.slane %v118, %v122
    %v129 = vunpack.c.l.b16 %v114
    %v130 = vunpack.c.l.b16 %v115
    %v131 = vunpack.c.l.b16 %v116
    %v132 = vunpack.c.l.b16 %v117
    %v133 = vpack.c.b16 %v130, %v129
    %v134 = vpack.c.b16 %v132, %v131
    %v138 = vsel %vm66, %v113, 0
    %140 = vmatprep.subr.bf16.mxu0 0
    %141 = vmatpush1.bf16.msra.mxu0 %v133
    %142 = vmatprep.subr.bf16.mxu0 0
    %143 = vmatpush1.bf16.msra.mxu0 %v134
    %144 = vmatprep.subr.bf16.mxu0 0
    %145 = vmatpush1.bf16.msra.mxu0 0
    %146 = vmatprep.subr.bf16.mxu0 0
    %147 = vmatpush1.bf16.msra.mxu0 0
    %148 = vmatprep.subr.bf16.mxu0 0
    %149 = vmatpush1.bf16.msra.mxu0 0
    %150 = vmatprep.subr.bf16.mxu0 0
    %151 = vmatpush1.bf16.msra.mxu0 0
    %152 = vmatprep.subr.bf16.mxu0 0
    %153 = vmatpush1.bf16.msra.mxu0 0
    %154 = vmatprep.subr.bf16.mxu0 0
    %155 = vmatpush1.bf16.msra.mxu0 0
    %156 = vmatprep.subr.bf16.mxu0 0
    %157 = vmatpush1.bf16.msra.mxu0 0
    %158 = vmatprep.subr.bf16.mxu0 0
    %159 = vmatpush1.bf16.msra.mxu0 0
    %160 = vmatprep.subr.bf16.mxu0 0
    %161 = vmatpush1.bf16.msra.mxu0 0
    %162 = vmatprep.subr.bf16.mxu0 0
    %163 = vmatpush1.bf16.msra.mxu0 0
    %164 = vmatprep.subr.bf16.mxu0 0
    %165 = vmatpush1.bf16.msra.mxu0 0
    %166 = vmatprep.subr.bf16.mxu0 0
    %167 = vmatpush1.bf16.msra.mxu0 0
    %168 = vmatprep.subr.bf16.mxu0 0
    %169 = vmatpush1.bf16.msra.mxu0 0
    %170 = vmatprep.subr.bf16.mxu0 0
    %171 = vmatpush1.bf16.msra.mxu0 0
    %172 = vmatprep.mubr.bf16.mxu0 0
    %173 = vmatmul.mubr.bf16.gmra.mrb[0].mxu0 %v138
    %v174 = vpop.f32.mrb[0].mxu0
    %v175 = vadd.f32 %v123, %v174
    %v176 = vpop.f32.mrb[0].mxu0
    %v177 = vpop.f32.mrb[0].mxu0
    %v178 = vadd.f32 %v123, %v177
    %v179 = vpop.f32.mrb[0].mxu0
    %180 = vdwg.mxu0
    %v181 = vld [vmem:[%s6] sm:$0xff]
    %v182 = vld [vmem:[%s6 + $0x8] sm:$0xff]
    %v183 = vlaneseq
    %v184 = vand.u32 %v183, 127
    %vm185 = vcmp.lt.s32.totalorder %v184, 10
    %v186 = vsel %vm185, %v105, -1e+30
    %v187 = vsel %vm185, %v108, -1e+30
    %v188 = vsel %vm185, %v175, -1e+30
    %v189 = vsel %vm185, %v178, -1e+30
    %190 = vmax.xlane.f32.xlu0 %v188
    %v191 = vpop.xlane.xlu0 %190
    %192 = vmax.xlane.f32.xlu0 %v189
    %v193 = vpop.xlane.xlu0 %192
    %vm194 = vcmp.eq.f32.partialorder %v188, %v191
    %vm195 = vcmp.eq.f32.partialorder %v189, %v193
    %v196 = vsel %vm194, %v184, 128
    %v197 = vsel %vm195, %v184, 128
    %v198 = vand.u32 %v196, 65535
    %v199 = vshra.s32 %v196, 16
    %v200 = vcvt.s32.f32 %v198
    %v201 = vcvt.s32.f32 %v199
    %202 = vmin.xlane.f32.xlu0 %v201
    %v203 = vpop.xlane.xlu0 %202
    %vm204 = vcmp.eq.f32.partialorder %v201, %v203
    %v205 = vsel %vm204, %v200, inf
    %206 = vmin.xlane.f32.xlu0 %v205
    %v207 = vpop.xlane.xlu0 %206
    %v208 = vcvt.f32.s32 %v207
    %v209 = vcvt.f32.s32 %v203
    %v210 = vshll.u32 %v209, 16
    %v211 = vadd.s32 %v210, %v208
    %v212 = vand.u32 %v197, 65535
    %v213 = vshra.s32 %v197, 16
    %v214 = vcvt.s32.f32 %v212
    %v215 = vcvt.s32.f32 %v213
    %216 = vmin.xlane.f32.xlu0 %v215
    %v217 = vpop.xlane.xlu0 %216
    %vm218 = vcmp.eq.f32.partialorder %v215, %v217
    %v219 = vsel %vm218, %v214, inf
    %220 = vmin.xlane.f32.xlu0 %v219
    %v221 = vpop.xlane.xlu0 %220
    %v222 = vcvt.f32.s32 %v221
    %v223 = vcvt.f32.s32 %v217
    %v224 = vshll.u32 %v223, 16
    %v225 = vadd.s32 %v224, %v222
    %vm226 = vcmp.ne.s32.totalorder %v181, 4294967295
    %vm227 = vcmp.ne.s32.totalorder %v182, 4294967295
    %v228 = vld [vmem:[#allocation2] sm:$0x1]
    %vm229 = vcmp.eq.s32.totalorder %v211, %v181
    %vm230 = vcmp.eq.s32.totalorder %v225, %v182
    %vm231 = vmand %vm226, %vm229
    %vm232 = vmand %vm227, %vm230
    %v233 = vsel %vm231, 1.0, 0.0
    %v234 = vsel %vm232, 1.0, 0.0
    %vm235 = vcmask 7168
    %v236 = vsel %vm235, %v233, 0.0
    %v237 = vsel %vm235, %v234, 0.0
    %v238 = vadd.f32 %v236, %v237
    %239 = vadd.xlane.f32.xlu0 %v238
    %v240 = vpop.xlane.xlu0 %239
    %v241 = vrot.slane %v240, 4
    %v242 = vadd.f32 %v240, %v241
    %v243 = vrot.slane %v242, 2
    %v244 = vadd.f32 %v242, %v243
    %v245 = vrot.slane %v244, 1
    %v246 = vadd.f32 %v244, %v245
    %s247 = vtos %v246
    %v248 = vstv %s247
    %v249 = vadd.f32 %v228, %v248
    %vm250 = vcmask 0
    %251 = vst.msk [vmem:[#allocation2] sm:$0x1] %vm250, %v249
    %v252 = vld [vmem:[#allocation4] sm:$0x1]
    %v253 = vsel %vm226, 1, 0
    %v254 = vsel %vm227, 1, 0
    %v255 = vcvt.s32.f32 %v253
    %v256 = vcvt.s32.f32 %v254
    %v257 = vsel %vm235, %v255, 0.0
    %v258 = vsel %vm235, %v256, 0.0
    %v259 = vadd.f32 %v257, %v258
    %260 = vadd.xlane.f32.xlu0 %v259
    %v261 = vpop.xlane.xlu0 %260
    %v262 = vrot.slane %v261, 4
    %v263 = vadd.f32 %v261, %v262
    %v264 = vrot.slane %v263, 2
    %v265 = vadd.f32 %v263, %v264
    %v266 = vrot.slane %v265, 1
    %v267 = vadd.f32 %v265, %v266
    %s268 = vtos %v267
    %v269 = vstv %s268
    %v270 = vadd.f32 %v252, %v269
    %271 = vst.msk [vmem:[#allocation4] sm:$0x1] %vm250, %v270
    %272 = vmax.xlane.f32.xlu0 %v186
    %v273 = vpop.xlane.xlu0 %272
    %274 = vmax.xlane.f32.xlu0 %v187
    %v275 = vpop.xlane.xlu0 %274
    %v276 = vsub.f32 %v186, %v273
    %v277 = vsub.f32 %v187, %v275
    %v278 = vmul.f32 %v276, 1.442695
    %v279 = vpow.pop %v278
    %v280 = vmul.f32 %v277, 1.442695
    %v281 = vpow.pop %v280
    %v282 = vsub.f32 %v188, %v191
    %v283 = vsub.f32 %v189, %v193
    %v284 = vmul.f32 %v282, 1.442695
    %v285 = vpow.pop %v284
    %v286 = vmul.f32 %v283, 1.442695
    %v287 = vpow.pop %v286
    %288 = vadd.xlane.f32.xlu0 %v279
    %v289 = vpop.xlane.xlu0 %288
    %290 = vadd.xlane.f32.xlu0 %v281
    %v291 = vpop.xlane.xlu0 %290
    %v292 = vrcp.pop %v289
    %v293 = vmul.f32 %v279, %v292
    %v294 = vrcp.pop %v291
    %v295 = vmul.f32 %v281, %v294
    %296 = vadd.xlane.f32.xlu0 %v285
    %v297 = vpop.xlane.xlu0 %296
    %298 = vadd.xlane.f32.xlu0 %v287
    %v299 = vpop.xlane.xlu0 %298
    %v300 = vrcp.pop %v297
    %v301 = vmul.f32 %v285, %v300
    %v302 = vrcp.pop %v299
    %v303 = vmul.f32 %v287, %v302
    %s304 = smul.u32 0, 16
    %v305 = vlaneseq
    %v306 = vshrl.u32 %v305, 7
    %v307 = vadd.s32 %v306, 8
    %v308 = vstv %s304
    %v309 = vadd.s32 %v308, %v306
    %v310 = vadd.s32 %v308, %v307
    %vm311 = vcmp.lt.s32.totalorder %v309, 16
    %vm312 = vcmp.lt.s32.totalorder %v310, 16
    %v313 = vsel %vm311, 1, 0
    %v314 = vsel %vm312, 1, 0
    %v315 = vcvt.s32.f32 %v313
    %v316 = vcvt.s32.f32 %v314
    %v317 = vsub.f32 %v293, %v301
    %v318 = vsub.f32 %v295, %v303
    %v319 = vld [vmem:[#allocation6] sm:$0x1]
    %v320 = vmul.f32 %v317, %v317
    %v321 = vmul.f32 %v318, %v318
    %v322 = vmul.f32 %v320, %v315
    %v323 = vmul.f32 %v321, %v316
    %v324 = vadd.f32 %v322, %v323
    %325 = vadd.xlane.f32.xlu0 %v324
    %v326 = vpop.xlane.xlu0 %325
    %v327 = vrot.slane %v326, 4
    %v328 = vadd.f32 %v326, %v327
    %v329 = vrot.slane %v328, 2
    %v330 = vadd.f32 %v328, %v329
    %v331 = vrot.slane %v330, 1
    %v332 = vadd.f32 %v330, %v331
    %s333 = vtos %v332
    %v334 = vstv %s333
    %v335 = vadd.f32 %v319, %v334
    %336 = vst.msk [vmem:[#allocation6] sm:$0x1] %vm250, %v335
    // Predicated region
    $region34: #{e2e_forward.7} parent=1 // pred_check
      _
    $region35: #{e2e_forward.7} parent=1 // pred_check_branch
      %338 = sbr.rel (0) target = $region37
    $region36: #{e2e_forward.7} parent=1 // pred_region
      %s340 = ssub.s32 16, 16
      %341 = vsyncadd [#allocation3], %s340
      %s343 = sshll.u32 [#allocation2], 4
      %s344 = int_to_ptr.vmem [resolvable:$true] %s343
      %346 = dma.vmem_to_hbm [thread:$0]  %s344, 16, %s7, [#allocation3]
    $region37: #{e2e_forward.7} parent=1 // pred_fallthru
      _
    // Predicated region
    $region38: #{e2e_forward.7} parent=1 // pred_check
      _
    $region39: #{e2e_forward.7} parent=1 // pred_check_branch
      %348 = sbr.rel (0) target = $region41
    $region40: #{e2e_forward.7} parent=1 // pred_region
      %s350 = ssub.s32 16, 16
      %351 = vsyncadd [#allocation5], %s350
      %s353 = sshll.u32 [#allocation4], 4
      %s354 = int_to_ptr.vmem [resolvable:$true] %s353
      %356 = dma.vmem_to_hbm [thread:$0]  %s354, 16, %s8, [#allocation5]
    $region41: #{e2e_forward.7} parent=1 // pred_fallthru
      _
    // Predicated region
    $region42: #{e2e_forward.7} parent=1 // pred_check
      _
    $region43: #{e2e_forward.7} parent=1 // pred_check_branch
      %358 = sbr.rel (0) target = $region45
    $region44: #{e2e_forward.7} parent=1 // pred_region
      %s360 = ssub.s32 16, 16
      %361 = vsyncadd [#allocation5], %s360
      %s363 = sshll.u32 [#allocation6], 4
      %s364 = int_to_ptr.vmem [resolvable:$true] %s363
      %366 = dma.vmem_to_hbm [thread:$0]  %s364, 16, %s9, [#allocation5]
    $region45: #{e2e_forward.7} parent=1 // pred_fallthru
      _
    // Predicated region
    $region46: #{e2e_forward.7} parent=1 // pred_check
      _
    $region47: #{e2e_forward.7} parent=1 // pred_check_branch
      %368 = sbr.rel (0) target = $region49
    $region48: #{e2e_forward.7} parent=1 // pred_region
      %369 = dma.done [#allocation3], 16
    $region49: #{e2e_forward.7} parent=1 // pred_fallthru
      _
    // Predicated region
    $region50: #{e2e_forward.7} parent=1 // pred_check
      _
    $region51: #{e2e_forward.7} parent=1 // pred_check_branch
      %371 = sbr.rel (0) target = $region53
    $region52: #{e2e_forward.7} parent=1 // pred_region
      %372 = dma.done [#allocation5], 16
    $region53: #{e2e_forward.7} parent=1 // pred_fallthru
      _
    // Predicated region
    $region54: #{e2e_forward.7} parent=1 // pred_check
      _
    $region55: #{e2e_forward.7} parent=1 // pred_check_branch
      %374 = sbr.rel (0) target = $region57
    $region56: #{e2e_forward.7} parent=1 // pred_region
      %375 = dma.done [#allocation5], 16
    $region57: #{e2e_forward.7} parent=1 // pred_fallthru
      _
    %376 = vsyncpa [#allocation3], 1
    %377 = vsyncpa [#allocation5], 1

// kernel: e2e_forward.4
$region0: #{e2e_forward.4}
  #allocation0 [shape = 'u32[]', space=smem, size = 0x4, offset = 0x4, fixed_abs, tag = 'smem constant byte address 0x4 - core index']
  #allocation1 [shape = 'u32[144,128]{1,0:T(1,128)}', space=vmem, size = 0x12000, scoped, tag = 'internal scratch']
  #allocation2 [shape = 'f32[1,2,32]{2,1,0:T(2,128)}', space=vmem, size = 0x400, scoped, tag = 'scratch operand']
  #allocation3 [shape = 'f32[1,2,32]{2,1,0:T(2,128)}', space=vmem, size = 0x400, scoped, tag = 'scratch operand']
  %s0 = inlined_call_operand.vmem [shape: f32[8,2,16], index: 0, kind: input, shape index: {}]
  %s1 = inlined_call_operand.vmem [shape: bf16[16,128], index: 1, kind: input, shape index: {}]
  %s2 = inlined_call_operand.vmem [shape: f32[1,128], index: 2, kind: input, shape index: {}]
  %s3 = inlined_call_operand.vmem [shape: bf16[1,32,128], index: 3, kind: input, shape index: {}]
  %s4 = inlined_call_operand.vmem [shape: f32[8,2,32], index: 4, kind: output, shape index: {}]
  %s5 = sld [smem:[#allocation0]]
  $region30: #{e2e_forward.4} parent=0
    _
  %s7 = ssub.s32 1, %s5
  %s8 = scalar_select 0, %s7, %s5
  // Predicated region
  $region2: #{e2e_forward.4} parent=0 // pred_check
    _
  $region3: #{e2e_forward.4} parent=0 // pred_check_branch
    %10 = sbr.rel (0) target = $region5
  $region4: #{e2e_forward.4} parent=0 // pred_region
    _
  $region5: #{e2e_forward.4} parent=0 // pred_fallthru
    _
  // Predicated region
  $region6: #{e2e_forward.4} parent=0 // pred_check
    _
  $region7: #{e2e_forward.4} parent=0 // pred_check_branch
    %12 = sbr.rel (0) target = $region9
  $region8: #{e2e_forward.4} parent=0 // pred_region
    _
  $region9: #{e2e_forward.4} parent=0 // pred_fallthru
    _
  // Predicated region
  $region10: #{e2e_forward.4} parent=0 // pred_check
    _
  $region11: #{e2e_forward.4} parent=0 // pred_check_branch
    %14 = sbr.rel (0) target = $region13
  $region12: #{e2e_forward.4} parent=0 // pred_region
    _
  $region13: #{e2e_forward.4} parent=0 // pred_fallthru
    _
  // Predicated region
  $region14: #{e2e_forward.4} parent=0 // pred_check
    _
  $region15: #{e2e_forward.4} parent=0 // pred_check_branch
    %16 = sbr.rel (0) target = $region17
  $region16: #{e2e_forward.4} parent=0 // pred_region
    _
  $region17: #{e2e_forward.4} parent=0 // pred_fallthru
    _
  %p18 = scmp.eq.s32.totalorder 0, 0
  // Predicated region
  $region18: #{e2e_forward.4} parent=0 // pred_check
    %p19 = pneg %p18
  $region19: #{e2e_forward.4} parent=0 // pred_check_branch
    %21 = sbr.rel (%p19) target = $region21
  $region20: #{e2e_forward.4} parent=0 // pred_region
    %vm22 = vcmask 254976
    %23 = vst.msk [vmem:[#allocation2] sm:$0x3] %vm22, 0.0
    %24 = vst.msk [vmem:[#allocation3] sm:$0x3] %vm22, 0.0
  $region21: #{e2e_forward.4} parent=0 // pred_fallthru
    _
  %v25 = vld [vmem:[%s0] sm:$0x3]
  %v26 = vld [vmem:[%s0 + $0x2] sm:$0x3]
  %v27 = vld [vmem:[%s0 + $0x4] sm:$0x3]
  %v28 = vld [vmem:[%s0 + $0x6] sm:$0x3]
  %v29 = vld [vmem:[%s0 + $0x8] sm:$0x3]
  %v30 = vld [vmem:[%s0 + $0xa] sm:$0x3]
  %v31 = vld [vmem:[%s0 + $0xc] sm:$0x3]
  %v32 = vld [vmem:[%s0 + $0xe] sm:$0x3]
  %v33 = vpack.c.bf16 %v25, %v25
  %v34 = vpack.c.bf16 %v26, %v26
  %v35 = vpack.c.bf16 %v27, %v27
  %v36 = vpack.c.bf16 %v28, %v28
  %v37 = vpack.c.bf16 %v29, %v29
  %v38 = vpack.c.bf16 %v30, %v30
  %v39 = vpack.c.bf16 %v31, %v31
  %v40 = vpack.c.bf16 %v32, %v32
  %v41 = vld [vmem:[%s1] sm:$0xf]
  %v42 = vld [vmem:[%s1 + $0x4] sm:$0xf]
  %v43 = vld [vmem:[%s2] sm:$0x1]
  %v45 = vlaneseq
  %v46 = vshrl.u32 %v45, 7
  %v47 = vsub.s32 0, %v46
  %v48 = vrot.slane %v43, %v47
  %v58 = vcombine.low %v33, %v34
  %v59 = vcombine.low %v35, %v36
  %v60 = vcombine.low %v37, %v38
  %v61 = vcombine.low %v39, %v40
  %v63 = vunpack.c.l.s4 1966171168
  %v64 = vunpack.c.0.s8 %v63
  %v65 = vlaneseq
  %v66 = vshrl.u32 %v65, 7
  %v67 = vsub.s32 %v64, %v66
  %v68 = vrot.slane %v58, %v67
  %v70 = vunpack.c.l.s4 1966171168
  %v71 = vunpack.c.0.s8 %v70
  %v72 = vlaneseq
  %v73 = vshrl.u32 %v72, 7
  %v74 = vsub.s32 %v71, %v73
  %v75 = vrot.slane %v59, %v74
  %v77 = vunpack.c.l.s4 1966171168
  %v78 = vunpack.c.0.s8 %v77
  %v79 = vlaneseq
  %v80 = vshrl.u32 %v79, 7
  %v81 = vsub.s32 %v78, %v80
  %v82 = vrot.slane %v60, %v81
  %v84 = vunpack.c.l.s4 1966171168
  %v85 = vunpack.c.0.s8 %v84
  %v86 = vlaneseq
  %v87 = vshrl.u32 %v86, 7
  %v88 = vsub.s32 %v85, %v87
  %v89 = vrot.slane %v61, %v88
  %v90 = vcombine.low %v68, %v75
  %v91 = vcombine.low %v82, %v89
  %v93 = vunpack.c.l.s4 1966171168
  %v94 = vunpack.c.0.s8 %v93
  %v95 = vlaneseq
  %v96 = vshrl.u32 %v95, 7
  %v97 = vsub.s32 %v94, %v96
  %v98 = vrot.slane %v90, %v97
  %v100 = vunpack.c.l.s4 1966171168
  %v101 = vunpack.c.0.s8 %v100
  %v102 = vlaneseq
  %v103 = vshrl.u32 %v102, 7
  %v104 = vsub.s32 %v101, %v103
  %v105 = vrot.slane %v91, %v104
  %v106 = vcombine.low %v98, %v105
  %v109 = vunpack.c.l.b16 %v41
  %v110 = vunpack.c.l.b16 %v42
  %v111 = vpack.c.b16 %v110, %v109
  %vm113 = vcmask 130048
  %v115 = vsel %vm113, %v106, 0
  %117 = vmatprep.subr.bf16.mxu0 0
  %118 = vmatpush1.bf16.msra.mxu0 %v111
  %119 = vmatprep.subr.bf16.mxu0 0
  %120 = vmatpush1.bf16.msra.mxu0 0
  %121 = vmatprep.subr.bf16.mxu0 0
  %122 = vmatpush1.bf16.msra.mxu0 0
  %123 = vmatprep.subr.bf16.mxu0 0
  %124 = vmatpush1.bf16.msra.mxu0 0
  %125 = vmatprep.subr.bf16.mxu0 0
  %126 = vmatpush1.bf16.msra.mxu0 0
  %127 = vmatprep.subr.bf16.mxu0 0
  %128 = vmatpush1.bf16.msra.mxu0 0
  %129 = vmatprep.subr.bf16.mxu0 0
  %130 = vmatpush1.bf16.msra.mxu0 0
  %131 = vmatprep.subr.bf16.mxu0 0
  %132 = vmatpush1.bf16.msra.mxu0 0
  %133 = vmatprep.subr.bf16.mxu0 0
  %134 = vmatpush1.bf16.msra.mxu0 0
  %135 = vmatprep.subr.bf16.mxu0 0
  %136 = vmatpush1.bf16.msra.mxu0 0
  %137 = vmatprep.subr.bf16.mxu0 0
  %138 = vmatpush1.bf16.msra.mxu0 0
  %139 = vmatprep.subr.bf16.mxu0 0
  %140 = vmatpush1.bf16.msra.mxu0 0
  %141 = vmatprep.subr.bf16.mxu0 0
  %142 = vmatpush1.bf16.msra.mxu0 0
  %143 = vmatprep.subr.bf16.mxu0 0
  %144 = vmatpush1.bf16.msra.mxu0 0
  %145 = vmatprep.subr.bf16.mxu0 0
  %146 = vmatpush1.bf16.msra.mxu0 0
  %147 = vmatprep.subr.bf16.mxu0 0
  %148 = vmatpush1.bf16.msra.mxu0 0
  %149 = vmatprep.mubr.bf16.mxu0 0
  %150 = vmatmul.mubr.bf16.gmra.mrb[0].mxu0 %v115
  %v151 = vpop.f32.mrb[0].mxu0
  %v152 = vadd.f32 %v48, %v151
  %v153 = vpop.f32.mrb[0].mxu0
  %v154 = vpop.f32.mrb[0].mxu0
  %v155 = vadd.f32 %v48, %v154
  %v156 = vpop.f32.mrb[0].mxu0
  %157 = vdwg.mxu0
  %v160 = vcombine.high %v152, %v152
  %v162 = vunpack.c.l.s4 1983009808
  %v163 = vunpack.c.0.s8 %v162
  %v164 = vlaneseq
  %v165 = vshrl.u32 %v164, 7
  %v166 = vsub.s32 %v163, %v165
  %v167 = vrot.slane %v152, %v166
  %v169 = vunpack.c.l.s4 1983009808
  %v170 = vunpack.c.0.s8 %v169
  %v171 = vlaneseq
  %v172 = vshrl.u32 %v171, 7
  %v173 = vsub.s32 %v170, %v172
  %v174 = vrot.slane %v160, %v173
  %v175 = vcombine.high %v167, %v167
  %v176 = vcombine.high %v174, %v174
  %v177 = vcombine.high %v155, %v155
  %v179 = vunpack.c.l.s4 1983009808
  %v180 = vunpack.c.0.s8 %v179
  %v181 = vlaneseq
  %v182 = vshrl.u32 %v181, 7
  %v183 = vsub.s32 %v180, %v182
  %v184 = vrot.slane %v155, %v183
  %v186 = vunpack.c.l.s4 1983009808
  %v187 = vunpack.c.0.s8 %v186
  %v188 = vlaneseq
  %v189 = vshrl.u32 %v188, 7
  %v190 = vsub.s32 %v187, %v189
  %v191 = vrot.slane %v177, %v190
  %v192 = vcombine.high %v184, %v184
  %v193 = vcombine.high %v191, %v191
  %v202 = vld [vmem:[%s3] sm:$0xf]
  %v203 = vld [vmem:[%s3 + $0x4] sm:$0xf]
  %v204 = vld [vmem:[%s3 + $0x8] sm:$0xf]
  %v205 = vld [vmem:[%s3 + $0xc] sm:$0xf]
  %v206 = vld [vmem:[#allocation2] sm:$0x3]
  %v207 = vld [vmem:[#allocation3] sm:$0x3]
  %v208 = vpack.c.bf16 %v206, %v206
  %v213 = vunpack.c.l.b16 %v202
  %v214 = vunpack.c.l.b16 %v203
  %v215 = vunpack.c.l.b16 %v204
  %v216 = vunpack.c.l.b16 %v205
  %v217 = vpack.c.b16 %v214, %v213
  %v218 = vpack.c.b16 %v216, %v215
  %vm221 = vcmask 261120
  %v223 = vsel %vm221, %v208, 0
  %225 = vmatprep.subr.bf16.mxu0 0
  %226 = vmatpush1.bf16.msra.mxu0 %v217
  %227 = vmatprep.subr.bf16.mxu0 0
  %228 = vmatpush1.bf16.msra.mxu0 %v218
  %229 = vmatprep.subr.bf16.mxu0 0
  %230 = vmatpush1.bf16.msra.mxu0 0
  %231 = vmatprep.subr.bf16.mxu0 0
  %232 = vmatpush1.bf16.msra.mxu0 0
  %233 = vmatprep.subr.bf16.mxu0 0
  %234 = vmatpush1.bf16.msra.mxu0 0
  %235 = vmatprep.subr.bf16.mxu0 0
  %236 = vmatpush1.bf16.msra.mxu0 0
  %237 = vmatprep.subr.bf16.mxu0 0
  %238 = vmatpush1.bf16.msra.mxu0 0
  %239 = vmatprep.subr.bf16.mxu0 0
  %240 = vmatpush1.bf16.msra.mxu0 0
  %241 = vmatprep.subr.bf16.mxu0 0
  %242 = vmatpush1.bf16.msra.mxu0 0
  %243 = vmatprep.subr.bf16.mxu0 0
  %244 = vmatpush1.bf16.msra.mxu0 0
  %245 = vmatprep.subr.bf16.mxu0 0
  %246 = vmatpush1.bf16.msra.mxu0 0
  %247 = vmatprep.subr.bf16.mxu0 0
  %248 = vmatpush1.bf16.msra.mxu0 0
  %249 = vmatprep.subr.bf16.mxu0 0
  %250 = vmatpush1.bf16.msra.mxu0 0
  %251 = vmatprep.subr.bf16.mxu0 0
  %252 = vmatpush1.bf16.msra.mxu0 0
  %253 = vmatprep.subr.bf16.mxu0 0
  %254 = vmatpush1.bf16.msra.mxu0 0
  %255 = vmatprep.subr.bf16.mxu0 0
  %256 = vmatpush1.bf16.msra.mxu0 0
  %257 = vmatprep.mubr.bf16.mxu0 0
  %258 = vmatmul.mubr.bf16.gmra.mrb[0].mxu0 %v223
  %v259 = vpop.f32.mrb[0].mxu0
  %v260 = vadd.f32 0.0, %v259
  %v261 = vpop.f32.mrb[0].mxu0
  %v262 = vpop.f32.mrb[0].mxu0
  %v263 = vpop.f32.mrb[0].mxu0
  %264 = vdwg.mxu0
  %v265 = vadd.f32 %v167, %v260
  %v266 = vxor.u32 %v265, 2147483648
  %v267 = vmul.f32 %v266, 1.442695
  %v268 = vpow.pop %v267
  %v269 = vadd.f32 %v268, 1.0
  %v270 = vrcp.pop %v269
  %v271 = vmul.f32 1.0, %v270
  %v272 = vtanh.pop %v265
  %v275 = vunpack.c.l.s4 1983009808
  %v276 = vunpack.c.0.s8 %v275
  %v277 = vlaneseq
  %v278 = vshrl.u32 %v277, 7
  %v279 = vsub.s32 %v276, %v278
  %v280 = vrot.slane %v207, %v279
  %281 = vrot.lane.b32.xlu0 %v280, 32
  %v282 = vpop.permute.xlu0 %281
  %v284 = vmul.f32 %v271, %v282
  %286 = vrot.lane.b32.xlu0 %v272, 64
  %v287 = vpop.permute.xlu0 %286
  %v289 = vmul.f32 %v271, %v287
  %291 = vrot.lane.b32.xlu0 %v289, 32
  %v292 = vpop.permute.xlu0 %291
  %v294 = vadd.f32 %v284, %v292
  %v295 = vtanh.pop %v294
  %297 = vrot.lane.b32.xlu0 %v295, 64
  %v298 = vpop.permute.xlu0 %297
  %v300 = vmul.f32 %v271, %v298
  %v303 = vunpack.c.l.s4 1983009808
  %v304 = vunpack.c.0.s8 %v303
  %v305 = vlaneseq
  %v306 = vshrl.u32 %v305, 7
  %v307 = vsub.s32 %v304, %v306
  %v308 = vrot.slane %v300, %v307
  %309 = vrot.lane.b32.xlu0 %v308, 32
  %v310 = vpop.permute.xlu0 %309
  %vm312 = vcmask 254976
  %313 = vst.msk [vmem:[%s4] sm:$0x3] %vm312, %v310
  %v314 = vpack.c.bf16 %v300, %v300
  %316 = vrot.lane.b32.xlu0 %v314, 32
  %v317 = vpop.permute.xlu0 %316
  %v319 = vsel %vm221, %v317, 0
  %321 = vmatprep.subr.bf16.mxu0 0
  %322 = vmatpush1.bf16.msra.mxu0 %v217
  %323 = vmatprep.subr.bf16.mxu0 0
  %324 = vmatpush1.bf16.msra.mxu0 %v218
  %325 = vmatprep.subr.bf16.mxu0 0
  %326 = vmatpush1.bf16.msra.mxu0 0
  %327 = vmatprep.subr.bf16.mxu0 0
  %328 = vmatpush1.bf16.msra.mxu0 0
  %329 = vmatprep.subr.bf16.mxu0 0
  %330 = vmatpush1.bf16.msra.mxu0 0
  %331 = vmatprep.subr.bf16.mxu0 0
  %332 = vmatpush1.bf16.msra.mxu0 0
  %333 = vmatprep.subr.bf16.mxu0 0
  %334 = vmatpush1.bf16.msra.mxu0 0
  %335 = vmatprep.subr.bf16.mxu0 0
  %336 = vmatpush1.bf16.msra.mxu0 0
  %337 = vmatprep.subr.bf16.mxu0 0
  %338 = vmatpush1.bf16.msra.mxu0 0
  %339 = vmatprep.subr.bf16.mxu0 0
  %340 = vmatpush1.bf16.msra.mxu0 0
  %341 = vmatprep.subr.bf16.mxu0 0
  %342 = vmatpush1.bf16.msra.mxu0 0
  %343 = vmatprep.subr.bf16.mxu0 0
  %344 = vmatpush1.bf16.msra.mxu0 0
  %345 = vmatprep.subr.bf16.mxu0 0
  %346 = vmatpush1.bf16.msra.mxu0 0
  %347 = vmatprep.subr.bf16.mxu0 0
  %348 = vmatpush1.bf16.msra.mxu0 0
  %349 = vmatprep.subr.bf16.mxu0 0
  %350 = vmatpush1.bf16.msra.mxu0 0
  %351 = vmatprep.subr.bf16.mxu0 0
  %352 = vmatpush1.bf16.msra.mxu0 0
  %353 = vmatprep.mubr.bf16.mxu0 0
  %354 = vmatmul.mubr.bf16.gmra.mrb[0].mxu0 %v319
  %v355 = vpop.f32.mrb[0].mxu0
  %v356 = vadd.f32 0.0, %v355
  %v357 = vpop.f32.mrb[0].mxu0
  %v358 = vpop.f32.mrb[0].mxu0
  %v359 = vpop.f32.mrb[0].mxu0
  %360 = vdwg.mxu0
  %v361 = vadd.f32 %v175, %v356
  %v362 = vxor.u32 %v361, 2147483648
  %v363 = vmul.f32 %v362, 1.442695
  %v364 = vpow.pop %v363
  %v365 = vadd.f32 %v364, 1.0
  %v366 = vrcp.pop %v365
  %v367 = vmul.f32 1.0, %v366
  %v368 = vtanh.pop %v361
  %v369 = vmul.f32 %v367, %v294
  %371 = vrot.lane.b32.xlu0 %v368, 64
  %v372 = vpop.permute.xlu0 %371
  %v374 = vmul.f32 %v367, %v372
  %376 = vrot.lane.b32.xlu0 %v374, 32
  %v377 = vpop.permute.xlu0 %376
  %v379 = vadd.f32 %v369, %v377
  %v380 = vtanh.pop %v379
  %382 = vrot.lane.b32.xlu0 %v380, 64
  %v383 = vpop.permute.xlu0 %382
  %v385 = vmul.f32 %v367, %v383
  %v388 = vunpack.c.l.s4 1983009808
  %v389 = vunpack.c.0.s8 %v388
  %v390 = vlaneseq
  %v391 = vshrl.u32 %v390, 7
  %v392 = vsub.s32 %v389, %v391
  %v393 = vrot.slane %v385, %v392
  %394 = vrot.lane.b32.xlu0 %v393, 32
  %v395 = vpop.permute.xlu0 %394
  %s397 = scalar_lea.vmem %s4, 2
  %398 = vst.msk [vmem:[%s397] sm:$0x3] %vm312, %v395
  %v399 = vpack.c.bf16 %v385, %v385
  %401 = vrot.lane.b32.xlu0 %v399, 32
  %v402 = vpop.permute.xlu0 %401
  %v404 = vsel %vm221, %v402, 0
  %406 = vmatprep.subr.bf16.mxu0 0
  %407 = vmatpush1.bf16.msra.mxu0 %v217
  %408 = vmatprep.subr.bf16.mxu0 0
  %409 = vmatpush1.bf16.msra.mxu0 %v218
  %410 = vmatprep.subr.bf16.mxu0 0
  %411 = vmatpush1.bf16.msra.mxu0 0
  %412 = vmatprep.subr.bf16.mxu0 0
  %413 = vmatpush1.bf16.msra.mxu0 0
  %414 = vmatprep.subr.bf16.mxu0 0
  %415 = vmatpush1.bf16.msra.mxu0 0
  %416 = vmatprep.subr.bf16.mxu0 0
  %417 = vmatpush1.bf16.msra.mxu0 0
  %418 = vmatprep.subr.bf16.mxu0 0
  %419 = vmatpush1.bf16.msra.mxu0 0
  %420 = vmatprep.subr.bf16.mxu0 0
  %421 = vmatpush1.bf16.msra.mxu0 0
  %422 = vmatprep.subr.bf16.mxu0 0
  %423 = vmatpush1.bf16.msra.mxu0 0
  %424 = vmatprep.subr.bf16.mxu0 0
  %425 = vmatpush1.bf16.msra.mxu0 0
  %426 = vmatprep.subr.bf16.mxu0 0
  %427 = vmatpush1.bf16.msra.mxu0 0
  %428 = vmatprep.subr.bf16.mxu0 0
  %429 = vmatpush1.bf16.msra.mxu0 0
  %430 = vmatprep.subr.bf16.mxu0 0
  %431 = vmatpush1.bf16.msra.mxu0 0
  %432 = vmatprep.subr.bf16.mxu0 0
  %433 = vmatpush1.bf16.msra.mxu0 0
  %434 = vmatprep.subr.bf16.mxu0 0
  %435 = vmatpush1.bf16.msra.mxu0 0
  %436 = vmatprep.subr.bf16.mxu0 0
  %437 = vmatpush1.bf16.msra.mxu0 0
  %438 = vmatprep.mubr.bf16.mxu0 0
  %439 = vmatmul.mubr.bf16.gmra.mrb[0].mxu0 %v404
  %v440 = vpop.f32.mrb[0].mxu0
  %v441 = vadd.f32 0.0, %v440
  %v442 = vpop.f32.mrb[0].mxu0
  %v443 = vpop.f32.mrb[0].mxu0
  %v444 = vpop.f32.mrb[0].mxu0
  %445 = vdwg.mxu0
  %v446 = vadd.f32 %v174, %v441
  %v447 = vxor.u32 %v446, 2147483648
  %v448 = vmul.f32 %v447, 1.442695
  %v449 = vpow.pop %v448
  %v450 = vadd.f32 %v449, 1.0
  %v451 = vrcp.pop %v450
  %v452 = vmul.f32 1.0, %v451
  %v453 = vtanh.pop %v446
  %v454 = vmul.f32 %v452, %v379
  %456 = vrot.lane.b32.xlu0 %v453, 64
  %v457 = vpop.permute.xlu0 %456
  %v459 = vmul.f32 %v452, %v457
  %461 = vrot.lane.b32.xlu0 %v459, 32
  %v462 = vpop.permute.xlu0 %461
  %v464 = vadd.f32 %v454, %v462
  %v465 = vtanh.pop %v464
  %467 = vrot.lane.b32.xlu0 %v465, 64
  %v468 = vpop.permute.xlu0 %467
  %v470 = vmul.f32 %v452, %v468
  %v473 = vunpack.c.l.s4 1983009808
  %v474 = vunpack.c.0.s8 %v473
  %v475 = vlaneseq
  %v476 = vshrl.u32 %v475, 7
  %v477 = vsub.s32 %v474, %v476
  %v478 = vrot.slane %v470, %v477
  %479 = vrot.lane.b32.xlu0 %v478, 32
  %v480 = vpop.permute.xlu0 %479
  %s482 = scalar_lea.vmem %s4, 4
  %483 = vst.msk [vmem:[%s482] sm:$0x3] %vm312, %v480
  %v484 = vpack.c.bf16 %v470, %v470
  %486 = vrot.lane.b32.xlu0 %v484, 32
  %v487 = vpop.permute.xlu0 %486
  %v489 = vsel %vm221, %v487, 0
  %491 = vmatprep.subr.bf16.mxu0 0
  %492 = vmatpush1.bf16.msra.mxu0 %v217
  %493 = vmatprep.subr.bf16.mxu0 0
  %494 = vmatpush1.bf16.msra.mxu0 %v218
  %495 = vmatprep.subr.bf16.mxu0 0
  %496 = vmatpush1.bf16.msra.mxu0 0
  %497 = vmatprep.subr.bf16.mxu0 0
  %498 = vmatpush1.bf16.msra.mxu0 0
  %499 = vmatprep.subr.bf16.mxu0 0
  %500 = vmatpush1.bf16.msra.mxu0 0
  %501 = vmatprep.subr.bf16.mxu0 0
  %502 = vmatpush1.bf16.msra.mxu0 0
  %503 = vmatprep.subr.bf16.mxu0 0
  %504 = vmatpush1.bf16.msra.mxu0 0
  %505 = vmatprep.subr.bf16.mxu0 0
  %506 = vmatpush1.bf16.msra.mxu0 0
  %507 = vmatprep.subr.bf16.mxu0 0
  %508 = vmatpush1.bf16.msra.mxu0 0
  %509 = vmatprep.subr.bf16.mxu0 0
  %510 = vmatpush1.bf16.msra.mxu0 0
  %511 = vmatprep.subr.bf16.mxu0 0
  %512 = vmatpush1.bf16.msra.mxu0 0
  %513 = vmatprep.subr.bf16.mxu0 0
  %514 = vmatpush1.bf16.msra.mxu0 0
  %515 = vmatprep.subr.bf16.mxu0 0
  %516 = vmatpush1.bf16.msra.mxu0 0
  %517 = vmatprep.subr.bf16.mxu0 0
  %518 = vmatpush1.bf16.msra.mxu0 0
  %519 = vmatprep.subr.bf16.mxu0 0
  %520 = vmatpush1.bf16.msra.mxu0 0
  %521 = vmatprep.subr.bf16.mxu0 0
  %522 = vmatpush1.bf16.msra.mxu0 0
  %523 = vmatprep.mubr.bf16.mxu0 0
  %524 = vmatmul.mubr.bf16.gmra.mrb[0].mxu0 %v489
  %v525 = vpop.f32.mrb[0].mxu0
  %v526 = vadd.f32 0.0, %v525
  %v527 = vpop.f32.mrb[0].mxu0
  %v528 = vpop.f32.mrb[0].mxu0
  %v529 = vpop.f32.mrb[0].mxu0
  %530 = vdwg.mxu0
  %v531 = vadd.f32 %v176, %v526
  %v532 = vxor.u32 %v531, 2147483648
  %v533 = vmul.f32 %v532, 1.442695
  %v534 = vpow.pop %v533
  %v535 = vadd.f32 %v534, 1.0
  %v536 = vrcp.pop %v535
  %v537 = vmul.f32 1.0, %v536
  %v538 = vtanh.pop %v531
  %v539 = vmul.f32 %v537, %v464
  %541 = vrot.lane.b32.xlu0 %v538, 64
  %v542 = vpop.permute.xlu0 %541
  %v544 = vmul.f32 %v537, %v542
  %546 = vrot.lane.b32.xlu0 %v544, 32
  %v547 = vpop.permute.xlu0 %546
  %v549 = vadd.f32 %v539, %v547
  %v550 = vtanh.pop %v549
  %552 = vrot.lane.b32.xlu0 %v550, 64
  %v553 = vpop.permute.xlu0 %552
  %v555 = vmul.f32 %v537, %v553
  %v558 = vunpack.c.l.s4 1983009808
  %v559 = vunpack.c.0.s8 %v558
  %v560 = vlaneseq
  %v561 = vshrl.u32 %v560, 7
  %v562 = vsub.s32 %v559, %v561
  %v563 = vrot.slane %v555, %v562
  %564 = vrot.lane.b32.xlu0 %v563, 32
  %v565 = vpop.permute.xlu0 %564
  %s567 = scalar_lea.vmem %s4, 6
  %568 = vst.msk [vmem:[%s567] sm:$0x3] %vm312, %v565
  %v569 = vpack.c.bf16 %v555, %v555
  %571 = vrot.lane.b32.xlu0 %v569, 32
  %v572 = vpop.permute.xlu0 %571
  %v574 = vsel %vm221, %v572, 0
  %576 = vmatprep.subr.bf16.mxu0 0
  %577 = vmatpush1.bf16.msra.mxu0 %v217
  %578 = vmatprep.subr.bf16.mxu0 0
  %579 = vmatpush1.bf16.msra.mxu0 %v218
  %580 = vmatprep.subr.bf16.mxu0 0
  %581 = vmatpush1.bf16.msra.mxu0 0
  %582 = vmatprep.subr.bf16.mxu0 0
  %583 = vmatpush1.bf16.msra.mxu0 0
  %584 = vmatprep.subr.bf16.mxu0 0
  %585 = vmatpush1.bf16.msra.mxu0 0
  %586 = vmatprep.subr.bf16.mxu0 0
  %587 = vmatpush1.bf16.msra.mxu0 0
  %588 = vmatprep.subr.bf16.mxu0 0
  %589 = vmatpush1.bf16.msra.mxu0 0
  %590 = vmatprep.subr.bf16.mxu0 0
  %591 = vmatpush1.bf16.msra.mxu0 0
  %592 = vmatprep.subr.bf16.mxu0 0
  %593 = vmatpush1.bf16.msra.mxu0 0
  %594 = vmatprep.subr.bf16.mxu0 0
  %595 = vmatpush1.bf16.msra.mxu0 0
  %596 = vmatprep.subr.bf16.mxu0 0
  %597 = vmatpush1.bf16.msra.mxu0 0
  %598 = vmatprep.subr.bf16.mxu0 0
  %599 = vmatpush1.bf16.msra.mxu0 0
  %600 = vmatprep.subr.bf16.mxu0 0
  %601 = vmatpush1.bf16.msra.mxu0 0
  %602 = vmatprep.subr.bf16.mxu0 0
  %603 = vmatpush1.bf16.msra.mxu0 0
  %604 = vmatprep.subr.bf16.mxu0 0
  %605 = vmatpush1.bf16.msra.mxu0 0
  %606 = vmatprep.subr.bf16.mxu0 0
  %607 = vmatpush1.bf16.msra.mxu0 0
  %608 = vmatprep.mubr.bf16.mxu0 0
  %609 = vmatmul.mubr.bf16.gmra.mrb[0].mxu0 %v574
  %v610 = vpop.f32.mrb[0].mxu0
  %v611 = vadd.f32 0.0, %v610
  %v612 = vpop.f32.mrb[0].mxu0
  %v613 = vpop.f32.mrb[0].mxu0
  %v614 = vpop.f32.mrb[0].mxu0
  %615 = vdwg.mxu0
  %v616 = vadd.f32 %v184, %v611
  %v617 = vxor.u32 %v616, 2147483648
  %v618 = vmul.f32 %v617, 1.442695
  %v619 = vpow.pop %v618
  %v620 = vadd.f32 %v619, 1.0
  %v621 = vrcp.pop %v620
  %v622 = vmul.f32 1.0, %v621
  %v623 = vtanh.pop %v616
  %v624 = vmul.f32 %v622, %v549
  %626 = vrot.lane.b32.xlu0 %v623, 64
  %v627 = vpop.permute.xlu0 %626
  %v629 = vmul.f32 %v622, %v627
  %631 = vrot.lane.b32.xlu0 %v629, 32
  %v632 = vpop.permute.xlu0 %631
  %v634 = vadd.f32 %v624, %v632
  %v635 = vtanh.pop %v634
  %637 = vrot.lane.b32.xlu0 %v635, 64
  %v638 = vpop.permute.xlu0 %637
  %v640 = vmul.f32 %v622, %v638
  %v643 = vunpack.c.l.s4 1983009808
  %v644 = vunpack.c.0.s8 %v643
  %v645 = vlaneseq
  %v646 = vshrl.u32 %v645, 7
  %v647 = vsub.s32 %v644, %v646
  %v648 = vrot.slane %v640, %v647
  %649 = vrot.lane.b32.xlu0 %v648, 32
  %v650 = vpop.permute.xlu0 %649
  %s652 = scalar_lea.vmem %s4, 8
  %653 = vst.msk [vmem:[%s652] sm:$0x3] %vm312, %v650
  %v654 = vpack.c.bf16 %v640, %v640
  %656 = vrot.lane.b32.xlu0 %v654, 32
  %v657 = vpop.permute.xlu0 %656
  %v659 = vsel %vm221, %v657, 0
  %661 = vmatprep.subr.bf16.mxu0 0
  %662 = vmatpush1.bf16.msra.mxu0 %v217
  %663 = vmatprep.subr.bf16.mxu0 0
  %664 = vmatpush1.bf16.msra.mxu0 %v218
  %665 = vmatprep.subr.bf16.mxu0 0
  %666 = vmatpush1.bf16.msra.mxu0 0
  %667 = vmatprep.subr.bf16.mxu0 0
  %668 = vmatpush1.bf16.msra.mxu0 0
  %669 = vmatprep.subr.bf16.mxu0 0
  %670 = vmatpush1.bf16.msra.mxu0 0
  %671 = vmatprep.subr.bf16.mxu0 0
  %672 = vmatpush1.bf16.msra.mxu0 0
  %673 = vmatprep.subr.bf16.mxu0 0
  %674 = vmatpush1.bf16.msra.mxu0 0
  %675 = vmatprep.subr.bf16.mxu0 0
  %676 = vmatpush1.bf16.msra.mxu0 0
  %677 = vmatprep.subr.bf16.mxu0 0
  %678 = vmatpush1.bf16.msra.mxu0 0
  %679 = vmatprep.subr.bf16.mxu0 0
  %680 = vmatpush1.bf16.msra.mxu0 0
  %681 = vmatprep.subr.bf16.mxu0 0
  %682 = vmatpush1.bf16.msra.mxu0 0
  %683 = vmatprep.subr.bf16.mxu0 0
  %684 = vmatpush1.bf16.msra.mxu0 0
  %685 = vmatprep.subr.bf16.mxu0 0
  %686 = vmatpush1.bf16.msra.mxu0 0
  %687 = vmatprep.subr.bf16.mxu0 0
  %688 = vmatpush1.bf16.msra.mxu0 0
  %689 = vmatprep.subr.bf16.mxu0 0
  %690 = vmatpush1.bf16.msra.mxu0 0
  %691 = vmatprep.subr.bf16.mxu0 0
  %692 = vmatpush1.bf16.msra.mxu0 0
  %693 = vmatprep.mubr.bf16.mxu0 0
  %694 = vmatmul.mubr.bf16.gmra.mrb[0].mxu0 %v659
  %v695 = vpop.f32.mrb[0].mxu0
  %v696 = vadd.f32 0.0, %v695
  %v697 = vpop.f32.mrb[0].mxu0
  %v698 = vpop.f32.mrb[0].mxu0
  %v699 = vpop.f32.mrb[0].mxu0
  %700 = vdwg.mxu0
  %v701 = vadd.f32 %v192, %v696
  %v702 = vxor.u32 %v701, 2147483648
  %v703 = vmul.f32 %v702, 1.442695
  %v704 = vpow.pop %v703
  %v705 = vadd.f32 %v704, 1.0
  %v706 = vrcp.pop %v705
  %v707 = vmul.f32 1.0, %v706
  %v708 = vtanh.pop %v701
  %v709 = vmul.f32 %v707, %v634
  %711 = vrot.lane.b32.xlu0 %v708, 64
  %v712 = vpop.permute.xlu0 %711
  %v714 = vmul.f32 %v707, %v712
  %716 = vrot.lane.b32.xlu0 %v714, 32
  %v717 = vpop.permute.xlu0 %716
  %v719 = vadd.f32 %v709, %v717
  %v720 = vtanh.pop %v719
  %722 = vrot.lane.b32.xlu0 %v720, 64
  %v723 = vpop.permute.xlu0 %722
  %v725 = vmul.f32 %v707, %v723
  %v728 = vunpack.c.l.s4 1983009808
  %v729 = vunpack.c.0.s8 %v728
  %v730 = vlaneseq
  %v731 = vshrl.u32 %v730, 7
  %v732 = vsub.s32 %v729, %v731
  %v733 = vrot.slane %v725, %v732
  %734 = vrot.lane.b32.xlu0 %v733, 32
  %v735 = vpop.permute.xlu0 %734
  %s737 = scalar_lea.vmem %s4, 10
  %738 = vst.msk [vmem:[%s737] sm:$0x3] %vm312, %v735
  %v739 = vpack.c.bf16 %v725, %v725
  %741 = vrot.lane.b32.xlu0 %v739, 32
  %v742 = vpop.permute.xlu0 %741
  %v744 = vsel %vm221, %v742, 0
  %746 = vmatprep.subr.bf16.mxu0 0
  %747 = vmatpush1.bf16.msra.mxu0 %v217
  %748 = vmatprep.subr.bf16.mxu0 0
  %749 = vmatpush1.bf16.msra.mxu0 %v218
  %750 = vmatprep.subr.bf16.mxu0 0
  %751 = vmatpush1.bf16.msra.mxu0 0
  %752 = vmatprep.subr.bf16.mxu0 0
  %753 = vmatpush1.bf16.msra.mxu0 0
  %754 = vmatprep.subr.bf16.mxu0 0
  %755 = vmatpush1.bf16.msra.mxu0 0
  %756 = vmatprep.subr.bf16.mxu0 0
  %757 = vmatpush1.bf16.msra.mxu0 0
  %758 = vmatprep.subr.bf16.mxu0 0
  %759 = vmatpush1.bf16.msra.mxu0 0
  %760 = vmatprep.subr.bf16.mxu0 0
  %761 = vmatpush1.bf16.msra.mxu0 0
  %762 = vmatprep.subr.bf16.mxu0 0
  %763 = vmatpush1.bf16.msra.mxu0 0
  %764 = vmatprep.subr.bf16.mxu0 0
  %765 = vmatpush1.bf16.msra.mxu0 0
  %766 = vmatprep.subr.bf16.mxu0 0
  %767 = vmatpush1.bf16.msra.mxu0 0
  %768 = vmatprep.subr.bf16.mxu0 0
  %769 = vmatpush1.bf16.msra.mxu0 0
  %770 = vmatprep.subr.bf16.mxu0 0
  %771 = vmatpush1.bf16.msra.mxu0 0
  %772 = vmatprep.subr.bf16.mxu0 0
  %773 = vmatpush1.bf16.msra.mxu0 0
  %774 = vmatprep.subr.bf16.mxu0 0
  %775 = vmatpush1.bf16.msra.mxu0 0
  %776 = vmatprep.subr.bf16.mxu0 0
  %777 = vmatpush1.bf16.msra.mxu0 0
  %778 = vmatprep.mubr.bf16.mxu0 0
  %779 = vmatmul.mubr.bf16.gmra.mrb[0].mxu0 %v744
  %v780 = vpop.f32.mrb[0].mxu0
  %v781 = vadd.f32 0.0, %v780
  %v782 = vpop.f32.mrb[0].mxu0
  %v783 = vpop.f32.mrb[0].mxu0
  %v784 = vpop.f32.mrb[0].mxu0
  %785 = vdwg.mxu0
  %v786 = vadd.f32 %v191, %v781
  %v787 = vxor.u32 %v786, 2147483648
  %v788 = vmul.f32 %v787, 1.442695
  %v789 = vpow.pop %v788
  %v790 = vadd.f32 %v789, 1.0
  %v791 = vrcp.pop %v790
  %v792 = vmul.f32 1.0, %v791
  %v793 = vtanh.pop %v786
  %v794 = vmul.f32 %v792, %v719
  %796 = vrot.lane.b32.xlu0 %v793, 64
  %v797 = vpop.permute.xlu0 %796
  %v799 = vmul.f32 %v792, %v797
  %801 = vrot.lane.b32.xlu0 %v799, 32
  %v802 = vpop.permute.xlu0 %801
  %v804 = vadd.f32 %v794, %v802
  %v805 = vtanh.pop %v804
  %807 = vrot.lane.b32.xlu0 %v805, 64
  %v808 = vpop.permute.xlu0 %807
  %v810 = vmul.f32 %v792, %v808
  %v813 = vunpack.c.l.s4 1983009808
  %v814 = vunpack.c.0.s8 %v813
  %v815 = vlaneseq
  %v816 = vshrl.u32 %v815, 7
  %v817 = vsub.s32 %v814, %v816
  %v818 = vrot.slane %v810, %v817
  %819 = vrot.lane.b32.xlu0 %v818, 32
  %v820 = vpop.permute.xlu0 %819
  %s822 = scalar_lea.vmem %s4, 12
  %823 = vst.msk [vmem:[%s822] sm:$0x3] %vm312, %v820
  %v824 = vpack.c.bf16 %v810, %v810
  %826 = vrot.lane.b32.xlu0 %v824, 32
  %v827 = vpop.permute.xlu0 %826
  %v829 = vsel %vm221, %v827, 0
  %831 = vmatprep.subr.bf16.mxu0 0
  %832 = vmatpush1.bf16.msra.mxu0 %v217
  %833 = vmatprep.subr.bf16.mxu0 0
  %834 = vmatpush1.bf16.msra.mxu0 %v218
  %835 = vmatprep.subr.bf16.mxu0 0
  %836 = vmatpush1.bf16.msra.mxu0 0
  %837 = vmatprep.subr.bf16.mxu0 0
  %838 = vmatpush1.bf16.msra.mxu0 0
  %839 = vmatprep.subr.bf16.mxu0 0
  %840 = vmatpush1.bf16.msra.mxu0 0
  %841 = vmatprep.subr.bf16.mxu0 0
  %842 = vmatpush1.bf16.msra.mxu0 0
  %843 = vmatprep.subr.bf16.mxu0 0
  %844 = vmatpush1.bf16.msra.mxu0 0
  %845 = vmatprep.subr.bf16.mxu0 0
  %846 = vmatpush1.bf16.msra.mxu0 0
  %847 = vmatprep.subr.bf16.mxu0 0
  %848 = vmatpush1.bf16.msra.mxu0 0
  %849 = vmatprep.subr.bf16.mxu0 0
  %850 = vmatpush1.bf16.msra.mxu0 0
  %851 = vmatprep.subr.bf16.mxu0 0
  %852 = vmatpush1.bf16.msra.mxu0 0
  %853 = vmatprep.subr.bf16.mxu0 0
  %854 = vmatpush1.bf16.msra.mxu0 0
  %855 = vmatprep.subr.bf16.mxu0 0
  %856 = vmatpush1.bf16.msra.mxu0 0
  %857 = vmatprep.subr.bf16.mxu0 0
  %858 = vmatpush1.bf16.msra.mxu0 0
  %859 = vmatprep.subr.bf16.mxu0 0
  %860 = vmatpush1.bf16.msra.mxu0 0
  %861 = vmatprep.subr.bf16.mxu0 0
  %862 = vmatpush1.bf16.msra.mxu0 0
  %863 = vmatprep.mubr.bf16.mxu0 0
  %864 = vmatmul.mubr.bf16.gmra.mrb[0].mxu0 %v829
  %v865 = vpop.f32.mrb[0].mxu0
  %v866 = vadd.f32 0.0, %v865
  %v867 = vpop.f32.mrb[0].mxu0
  %v868 = vpop.f32.mrb[0].mxu0
  %v869 = vpop.f32.mrb[0].mxu0
  %870 = vdwg.mxu0
  %v871 = vadd.f32 %v193, %v866
  %v872 = vxor.u32 %v871, 2147483648
  %v873 = vmul.f32 %v872, 1.442695
  %v874 = vpow.pop %v873
  %v875 = vadd.f32 %v874, 1.0
  %v876 = vrcp.pop %v875
  %v877 = vmul.f32 1.0, %v876
  %v878 = vtanh.pop %v871
  %v879 = vmul.f32 %v877, %v804
  %881 = vrot.lane.b32.xlu0 %v878, 64
  %v882 = vpop.permute.xlu0 %881
  %v884 = vmul.f32 %v877, %v882
  %886 = vrot.lane.b32.xlu0 %v884, 32
  %v887 = vpop.permute.xlu0 %886
  %v889 = vadd.f32 %v879, %v887
  %v890 = vtanh.pop %v889
  %892 = vrot.lane.b32.xlu0 %v890, 64
  %v893 = vpop.permute.xlu0 %892
  %v895 = vmul.f32 %v877, %v893
  %v898 = vunpack.c.l.s4 1983009808
  %v899 = vunpack.c.0.s8 %v898
  %v900 = vlaneseq
  %v901 = vshrl.u32 %v900, 7
  %v902 = vsub.s32 %v899, %v901
  %v903 = vrot.slane %v895, %v902
  %904 = vrot.lane.b32.xlu0 %v903, 32
  %v905 = vpop.permute.xlu0 %904
  %s907 = scalar_lea.vmem %s4, 14
  %908 = vst.msk [vmem:[%s907] sm:$0x3] %vm312, %v905
  %909 = vst.msk [vmem:[#allocation2] sm:$0x3] %vm312, %v905
  %v912 = vunpack.c.l.s4 1983009808
  %v913 = vunpack.c.0.s8 %v912
  %v914 = vlaneseq
  %v915 = vshrl.u32 %v914, 7
  %v916 = vsub.s32 %v913, %v915
  %v917 = vrot.slane %v889, %v916
  %918 = vrot.lane.b32.xlu0 %v917, 96
  %v919 = vpop.permute.xlu0 %918
  %921 = vst.msk [vmem:[#allocation3] sm:$0x3] %vm312, %v919
  // Predicated region
  $region22: #{e2e_forward.4} parent=0 // pred_check
    _
  $region23: #{e2e_forward.4} parent=0 // pred_check_branch
    %923 = sbr.rel (0) target = $region25
  $region24: #{e2e_forward.4} parent=0 // pred_region
    _
  $region25: #{e2e_forward.4} parent=0 // pred_fallthru
    _
  // Predicated region
  $region26: #{e2e_forward.4} parent=0 // pred_check
    _
  $region27: #{e2e_forward.4} parent=0 // pred_check_branch
    %925 = sbr.rel (0) target = $region29
  $region28: #{e2e_forward.4} parent=0 // pred_region
    _
  $region29: #{e2e_forward.4} parent=0 // pred_fallthru
    _

// kernel: e2e_forward.6
$region0: #{e2e_forward.6}
  #allocation0 [shape = 'u32[]', space=smem, size = 0x4, offset = 0x4, fixed_abs, tag = 'smem constant byte address 0x4 - core index']
  #allocation1 [shape = 'u32[144,128]{1,0:T(1,128)}', space=vmem, size = 0x12000, scoped, tag = 'internal scratch']
  #allocation2 [shape = 'f32[2,2,32]{2,1,0:T(2,128)}', space=vmem, size = 0x800, scoped, tag = 'scratch operand']
  #allocation3 [shape = 'f32[2,2,32]{2,1,0:T(2,128)}', space=vmem, size = 0x800, scoped, tag = 'scratch operand']
  %s0 = inlined_call_operand.vmem [shape: f32[8,2,16], index: 0, kind: input, shape index: {}]
  %s1 = inlined_call_operand.vmem [shape: bf16[16,256], index: 1, kind: input, shape index: {}]
  %s2 = inlined_call_operand.vmem [shape: f32[1,256], index: 2, kind: input, shape index: {}]
  %s3 = inlined_call_operand.vmem [shape: bf16[2,32,128], index: 3, kind: input, shape index: {}]
  %s4 = inlined_call_operand.vmem [shape: f32[8,2,32], index: 4, kind: output, shape index: {0}]
  %s5 = inlined_call_operand.vmem [shape: f32[8,2,32], index: 5, kind: output, shape index: {1}]
  %6 = xla_tuple %s4, %s5
  %s7 = sld [smem:[#allocation0]]
  $region38: #{e2e_forward.6} parent=0
    _
  %s9 = ssub.s32 1, %s7
  %s10 = scalar_select 0, %s9, %s7
  // Predicated region
  $region2: #{e2e_forward.6} parent=0 // pred_check
    _
  $region3: #{e2e_forward.6} parent=0 // pred_check_branch
    %12 = sbr.rel (0) target = $region5
  $region4: #{e2e_forward.6} parent=0 // pred_region
    _
  $region5: #{e2e_forward.6} parent=0 // pred_fallthru
    _
  // Predicated region
  $region6: #{e2e_forward.6} parent=0 // pred_check
    _
  $region7: #{e2e_forward.6} parent=0 // pred_check_branch
    %14 = sbr.rel (0) target = $region9
  $region8: #{e2e_forward.6} parent=0 // pred_region
    _
  $region9: #{e2e_forward.6} parent=0 // pred_fallthru
    _
  // Predicated region
  $region10: #{e2e_forward.6} parent=0 // pred_check
    _
  $region11: #{e2e_forward.6} parent=0 // pred_check_branch
    %16 = sbr.rel (0) target = $region13
  $region12: #{e2e_forward.6} parent=0 // pred_region
    _
  $region13: #{e2e_forward.6} parent=0 // pred_fallthru
    _
  // Predicated region
  $region14: #{e2e_forward.6} parent=0 // pred_check
    _
  $region15: #{e2e_forward.6} parent=0 // pred_check_branch
    %18 = sbr.rel (0) target = $region17
  $region16: #{e2e_forward.6} parent=0 // pred_region
    _
  $region17: #{e2e_forward.6} parent=0 // pred_fallthru
    _
  %p20 = scmp.eq.s32.totalorder 0, 0
  // Predicated region
  $region18: #{e2e_forward.6} parent=0 // pred_check
    %p21 = pneg %p20
  $region19: #{e2e_forward.6} parent=0 // pred_check_branch
    %23 = sbr.rel (%p21) target = $region21
  $region20: #{e2e_forward.6} parent=0 // pred_region
    %vm24 = vcmask 254976
    %25 = vst.msk [vmem:[#allocation2] sm:$0x3] %vm24, 0.0
    %26 = vst.msk [vmem:[#allocation2 + $0x2] sm:$0x3] %vm24, 0.0
    %27 = vst.msk [vmem:[#allocation3] sm:$0x3] %vm24, 0.0
    %28 = vst.msk [vmem:[#allocation3 + $0x2] sm:$0x3] %vm24, 0.0
  $region21: #{e2e_forward.6} parent=0 // pred_fallthru
    _
  %v29 = vld [vmem:[%s0] sm:$0x3]
  %v30 = vld [vmem:[%s0 + $0x2] sm:$0x3]
  %v31 = vld [vmem:[%s0 + $0x4] sm:$0x3]
  %v32 = vld [vmem:[%s0 + $0x6] sm:$0x3]
  %v33 = vld [vmem:[%s0 + $0x8] sm:$0x3]
  %v34 = vld [vmem:[%s0 + $0xa] sm:$0x3]
  %v35 = vld [vmem:[%s0 + $0xc] sm:$0x3]
  %v36 = vld [vmem:[%s0 + $0xe] sm:$0x3]
  %v37 = vpack.c.bf16 %v29, %v29
  %v38 = vpack.c.bf16 %v30, %v30
  %v39 = vpack.c.bf16 %v31, %v31
  %v40 = vpack.c.bf16 %v32, %v32
  %v41 = vpack.c.bf16 %v33, %v33
  %v42 = vpack.c.bf16 %v34, %v34
  %v43 = vpack.c.bf16 %v35, %v35
  %v44 = vpack.c.bf16 %v36, %v36
  %v45 = vld [vmem:[%s1] sm:$0xff]
  %v46 = vld [vmem:[%s1 + $0x8] sm:$0xff]
  %v47 = vld [vmem:[%s2] sm:$0x3]
  %v49 = vlaneseq
  %v50 = vshrl.u32 %v49, 7
  %v51 = vsub.s32 0, %v50
  %v52 = vrot.slane %v47, %v51
  %v53 = vlaneseq
  %v54 = vshrl.u32 %v53, 7
  %v55 = vsub.s32 1, %v54
  %v56 = vrot.slane %v47, %v55
  %v67 = vcombine.low %v37, %v38
  %v68 = vcombine.low %v39, %v40
  %v69 = vcombine.low %v41, %v42
  %v70 = vcombine.low %v43, %v44
  %v72 = vunpack.c.l.s4 1966171168
  %v73 = vunpack.c.0.s8 %v72
  %v74 = vlaneseq
  %v75 = vshrl.u32 %v74, 7
  %v76 = vsub.s32 %v73, %v75
  %v77 = vrot.slane %v67, %v76
  %v79 = vunpack.c.l.s4 1966171168
  %v80 = vunpack.c.0.s8 %v79
  %v81 = vlaneseq
  %v82 = vshrl.u32 %v81, 7
  %v83 = vsub.s32 %v80, %v82
  %v84 = vrot.slane %v68, %v83
  %v86 = vunpack.c.l.s4 1966171168
  %v87 = vunpack.c.0.s8 %v86
  %v88 = vlaneseq
  %v89 = vshrl.u32 %v88, 7
  %v90 = vsub.s32 %v87, %v89
  %v91 = vrot.slane %v69, %v90
  %v93 = vunpack.c.l.s4 1966171168
  %v94 = vunpack.c.0.s8 %v93
  %v95 = vlaneseq
  %v96 = vshrl.u32 %v95, 7
  %v97 = vsub.s32 %v94, %v96
  %v98 = vrot.slane %v70, %v97
  %v99 = vcombine.low %v77, %v84
  %v100 = vcombine.low %v91, %v98
  %v102 = vunpack.c.l.s4 1966171168
  %v103 = vunpack.c.0.s8 %v102
  %v104 = vlaneseq
  %v105 = vshrl.u32 %v104, 7
  %v106 = vsub.s32 %v103, %v105
  %v107 = vrot.slane %v99, %v106
  %v109 = vunpack.c.l.s4 1966171168
  %v110 = vunpack.c.0.s8 %v109
  %v111 = vlaneseq
  %v112 = vshrl.u32 %v111, 7
  %v113 = vsub.s32 %v110, %v112
  %v114 = vrot.slane %v100, %v113
  %v115 = vcombine.low %v107, %v114
  %v118 = vunpack.c.l.b16 %v45
  %v119 = vunpack.c.h.b16 %v45
  %v120 = vunpack.c.l.b16 %v46
  %v121 = vunpack.c.h.b16 %v46
  %v122 = vpack.c.b16 %v120, %v118
  %v123 = vpack.c.b16 %v121, %v119
  %vm126 = vcmask 130048
  %v128 = vsel %vm126, %v115, 0
  %130 = vmatprep.subr.bf16.mxu0 %v123
  %131 = vmatpush1.bf16.msra.mxu0 %v122
  %132 = vmatprep.subr.bf16.mxu0 0
  %133 = vmatpush1.bf16.msra.mxu0 0
  %134 = vmatprep.subr.bf16.mxu0 0
  %135 = vmatpush1.bf16.msra.mxu0 0
  %136 = vmatprep.subr.bf16.mxu0 0
  %137 = vmatpush1.bf16.msra.mxu0 0
  %138 = vmatprep.subr.bf16.mxu0 0
  %139 = vmatpush1.bf16.msra.mxu0 0
  %140 = vmatprep.subr.bf16.mxu0 0
  %141 = vmatpush1.bf16.msra.mxu0 0
  %142 = vmatprep.subr.bf16.mxu0 0
  %143 = vmatpush1.bf16.msra.mxu0 0
  %144 = vmatprep.subr.bf16.mxu0 0
  %145 = vmatpush1.bf16.msra.mxu0 0
  %146 = vmatprep.subr.bf16.mxu0 0
  %147 = vmatpush1.bf16.msra.mxu0 0
  %148 = vmatprep.subr.bf16.mxu0 0
  %149 = vmatpush1.bf16.msra.mxu0 0
  %150 = vmatprep.subr.bf16.mxu0 0
  %151 = vmatpush1.bf16.msra.mxu0 0
  %152 = vmatprep.subr.bf16.mxu0 0
  %153 = vmatpush1.bf16.msra.mxu0 0
  %154 = vmatprep.subr.bf16.mxu0 0
  %155 = vmatpush1.bf16.msra.mxu0 0
  %156 = vmatprep.subr.bf16.mxu0 0
  %157 = vmatpush1.bf16.msra.mxu0 0
  %158 = vmatprep.subr.bf16.mxu0 0
  %159 = vmatpush1.bf16.msra.mxu0 0
  %160 = vmatprep.subr.bf16.mxu0 0
  %161 = vmatpush1.bf16.msra.mxu0 0
  %162 = vmatprep.mubr.bf16.mxu0 0
  %163 = vmatmul.mubr.bf16.gmra.mrb[0].mxu0 %v128
  %v164 = vpop.f32.mrb[0].mxu0
  %v165 = vadd.f32 %v52, %v164
  %v166 = vpop.f32.mrb[0].mxu0
  %v167 = vadd.f32 %v56, %v166
  %v168 = vpop.f32.mrb[0].mxu0
  %v169 = vadd.f32 %v52, %v168
  %v170 = vpop.f32.mrb[0].mxu0
  %v171 = vadd.f32 %v56, %v170
  %172 = vdwg.mxu0
  %v177 = vcombine.low %v165, %v167
  %v178 = vcombine.high %v165, %v167
  %v180 = vunpack.c.l.s4 1983009808
  %v181 = vunpack.c.0.s8 %v180
  %v182 = vlaneseq
  %v183 = vshrl.u32 %v182, 7
  %v184 = vsub.s32 %v181, %v183
  %v185 = vrot.slane %v177, %v184
  %v187 = vunpack.c.l.s4 1983009808
  %v188 = vunpack.c.0.s8 %v187
  %v189 = vlaneseq
  %v190 = vshrl.u32 %v189, 7
  %v191 = vsub.s32 %v188, %v190
  %v192 = vrot.slane %v178, %v191
  %v193 = vcombine.high %v185, %v185
  %v194 = vcombine.high %v192, %v192
  %v195 = vcombine.low %v169, %v171
  %v196 = vcombine.high %v169, %v171
  %v198 = vunpack.c.l.s4 1983009808
  %v199 = vunpack.c.0.s8 %v198
  %v200 = vlaneseq
  %v201 = vshrl.u32 %v200, 7
  %v202 = vsub.s32 %v199, %v201
  %v203 = vrot.slane %v195, %v202
  %v205 = vunpack.c.l.s4 1983009808
  %v206 = vunpack.c.0.s8 %v205
  %v207 = vlaneseq
  %v208 = vshrl.u32 %v207, 7
  %v209 = vsub.s32 %v206, %v208
  %v210 = vrot.slane %v196, %v209
  %v211 = vcombine.high %v203, %v203
  %v212 = vcombine.high %v210, %v210
  %v221 = vld [vmem:[%s3] sm:$0xf]
  %v222 = vld [vmem:[%s3 + $0x4] sm:$0xf]
  %v223 = vld [vmem:[%s3 + $0x8] sm:$0xf]
  %v224 = vld [vmem:[%s3 + $0xc] sm:$0xf]
  %s225 = scalar_lea.vmem %s3, 16
  %v226 = vld [vmem:[%s225] sm:$0xf]
  %v227 = vld [vmem:[%s225 + $0x4] sm:$0xf]
  %v228 = vld [vmem:[%s225 + $0x8] sm:$0xf]
  %v229 = vld [vmem:[%s225 + $0xc] sm:$0xf]
  %v230 = vld [vmem:[#allocation2] sm:$0x3]
  %v231 = vld [vmem:[#allocation2 + $0x2] sm:$0x3]
  %v232 = vld [vmem:[#allocation3] sm:$0x3]
  %v233 = vld [vmem:[#allocation3 + $0x2] sm:$0x3]
  %v234 = vpack.c.bf16 %v230, %v230
  %v239 = vunpack.c.l.b16 %v221
  %v240 = vunpack.c.l.b16 %v222
  %v241 = vunpack.c.l.b16 %v223
  %v242 = vunpack.c.l.b16 %v224
  %v243 = vpack.c.b16 %v240, %v239
  %v244 = vpack.c.b16 %v242, %v241
  %vm247 = vcmask 261120
  %v249 = vsel %vm247, %v234, 0
  %251 = vmatprep.subr.bf16.mxu0 0
  %252 = vmatpush1.bf16.msra.mxu0 %v243
  %253 = vmatprep.subr.bf16.mxu0 0
  %254 = vmatpush1.bf16.msra.mxu0 %v244
  %255 = vmatprep.subr.bf16.mxu0 0
  %256 = vmatpush1.bf16.msra.mxu0 0
  %257 = vmatprep.subr.bf16.mxu0 0
  %258 = vmatpush1.bf16.msra.mxu0 0
  %259 = vmatprep.subr.bf16.mxu0 0
  %260 = vmatpush1.bf16.msra.mxu0 0
  %261 = vmatprep.subr.bf16.mxu0 0
  %262 = vmatpush1.bf16.msra.mxu0 0
  %263 = vmatprep.subr.bf16.mxu0 0
  %264 = vmatpush1.bf16.msra.mxu0 0
  %265 = vmatprep.subr.bf16.mxu0 0
  %266 = vmatpush1.bf16.msra.mxu0 0
  %267 = vmatprep.subr.bf16.mxu0 0
  %268 = vmatpush1.bf16.msra.mxu0 0
  %269 = vmatprep.subr.bf16.mxu0 0
  %270 = vmatpush1.bf16.msra.mxu0 0
  %271 = vmatprep.subr.bf16.mxu0 0
  %272 = vmatpush1.bf16.msra.mxu0 0
  %273 = vmatprep.subr.bf16.mxu0 0
  %274 = vmatpush1.bf16.msra.mxu0 0
  %275 = vmatprep.subr.bf16.mxu0 0
  %276 = vmatpush1.bf16.msra.mxu0 0
  %277 = vmatprep.subr.bf16.mxu0 0
  %278 = vmatpush1.bf16.msra.mxu0 0
  %279 = vmatprep.subr.bf16.mxu0 0
  %280 = vmatpush1.bf16.msra.mxu0 0
  %281 = vmatprep.subr.bf16.mxu0 0
  %282 = vmatpush1.bf16.msra.mxu0 0
  %283 = vmatprep.mubr.bf16.mxu0 0
  %284 = vmatmul.mubr.bf16.gmra.mrb[0].mxu0 %v249
  %v285 = vpop.f32.mrb[0].mxu0
  %v286 = vadd.f32 0.0, %v285
  %v287 = vpop.f32.mrb[0].mxu0
  %v288 = vpop.f32.mrb[0].mxu0
  %v289 = vpop.f32.mrb[0].mxu0
  %290 = vdwg.mxu0
  %v291 = vadd.f32 %v185, %v286
  %v292 = vxor.u32 %v291, 2147483648
  %v293 = vmul.f32 %v292, 1.442695
  %v294 = vpow.pop %v293
  %v295 = vadd.f32 %v294, 1.0
  %v296 = vrcp.pop %v295
  %v297 = vmul.f32 1.0, %v296
  %v298 = vtanh.pop %v291
  %v301 = vunpack.c.l.s4 1983009808
  %v302 = vunpack.c.0.s8 %v301
  %v303 = vlaneseq
  %v304 = vshrl.u32 %v303, 7
  %v305 = vsub.s32 %v302, %v304
  %v306 = vrot.slane %v232, %v305
  %307 = vrot.lane.b32.xlu0 %v306, 32
  %v308 = vpop.permute.xlu0 %307
  %v310 = vmul.f32 %v297, %v308
  %312 = vrot.lane.b32.xlu0 %v298, 64
  %v313 = vpop.permute.xlu0 %312
  %v315 = vmul.f32 %v297, %v313
  %317 = vrot.lane.b32.xlu0 %v315, 32
  %v318 = vpop.permute.xlu0 %317
  %v320 = vadd.f32 %v310, %v318
  %v321 = vtanh.pop %v320
  %323 = vrot.lane.b32.xlu0 %v321, 64
  %v324 = vpop.permute.xlu0 %323
  %v326 = vmul.f32 %v297, %v324
  %v329 = vunpack.c.l.s4 1983009808
  %v330 = vunpack.c.0.s8 %v329
  %v331 = vlaneseq
  %v332 = vshrl.u32 %v331, 7
  %v333 = vsub.s32 %v330, %v332
  %v334 = vrot.slane %v326, %v333
  %335 = vrot.lane.b32.xlu0 %v334, 32
  %v336 = vpop.permute.xlu0 %335
  %vm338 = vcmask 254976
  %339 = vst.msk [vmem:[%s4] sm:$0x3] %vm338, %v336
  %v340 = vpack.c.bf16 %v231, %v231
  %v345 = vunpack.c.l.b16 %v226
  %v346 = vunpack.c.l.b16 %v227
  %v347 = vunpack.c.l.b16 %v228
  %v348 = vunpack.c.l.b16 %v229
  %v349 = vpack.c.b16 %v346, %v345
  %v350 = vpack.c.b16 %v348, %v347
  %v354 = vsel %vm247, %v340, 0
  %356 = vmatprep.subr.bf16.mxu0 0
  %357 = vmatpush1.bf16.msra.mxu0 %v349
  %358 = vmatprep.subr.bf16.mxu0 0
  %359 = vmatpush1.bf16.msra.mxu0 %v350
  %360 = vmatprep.subr.bf16.mxu0 0
  %361 = vmatpush1.bf16.msra.mxu0 0
  %362 = vmatprep.subr.bf16.mxu0 0
  %363 = vmatpush1.bf16.msra.mxu0 0
  %364 = vmatprep.subr.bf16.mxu0 0
  %365 = vmatpush1.bf16.msra.mxu0 0
  %366 = vmatprep.subr.bf16.mxu0 0
  %367 = vmatpush1.bf16.msra.mxu0 0
  %368 = vmatprep.subr.bf16.mxu0 0
  %369 = vmatpush1.bf16.msra.mxu0 0
  %370 = vmatprep.subr.bf16.mxu0 0
  %371 = vmatpush1.bf16.msra.mxu0 0
  %372 = vmatprep.subr.bf16.mxu0 0
  %373 = vmatpush1.bf16.msra.mxu0 0
  %374 = vmatprep.subr.bf16.mxu0 0
  %375 = vmatpush1.bf16.msra.mxu0 0
  %376 = vmatprep.subr.bf16.mxu0 0
  %377 = vmatpush1.bf16.msra.mxu0 0
  %378 = vmatprep.subr.bf16.mxu0 0
  %379 = vmatpush1.bf16.msra.mxu0 0
  %380 = vmatprep.subr.bf16.mxu0 0
  %381 = vmatpush1.bf16.msra.mxu0 0
  %382 = vmatprep.subr.bf16.mxu0 0
  %383 = vmatpush1.bf16.msra.mxu0 0
  %384 = vmatprep.subr.bf16.mxu0 0
  %385 = vmatpush1.bf16.msra.mxu0 0
  %386 = vmatprep.subr.bf16.mxu0 0
  %387 = vmatpush1.bf16.msra.mxu0 0
  %388 = vmatprep.mubr.bf16.mxu0 0
  %389 = vmatmul.mubr.bf16.gmra.mrb[0].mxu0 %v354
  %v390 = vpop.f32.mrb[0].mxu0
  %v391 = vadd.f32 0.0, %v390
  %v392 = vpop.f32.mrb[0].mxu0
  %v393 = vpop.f32.mrb[0].mxu0
  %v394 = vpop.f32.mrb[0].mxu0
  %395 = vdwg.mxu0
  %v396 = vrot.slane %v185, 2
  %v398 = vadd.f32 %v396, %v391
  %v399 = vxor.u32 %v398, 2147483648
  %v400 = vmul.f32 %v399, 1.442695
  %v401 = vpow.pop %v400
  %v402 = vadd.f32 %v401, 1.0
  %v403 = vrcp.pop %v402
  %v404 = vmul.f32 1.0, %v403
  %v405 = vtanh.pop %v398
  %v408 = vunpack.c.l.s4 1983009808
  %v409 = vunpack.c.0.s8 %v408
  %v410 = vlaneseq
  %v411 = vshrl.u32 %v410, 7
  %v412 = vsub.s32 %v409, %v411
  %v413 = vrot.slane %v233, %v412
  %414 = vrot.lane.b32.xlu0 %v413, 32
  %v415 = vpop.permute.xlu0 %414
  %v417 = vmul.f32 %v404, %v415
  %419 = vrot.lane.b32.xlu0 %v405, 64
  %v420 = vpop.permute.xlu0 %419
  %v422 = vmul.f32 %v404, %v420
  %424 = vrot.lane.b32.xlu0 %v422, 32
  %v425 = vpop.permute.xlu0 %424
  %v427 = vadd.f32 %v417, %v425
  %v428 = vtanh.pop %v427
  %430 = vrot.lane.b32.xlu0 %v428, 64
  %v431 = vpop.permute.xlu0 %430
  %v433 = vmul.f32 %v404, %v431
  %v436 = vunpack.c.l.s4 1983009808
  %v437 = vunpack.c.0.s8 %v436
  %v438 = vlaneseq
  %v439 = vshrl.u32 %v438, 7
  %v440 = vsub.s32 %v437, %v439
  %v441 = vrot.slane %v433, %v440
  %442 = vrot.lane.b32.xlu0 %v441, 32
  %v443 = vpop.permute.xlu0 %442
  %445 = vst.msk [vmem:[%s5] sm:$0x3] %vm338, %v443
  %v446 = vpack.c.bf16 %v326, %v326
  %448 = vrot.lane.b32.xlu0 %v446, 32
  %v449 = vpop.permute.xlu0 %448
  %v451 = vsel %vm247, %v449, 0
  %453 = vmatprep.subr.bf16.mxu0 0
  %454 = vmatpush1.bf16.msra.mxu0 %v243
  %455 = vmatprep.subr.bf16.mxu0 0
  %456 = vmatpush1.bf16.msra.mxu0 %v244
  %457 = vmatprep.subr.bf16.mxu0 0
  %458 = vmatpush1.bf16.msra.mxu0 0
  %459 = vmatprep.subr.bf16.mxu0 0
  %460 = vmatpush1.bf16.msra.mxu0 0
  %461 = vmatprep.subr.bf16.mxu0 0
  %462 = vmatpush1.bf16.msra.mxu0 0
  %463 = vmatprep.subr.bf16.mxu0 0
  %464 = vmatpush1.bf16.msra.mxu0 0
  %465 = vmatprep.subr.bf16.mxu0 0
  %466 = vmatpush1.bf16.msra.mxu0 0
  %467 = vmatprep.subr.bf16.mxu0 0
  %468 = vmatpush1.bf16.msra.mxu0 0
  %469 = vmatprep.subr.bf16.mxu0 0
  %470 = vmatpush1.bf16.msra.mxu0 0
  %471 = vmatprep.subr.bf16.mxu0 0
  %472 = vmatpush1.bf16.msra.mxu0 0
  %473 = vmatprep.subr.bf16.mxu0 0
  %474 = vmatpush1.bf16.msra.mxu0 0
  %475 = vmatprep.subr.bf16.mxu0 0
  %476 = vmatpush1.bf16.msra.mxu0 0
  %477 = vmatprep.subr.bf16.mxu0 0
  %478 = vmatpush1.bf16.msra.mxu0 0
  %479 = vmatprep.subr.bf16.mxu0 0
  %480 = vmatpush1.bf16.msra.mxu0 0
  %481 = vmatprep.subr.bf16.mxu0 0
  %482 = vmatpush1.bf16.msra.mxu0 0
  %483 = vmatprep.subr.bf16.mxu0 0
  %484 = vmatpush1.bf16.msra.mxu0 0
  %485 = vmatprep.mubr.bf16.mxu0 0
  %486 = vmatmul.mubr.bf16.gmra.mrb[0].mxu0 %v451
  %v487 = vpop.f32.mrb[0].mxu0
  %v488 = vadd.f32 0.0, %v487
  %v489 = vpop.f32.mrb[0].mxu0
  %v490 = vpop.f32.mrb[0].mxu0
  %v491 = vpop.f32.mrb[0].mxu0
  %492 = vdwg.mxu0
  %v493 = vadd.f32 %v193, %v488
  %v494 = vxor.u32 %v493, 2147483648
  %v495 = vmul.f32 %v494, 1.442695
  %v496 = vpow.pop %v495
  %v497 = vadd.f32 %v496, 1.0
  %v498 = vrcp.pop %v497
  %v499 = vmul.f32 1.0, %v498
  %v500 = vtanh.pop %v493
  %v501 = vmul.f32 %v499, %v320
  %503 = vrot.lane.b32.xlu0 %v500, 64
  %v504 = vpop.permute.xlu0 %503
  %v506 = vmul.f32 %v499, %v504
  %508 = vrot.lane.b32.xlu0 %v506, 32
  %v509 = vpop.permute.xlu0 %508
  %v511 = vadd.f32 %v501, %v509
  %v512 = vtanh.pop %v511
  %514 = vrot.lane.b32.xlu0 %v512, 64
  %v515 = vpop.permute.xlu0 %514
  %v517 = vmul.f32 %v499, %v515
  %v520 = vunpack.c.l.s4 1983009808
  %v521 = vunpack.c.0.s8 %v520
  %v522 = vlaneseq
  %v523 = vshrl.u32 %v522, 7
  %v524 = vsub.s32 %v521, %v523
  %v525 = vrot.slane %v517, %v524
  %526 = vrot.lane.b32.xlu0 %v525, 32
  %v527 = vpop.permute.xlu0 %526
  %s529 = scalar_lea.vmem %s4, 2
  %530 = vst.msk [vmem:[%s529] sm:$0x3] %vm338, %v527
  %v531 = vpack.c.bf16 %v433, %v433
  %533 = vrot.lane.b32.xlu0 %v531, 32
  %v534 = vpop.permute.xlu0 %533
  %v536 = vsel %vm247, %v534, 0
  %538 = vmatprep.subr.bf16.mxu0 0
  %539 = vmatpush1.bf16.msra.mxu0 %v349
  %540 = vmatprep.subr.bf16.mxu0 0
  %541 = vmatpush1.bf16.msra.mxu0 %v350
  %542 = vmatprep.subr.bf16.mxu0 0
  %543 = vmatpush1.bf16.msra.mxu0 0
  %544 = vmatprep.subr.bf16.mxu0 0
  %545 = vmatpush1.bf16.msra.mxu0 0
  %546 = vmatprep.subr.bf16.mxu0 0
  %547 = vmatpush1.bf16.msra.mxu0 0
  %548 = vmatprep.subr.bf16.mxu0 0
  %549 = vmatpush1.bf16.msra.mxu0 0
  %550 = vmatprep.subr.bf16.mxu0 0
  %551 = vmatpush1.bf16.msra.mxu0 0
  %552 = vmatprep.subr.bf16.mxu0 0
  %553 = vmatpush1.bf16.msra.mxu0 0
  %554 = vmatprep.subr.bf16.mxu0 0
  %555 = vmatpush1.bf16.msra.mxu0 0
  %556 = vmatprep.subr.bf16.mxu0 0
  %557 = vmatpush1.bf16.msra.mxu0 0
  %558 = vmatprep.subr.bf16.mxu0 0
  %559 = vmatpush1.bf16.msra.mxu0 0
  %560 = vmatprep.subr.bf16.mxu0 0
  %561 = vmatpush1.bf16.msra.mxu0 0
  %562 = vmatprep.subr.bf16.mxu0 0
  %563 = vmatpush1.bf16.msra.mxu0 0
  %564 = vmatprep.subr.bf16.mxu0 0
  %565 = vmatpush1.bf16.msra.mxu0 0
  %566 = vmatprep.subr.bf16.mxu0 0
  %567 = vmatpush1.bf16.msra.mxu0 0
  %568 = vmatprep.subr.bf16.mxu0 0
  %569 = vmatpush1.bf16.msra.mxu0 0
  %570 = vmatprep.mubr.bf16.mxu0 0
  %571 = vmatmul.mubr.bf16.gmra.mrb[0].mxu0 %v536
  %v572 = vpop.f32.mrb[0].mxu0
  %v573 = vadd.f32 0.0, %v572
  %v574 = vpop.f32.mrb[0].mxu0
  %v575 = vpop.f32.mrb[0].mxu0
  %v576 = vpop.f32.mrb[0].mxu0
  %577 = vdwg.mxu0
  %v578 = vrot.slane %v193, 2
  %v580 = vadd.f32 %v578, %v573
  %v581 = vxor.u32 %v580, 2147483648
  %v582 = vmul.f32 %v581, 1.442695
  %v583 = vpow.pop %v582
  %v584 = vadd.f32 %v583, 1.0
  %v585 = vrcp.pop %v584
  %v586 = vmul.f32 1.0, %v585
  %v587 = vtanh.pop %v580
  %v588 = vmul.f32 %v586, %v427
  %590 = vrot.lane.b32.xlu0 %v587, 64
  %v591 = vpop.permute.xlu0 %590
  %v593 = vmul.f32 %v586, %v591
  %595 = vrot.lane.b32.xlu0 %v593, 32
  %v596 = vpop.permute.xlu0 %595
  %v598 = vadd.f32 %v588, %v596
  %v599 = vtanh.pop %v598
  %601 = vrot.lane.b32.xlu0 %v599, 64
  %v602 = vpop.permute.xlu0 %601
  %v604 = vmul.f32 %v586, %v602
  %v607 = vunpack.c.l.s4 1983009808
  %v608 = vunpack.c.0.s8 %v607
  %v609 = vlaneseq
  %v610 = vshrl.u32 %v609, 7
  %v611 = vsub.s32 %v608, %v610
  %v612 = vrot.slane %v604, %v611
  %613 = vrot.lane.b32.xlu0 %v612, 32
  %v614 = vpop.permute.xlu0 %613
  %s616 = scalar_lea.vmem %s5, 2
  %617 = vst.msk [vmem:[%s616] sm:$0x3] %vm338, %v614
  %v618 = vpack.c.bf16 %v517, %v517
  %620 = vrot.lane.b32.xlu0 %v618, 32
  %v621 = vpop.permute.xlu0 %620
  %v623 = vsel %vm247, %v621, 0
  %625 = vmatprep.subr.bf16.mxu0 0
  %626 = vmatpush1.bf16.msra.mxu0 %v243
  %627 = vmatprep.subr.bf16.mxu0 0
  %628 = vmatpush1.bf16.msra.mxu0 %v244
  %629 = vmatprep.subr.bf16.mxu0 0
  %630 = vmatpush1.bf16.msra.mxu0 0
  %631 = vmatprep.subr.bf16.mxu0 0
  %632 = vmatpush1.bf16.msra.mxu0 0
  %633 = vmatprep.subr.bf16.mxu0 0
  %634 = vmatpush1.bf16.msra.mxu0 0
  %635 = vmatprep.subr.bf16.mxu0 0
  %636 = vmatpush1.bf16.msra.mxu0 0
  %637 = vmatprep.subr.bf16.mxu0 0
  %638 = vmatpush1.bf16.msra.mxu0 0
  %639 = vmatprep.subr.bf16.mxu0 0
  %640 = vmatpush1.bf16.msra.mxu0 0
  %641 = vmatprep.subr.bf16.mxu0 0
  %642 = vmatpush1.bf16.msra.mxu0 0
  %643 = vmatprep.subr.bf16.mxu0 0
  %644 = vmatpush1.bf16.msra.mxu0 0
  %645 = vmatprep.subr.bf16.mxu0 0
  %646 = vmatpush1.bf16.msra.mxu0 0
  %647 = vmatprep.subr.bf16.mxu0 0
  %648 = vmatpush1.bf16.msra.mxu0 0
  %649 = vmatprep.subr.bf16.mxu0 0
  %650 = vmatpush1.bf16.msra.mxu0 0
  %651 = vmatprep.subr.bf16.mxu0 0
  %652 = vmatpush1.bf16.msra.mxu0 0
  %653 = vmatprep.subr.bf16.mxu0 0
  %654 = vmatpush1.bf16.msra.mxu0 0
  %655 = vmatprep.subr.bf16.mxu0 0
  %656 = vmatpush1.bf16.msra.mxu0 0
  %657 = vmatprep.mubr.bf16.mxu0 0
  %658 = vmatmul.mubr.bf16.gmra.mrb[0].mxu0 %v623
  %v659 = vpop.f32.mrb[0].mxu0
  %v660 = vadd.f32 0.0, %v659
  %v661 = vpop.f32.mrb[0].mxu0
  %v662 = vpop.f32.mrb[0].mxu0
  %v663 = vpop.f32.mrb[0].mxu0
  %664 = vdwg.mxu0
  %v665 = vadd.f32 %v192, %v660
  %v666 = vxor.u32 %v665, 2147483648
  %v667 = vmul.f32 %v666, 1.442695
  %v668 = vpow.pop %v667
  %v669 = vadd.f32 %v668, 1.0
  %v670 = vrcp.pop %v669
  %v671 = vmul.f32 1.0, %v670
  %v672 = vtanh.pop %v665
  %v673 = vmul.f32 %v671, %v511
  %675 = vrot.lane.b32.xlu0 %v672, 64
  %v676 = vpop.permute.xlu0 %675
  %v678 = vmul.f32 %v671, %v676
  %680 = vrot.lane.b32.xlu0 %v678, 32
  %v681 = vpop.permute.xlu0 %680
  %v683 = vadd.f32 %v673, %v681
  %v684 = vtanh.pop %v683
  %686 = vrot.lane.b32.xlu0 %v684, 64
  %v687 = vpop.permute.xlu0 %686
  %v689 = vmul.f32 %v671, %v687
  %v692 = vunpack.c.l.s4 1983009808
  %v693 = vunpack.c.0.s8 %v692
  %v694 = vlaneseq
  %v695 = vshrl.u32 %v694, 7
  %v696 = vsub.s32 %v693, %v695
  %v697 = vrot.slane %v689, %v696
  %698 = vrot.lane.b32.xlu0 %v697, 32
  %v699 = vpop.permute.xlu0 %698
  %s701 = scalar_lea.vmem %s4, 4
  %702 = vst.msk [vmem:[%s701] sm:$0x3] %vm338, %v699
  %v703 = vpack.c.bf16 %v604, %v604
  %705 = vrot.lane.b32.xlu0 %v703, 32
  %v706 = vpop.permute.xlu0 %705
  %v708 = vsel %vm247, %v706, 0
  %710 = vmatprep.subr.bf16.mxu0 0
  %711 = vmatpush1.bf16.msra.mxu0 %v349
  %712 = vmatprep.subr.bf16.mxu0 0
  %713 = vmatpush1.bf16.msra.mxu0 %v350
  %714 = vmatprep.subr.bf16.mxu0 0
  %715 = vmatpush1.bf16.msra.mxu0 0
  %716 = vmatprep.subr.bf16.mxu0 0
  %717 = vmatpush1.bf16.msra.mxu0 0
  %718 = vmatprep.subr.bf16.mxu0 0
  %719 = vmatpush1.bf16.msra.mxu0 0
  %720 = vmatprep.subr.bf16.mxu0 0
  %721 = vmatpush1.bf16.msra.mxu0 0
  %722 = vmatprep.subr.bf16.mxu0 0
  %723 = vmatpush1.bf16.msra.mxu0 0
  %724 = vmatprep.subr.bf16.mxu0 0
  %725 = vmatpush1.bf16.msra.mxu0 0
  %726 = vmatprep.subr.bf16.mxu0 0
  %727 = vmatpush1.bf16.msra.mxu0 0
  %728 = vmatprep.subr.bf16.mxu0 0
  %729 = vmatpush1.bf16.msra.mxu0 0
  %730 = vmatprep.subr.bf16.mxu0 0
  %731 = vmatpush1.bf16.msra.mxu0 0
  %732 = vmatprep.subr.bf16.mxu0 0
  %733 = vmatpush1.bf16.msra.mxu0 0
  %734 = vmatprep.subr.bf16.mxu0 0
  %735 = vmatpush1.bf16.msra.mxu0 0
  %736 = vmatprep.subr.bf16.mxu0 0
  %737 = vmatpush1.bf16.msra.mxu0 0
  %738 = vmatprep.subr.bf16.mxu0 0
  %739 = vmatpush1.bf16.msra.mxu0 0
  %740 = vmatprep.subr.bf16.mxu0 0
  %741 = vmatpush1.bf16.msra.mxu0 0
  %742 = vmatprep.mubr.bf16.mxu0 0
  %743 = vmatmul.mubr.bf16.gmra.mrb[0].mxu0 %v708
  %v744 = vpop.f32.mrb[0].mxu0
  %v745 = vadd.f32 0.0, %v744
  %v746 = vpop.f32.mrb[0].mxu0
  %v747 = vpop.f32.mrb[0].mxu0
  %v748 = vpop.f32.mrb[0].mxu0
  %749 = vdwg.mxu0
  %v750 = vrot.slane %v192, 2
  %v752 = vadd.f32 %v750, %v745
  %v753 = vxor.u32 %v752, 2147483648
  %v754 = vmul.f32 %v753, 1.442695
  %v755 = vpow.pop %v754
  %v756 = vadd.f32 %v755, 1.0
  %v757 = vrcp.pop %v756
  %v758 = vmul.f32 1.0, %v757
  %v759 = vtanh.pop %v752
  %v760 = vmul.f32 %v758, %v598
  %762 = vrot.lane.b32.xlu0 %v759, 64
  %v763 = vpop.permute.xlu0 %762
  %v765 = vmul.f32 %v758, %v763
  %767 = vrot.lane.b32.xlu0 %v765, 32
  %v768 = vpop.permute.xlu0 %767
  %v770 = vadd.f32 %v760, %v768
  %v771 = vtanh.pop %v770
  %773 = vrot.lane.b32.xlu0 %v771, 64
  %v774 = vpop.permute.xlu0 %773
  %v776 = vmul.f32 %v758, %v774
  %v779 = vunpack.c.l.s4 1983009808
  %v780 = vunpack.c.0.s8 %v779
  %v781 = vlaneseq
  %v782 = vshrl.u32 %v781, 7
  %v783 = vsub.s32 %v780, %v782
  %v784 = vrot.slane %v776, %v783
  %785 = vrot.lane.b32.xlu0 %v784, 32
  %v786 = vpop.permute.xlu0 %785
  %s788 = scalar_lea.vmem %s5, 4
  %789 = vst.msk [vmem:[%s788] sm:$0x3] %vm338, %v786
  %v790 = vpack.c.bf16 %v689, %v689
  %792 = vrot.lane.b32.xlu0 %v790, 32
  %v793 = vpop.permute.xlu0 %792
  %v795 = vsel %vm247, %v793, 0
  %797 = vmatprep.subr.bf16.mxu0 0
  %798 = vmatpush1.bf16.msra.mxu0 %v243
  %799 = vmatprep.subr.bf16.mxu0 0
  %800 = vmatpush1.bf16.msra.mxu0 %v244
  %801 = vmatprep.subr.bf16.mxu0 0
  %802 = vmatpush1.bf16.msra.mxu0 0
  %803 = vmatprep.subr.bf16.mxu0 0
  %804 = vmatpush1.bf16.msra.mxu0 0
  %805 = vmatprep.subr.bf16.mxu0 0
  %806 = vmatpush1.bf16.msra.mxu0 0
  %807 = vmatprep.subr.bf16.mxu0 0
  %808 = vmatpush1.bf16.msra.mxu0 0
  %809 = vmatprep.subr.bf16.mxu0 0
  %810 = vmatpush1.bf16.msra.mxu0 0
  %811 = vmatprep.subr.bf16.mxu0 0
  %812 = vmatpush1.bf16.msra.mxu0 0
  %813 = vmatprep.subr.bf16.mxu0 0
  %814 = vmatpush1.bf16.msra.mxu0 0
  %815 = vmatprep.subr.bf16.mxu0 0
  %816 = vmatpush1.bf16.msra.mxu0 0
  %817 = vmatprep.subr.bf16.mxu0 0
  %818 = vmatpush1.bf16.msra.mxu0 0
  %819 = vmatprep.subr.bf16.mxu0 0
  %820 = vmatpush1.bf16.msra.mxu0 0
  %821 = vmatprep.subr.bf16.mxu0 0
  %822 = vmatpush1.bf16.msra.mxu0 0
  %823 = vmatprep.subr.bf16.mxu0 0
  %824 = vmatpush1.bf16.msra.mxu0 0
  %825 = vmatprep.subr.bf16.mxu0 0
  %826 = vmatpush1.bf16.msra.mxu0 0
  %827 = vmatprep.subr.bf16.mxu0 0
  %828 = vmatpush1.bf16.msra.mxu0 0
  %829 = vmatprep.mubr.bf16.mxu0 0
  %830 = vmatmul.mubr.bf16.gmra.mrb[0].mxu0 %v795
  %v831 = vpop.f32.mrb[0].mxu0
  %v832 = vadd.f32 0.0, %v831
  %v833 = vpop.f32.mrb[0].mxu0
  %v834 = vpop.f32.mrb[0].mxu0
  %v835 = vpop.f32.mrb[0].mxu0
  %836 = vdwg.mxu0
  %v837 = vadd.f32 %v194, %v832
  %v838 = vxor.u32 %v837, 2147483648
  %v839 = vmul.f32 %v838, 1.442695
  %v840 = vpow.pop %v839
  %v841 = vadd.f32 %v840, 1.0
  %v842 = vrcp.pop %v841
  %v843 = vmul.f32 1.0, %v842
  %v844 = vtanh.pop %v837
  %v845 = vmul.f32 %v843, %v683
  %847 = vrot.lane.b32.xlu0 %v844, 64
  %v848 = vpop.permute.xlu0 %847
  %v850 = vmul.f32 %v843, %v848
  %852 = vrot.lane.b32.xlu0 %v850, 32
  %v853 = vpop.permute.xlu0 %852
  %v855 = vadd.f32 %v845, %v853
  %v856 = vtanh.pop %v855
  %858 = vrot.lane.b32.xlu0 %v856, 64
  %v859 = vpop.permute.xlu0 %858
  %v861 = vmul.f32 %v843, %v859
  %v864 = vunpack.c.l.s4 1983009808
  %v865 = vunpack.c.0.s8 %v864
  %v866 = vlaneseq
  %v867 = vshrl.u32 %v866, 7
  %v868 = vsub.s32 %v865, %v867
  %v869 = vrot.slane %v861, %v868
  %870 = vrot.lane.b32.xlu0 %v869, 32
  %v871 = vpop.permute.xlu0 %870
  %s873 = scalar_lea.vmem %s4, 6
  %874 = vst.msk [vmem:[%s873] sm:$0x3] %vm338, %v871
  %v875 = vpack.c.bf16 %v776, %v776
  %877 = vrot.lane.b32.xlu0 %v875, 32
  %v878 = vpop.permute.xlu0 %877
  %v880 = vsel %vm247, %v878, 0
  %882 = vmatprep.subr.bf16.mxu0 0
  %883 = vmatpush1.bf16.msra.mxu0 %v349
  %884 = vmatprep.subr.bf16.mxu0 0
  %885 = vmatpush1.bf16.msra.mxu0 %v350
  %886 = vmatprep.subr.bf16.mxu0 0
  %887 = vmatpush1.bf16.msra.mxu0 0
  %888 = vmatprep.subr.bf16.mxu0 0
  %889 = vmatpush1.bf16.msra.mxu0 0
  %890 = vmatprep.subr.bf16.mxu0 0
  %891 = vmatpush1.bf16.msra.mxu0 0
  %892 = vmatprep.subr.bf16.mxu0 0
  %893 = vmatpush1.bf16.msra.mxu0 0
  %894 = vmatprep.subr.bf16.mxu0 0
  %895 = vmatpush1.bf16.msra.mxu0 0
  %896 = vmatprep.subr.bf16.mxu0 0
  %897 = vmatpush1.bf16.msra.mxu0 0
  %898 = vmatprep.subr.bf16.mxu0 0
  %899 = vmatpush1.bf16.msra.mxu0 0
  %900 = vmatprep.subr.bf16.mxu0 0
  %901 = vmatpush1.bf16.msra.mxu0 0
  %902 = vmatprep.subr.bf16.mxu0 0
  %903 = vmatpush1.bf16.msra.mxu0 0
  %904 = vmatprep.subr.bf16.mxu0 0
  %905 = vmatpush1.bf16.msra.mxu0 0
  %906 = vmatprep.subr.bf16.mxu0 0
  %907 = vmatpush1.bf16.msra.mxu0 0
  %908 = vmatprep.subr.bf16.mxu0 0
  %909 = vmatpush1.bf16.msra.mxu0 0
  %910 = vmatprep.subr.bf16.mxu0 0
  %911 = vmatpush1.bf16.msra.mxu0 0
  %912 = vmatprep.subr.bf16.mxu0 0
  %913 = vmatpush1.bf16.msra.mxu0 0
  %914 = vmatprep.mubr.bf16.mxu0 0
  %915 = vmatmul.mubr.bf16.gmra.mrb[0].mxu0 %v880
  %v916 = vpop.f32.mrb[0].mxu0
  %v917 = vadd.f32 0.0, %v916
  %v918 = vpop.f32.mrb[0].mxu0
  %v919 = vpop.f32.mrb[0].mxu0
  %v920 = vpop.f32.mrb[0].mxu0
  %921 = vdwg.mxu0
  %v922 = vrot.slane %v194, 2
  %v924 = vadd.f32 %v922, %v917
  %v925 = vxor.u32 %v924, 2147483648
  %v926 = vmul.f32 %v925, 1.442695
  %v927 = vpow.pop %v926
  %v928 = vadd.f32 %v927, 1.0
  %v929 = vrcp.pop %v928
  %v930 = vmul.f32 1.0, %v929
  %v931 = vtanh.pop %v924
  %v932 = vmul.f32 %v930, %v770
  %934 = vrot.lane.b32.xlu0 %v931, 64
  %v935 = vpop.permute.xlu0 %934
  %v937 = vmul.f32 %v930, %v935
  %939 = vrot.lane.b32.xlu0 %v937, 32
  %v940 = vpop.permute.xlu0 %939
  %v942 = vadd.f32 %v932, %v940
  %v943 = vtanh.pop %v942
  %945 = vrot.lane.b32.xlu0 %v943, 64
  %v946 = vpop.permute.xlu0 %945
  %v948 = vmul.f32 %v930, %v946
  %v951 = vunpack.c.l.s4 1983009808
  %v952 = vunpack.c.0.s8 %v951
  %v953 = vlaneseq
  %v954 = vshrl.u32 %v953, 7
  %v955 = vsub.s32 %v952, %v954
  %v956 = vrot.slane %v948, %v955
  %957 = vrot.lane.b32.xlu0 %v956, 32
  %v958 = vpop.permute.xlu0 %957
  %s960 = scalar_lea.vmem %s5, 6
  %961 = vst.msk [vmem:[%s960] sm:$0x3] %vm338, %v958
  %v962 = vpack.c.bf16 %v861, %v861
  %964 = vrot.lane.b32.xlu0 %v962, 32
  %v965 = vpop.permute.xlu0 %964
  %v967 = vsel %vm247, %v965, 0
  %969 = vmatprep.subr.bf16.mxu0 0
  %970 = vmatpush1.bf16.msra.mxu0 %v243
  %971 = vmatprep.subr.bf16.mxu0 0
  %972 = vmatpush1.bf16.msra.mxu0 %v244
  %973 = vmatprep.subr.bf16.mxu0 0
  %974 = vmatpush1.bf16.msra.mxu0 0
  %975 = vmatprep.subr.bf16.mxu0 0
  %976 = vmatpush1.bf16.msra.mxu0 0
  %977 = vmatprep.subr.bf16.mxu0 0
  %978 = vmatpush1.bf16.msra.mxu0 0
  %979 = vmatprep.subr.bf16.mxu0 0
  %980 = vmatpush1.bf16.msra.mxu0 0
  %981 = vmatprep.subr.bf16.mxu0 0
  %982 = vmatpush1.bf16.msra.mxu0 0
  %983 = vmatprep.subr.bf16.mxu0 0
  %984 = vmatpush1.bf16.msra.mxu0 0
  %985 = vmatprep.subr.bf16.mxu0 0
  %986 = vmatpush1.bf16.msra.mxu0 0
  %987 = vmatprep.subr.bf16.mxu0 0
  %988 = vmatpush1.bf16.msra.mxu0 0
  %989 = vmatprep.subr.bf16.mxu0 0
  %990 = vmatpush1.bf16.msra.mxu0 0
  %991 = vmatprep.subr.bf16.mxu0 0
  %992 = vmatpush1.bf16.msra.mxu0 0
  %993 = vmatprep.subr.bf16.mxu0 0
  %994 = vmatpush1.bf16.msra.mxu0 0
  %995 = vmatprep.subr.bf16.mxu0 0
  %996 = vmatpush1.bf16.msra.mxu0 0
  %997 = vmatprep.subr.bf16.mxu0 0
  %998 = vmatpush1.bf16.msra.mxu0 0
  %999 = vmatprep.subr.bf16.mxu0 0
  %1000 = vmatpush1.bf16.msra.mxu0 0
  %1001 = vmatprep.mubr.bf16.mxu0 0
  %1002 = vmatmul.mubr.bf16.gmra.mrb[0].mxu0 %v967
  %v1003 = vpop.f32.mrb[0].mxu0
  %v1004 = vadd.f32 0.0, %v1003
  %v1005 = vpop.f32.mrb[0].mxu0
  %v1006 = vpop.f32.mrb[0].mxu0
  %v1007 = vpop.f32.mrb[0].mxu0
  %1008 = vdwg.mxu0
  %v1009 = vadd.f32 %v203, %v1004
  %v1010 = vxor.u32 %v1009, 2147483648
  %v1011 = vmul.f32 %v1010, 1.442695
  %v1012 = vpow.pop %v1011
  %v1013 = vadd.f32 %v1012, 1.0
  %v1014 = vrcp.pop %v1013
  %v1015 = vmul.f32 1.0, %v1014
  %v1016 = vtanh.pop %v1009
  %v1017 = vmul.f32 %v1015, %v855
  %1019 = vrot.lane.b32.xlu0 %v1016, 64
  %v1020 = vpop.permute.xlu0 %1019
  %v1022 = vmul.f32 %v1015, %v1020
  %1024 = vrot.lane.b32.xlu0 %v1022, 32
  %v1025 = vpop.permute.xlu0 %1024
  %v1027 = vadd.f32 %v1017, %v1025
  %v1028 = vtanh.pop %v1027
  %1030 = vrot.lane.b32.xlu0 %v1028, 64
  %v1031 = vpop.permute.xlu0 %1030
  %v1033 = vmul.f32 %v1015, %v1031
  %v1036 = vunpack.c.l.s4 1983009808
  %v1037 = vunpack.c.0.s8 %v1036
  %v1038 = vlaneseq
  %v1039 = vshrl.u32 %v1038, 7
  %v1040 = vsub.s32 %v1037, %v1039
  %v1041 = vrot.slane %v1033, %v1040
  %1042 = vrot.lane.b32.xlu0 %v1041, 32
  %v1043 = vpop.permute.xlu0 %1042
  %s1045 = scalar_lea.vmem %s4, 8
  %1046 = vst.msk [vmem:[%s1045] sm:$0x3] %vm338, %v1043
  %v1047 = vpack.c.bf16 %v948, %v948
  %1049 = vrot.lane.b32.xlu0 %v1047, 32
  %v1050 = vpop.permute.xlu0 %1049
  %v1052 = vsel %vm247, %v1050, 0
  %1054 = vmatprep.subr.bf16.mxu0 0
  %1055 = vmatpush1.bf16.msra.mxu0 %v349
  %1056 = vmatprep.subr.bf16.mxu0 0
  %1057 = vmatpush1.bf16.msra.mxu0 %v350
  %1058 = vmatprep.subr.bf16.mxu0 0
  %1059 = vmatpush1.bf16.msra.mxu0 0
  %1060 = vmatprep.subr.bf16.mxu0 0
  %1061 = vmatpush1.bf16.msra.mxu0 0
  %1062 = vmatprep.subr.bf16.mxu0 0
  %1063 = vmatpush1.bf16.msra.mxu0 0
  %1064 = vmatprep.subr.bf16.mxu0 0
  %1065 = vmatpush1.bf16.msra.mxu0 0
  %1066 = vmatprep.subr.bf16.mxu0 0
  %1067 = vmatpush1.bf16.msra.mxu0 0
  %1068 = vmatprep.subr.bf16.mxu0 0
  %1069 = vmatpush1.bf16.msra.mxu0 0
  %1070 = vmatprep.subr.bf16.mxu0 0
  %1071 = vmatpush1.bf16.msra.mxu0 0
  %1072 = vmatprep.subr.bf16.mxu0 0
  %1073 = vmatpush1.bf16.msra.mxu0 0
  %1074 = vmatprep.subr.bf16.mxu0 0
  %1075 = vmatpush1.bf16.msra.mxu0 0
  %1076 = vmatprep.subr.bf16.mxu0 0
  %1077 = vmatpush1.bf16.msra.mxu0 0
  %1078 = vmatprep.subr.bf16.mxu0 0
  %1079 = vmatpush1.bf16.msra.mxu0 0
  %1080 = vmatprep.subr.bf16.mxu0 0
  %1081 = vmatpush1.bf16.msra.mxu0 0
  %1082 = vmatprep.subr.bf16.mxu0 0
  %1083 = vmatpush1.bf16.msra.mxu0 0
  %1084 = vmatprep.subr.bf16.mxu0 0
  %1085 = vmatpush1.bf16.msra.mxu0 0
  %1086 = vmatprep.mubr.bf16.mxu0 0
  %1087 = vmatmul.mubr.bf16.gmra.mrb[0].mxu0 %v1052
  %v1088 = vpop.f32.mrb[0].mxu0
  %v1089 = vadd.f32 0.0, %v1088
  %v1090 = vpop.f32.mrb[0].mxu0
  %v1091 = vpop.f32.mrb[0].mxu0
  %v1092 = vpop.f32.mrb[0].mxu0
  %1093 = vdwg.mxu0
  %v1094 = vrot.slane %v203, 2
  %v1096 = vadd.f32 %v1094, %v1089
  %v1097 = vxor.u32 %v1096, 2147483648
  %v1098 = vmul.f32 %v1097, 1.442695
  %v1099 = vpow.pop %v1098
  %v1100 = vadd.f32 %v1099, 1.0
  %v1101 = vrcp.pop %v1100
  %v1102 = vmul.f32 1.0, %v1101
  %v1103 = vtanh.pop %v1096
  %v1104 = vmul.f32 %v1102, %v942
  %1106 = vrot.lane.b32.xlu0 %v1103, 64
  %v1107 = vpop.permute.xlu0 %1106
  %v1109 = vmul.f32 %v1102, %v1107
  %1111 = vrot.lane.b32.xlu0 %v1109, 32
  %v1112 = vpop.permute.xlu0 %1111
  %v1114 = vadd.f32 %v1104, %v1112
  %v1115 = vtanh.pop %v1114
  %1117 = vrot.lane.b32.xlu0 %v1115, 64
  %v1118 = vpop.permute.xlu0 %1117
  %v1120 = vmul.f32 %v1102, %v1118
  %v1123 = vunpack.c.l.s4 1983009808
  %v1124 = vunpack.c.0.s8 %v1123
  %v1125 = vlaneseq
  %v1126 = vshrl.u32 %v1125, 7
  %v1127 = vsub.s32 %v1124, %v1126
  %v1128 = vrot.slane %v1120, %v1127
  %1129 = vrot.lane.b32.xlu0 %v1128, 32
  %v1130 = vpop.permute.xlu0 %1129
  %s1132 = scalar_lea.vmem %s5, 8
  %1133 = vst.msk [vmem:[%s1132] sm:$0x3] %vm338, %v1130
  %v1134 = vpack.c.bf16 %v1033, %v1033
  %1136 = vrot.lane.b32.xlu0 %v1134, 32
  %v1137 = vpop.permute.xlu0 %1136
  %v1139 = vsel %vm247, %v1137, 0
  %1141 = vmatprep.subr.bf16.mxu0 0
  %1142 = vmatpush1.bf16.msra.mxu0 %v243
  %1143 = vmatprep.subr.bf16.mxu0 0
  %1144 = vmatpush1.bf16.msra.mxu0 %v244
  %1145 = vmatprep.subr.bf16.mxu0 0
  %1146 = vmatpush1.bf16.msra.mxu0 0
  %1147 = vmatprep.subr.bf16.mxu0 0
  %1148 = vmatpush1.bf16.msra.mxu0 0
  %1149 = vmatprep.subr.bf16.mxu0 0
  %1150 = vmatpush1.bf16.msra.mxu0 0
  %1151 = vmatprep.subr.bf16.mxu0 0
  %1152 = vmatpush1.bf16.msra.mxu0 0
  %1153 = vmatprep.subr.bf16.mxu0 0
  %1154 = vmatpush1.bf16.msra.mxu0 0
  %1155 = vmatprep.subr.bf16.mxu0 0
  %1156 = vmatpush1.bf16.msra.mxu0 0
  %1157 = vmatprep.subr.bf16.mxu0 0
  %1158 = vmatpush1.bf16.msra.mxu0 0
  %1159 = vmatprep.subr.bf16.mxu0 0
  %1160 = vmatpush1.bf16.msra.mxu0 0
  %1161 = vmatprep.subr.bf16.mxu0 0
  %1162 = vmatpush1.bf16.msra.mxu0 0
  %1163 = vmatprep.subr.bf16.mxu0 0
  %1164 = vmatpush1.bf16.msra.mxu0 0
  %1165 = vmatprep.subr.bf16.mxu0 0
  %1166 = vmatpush1.bf16.msra.mxu0 0
  %1167 = vmatprep.subr.bf16.mxu0 0
  %1168 = vmatpush1.bf16.msra.mxu0 0
  %1169 = vmatprep.subr.bf16.mxu0 0
  %1170 = vmatpush1.bf16.msra.mxu0 0
  %1171 = vmatprep.subr.bf16.mxu0 0
  %1172 = vmatpush1.bf16.msra.mxu0 0
  %1173 = vmatprep.mubr.bf16.mxu0 0
  %1174 = vmatmul.mubr.bf16.gmra.mrb[0].mxu0 %v1139
  %v1175 = vpop.f32.mrb[0].mxu0
  %v1176 = vadd.f32 0.0, %v1175
  %v1177 = vpop.f32.mrb[0].mxu0
  %v1178 = vpop.f32.mrb[0].mxu0
  %v1179 = vpop.f32.mrb[0].mxu0
  %1180 = vdwg.mxu0
  %v1181 = vadd.f32 %v211, %v1176
  %v1182 = vxor.u32 %v1181, 2147483648
  %v1183 = vmul.f32 %v1182, 1.442695
  %v1184 = vpow.pop %v1183
  %v1185 = vadd.f32 %v1184, 1.0
  %v1186 = vrcp.pop %v1185
  %v1187 = vmul.f32 1.0, %v1186
  %v1188 = vtanh.pop %v1181
  %v1189 = vmul.f32 %v1187, %v1027
  %1191 = vrot.lane.b32.xlu0 %v1188, 64
  %v1192 = vpop.permute.xlu0 %1191
  %v1194 = vmul.f32 %v1187, %v1192
  %1196 = vrot.lane.b32.xlu0 %v1194, 32
  %v1197 = vpop.permute.xlu0 %1196
  %v1199 = vadd.f32 %v1189, %v1197
  %v1200 = vtanh.pop %v1199
  %1202 = vrot.lane.b32.xlu0 %v1200, 64
  %v1203 = vpop.permute.xlu0 %1202
  %v1205 = vmul.f32 %v1187, %v1203
  %v1208 = vunpack.c.l.s4 1983009808
  %v1209 = vunpack.c.0.s8 %v1208
  %v1210 = vlaneseq
  %v1211 = vshrl.u32 %v1210, 7
  %v1212 = vsub.s32 %v1209, %v1211
  %v1213 = vrot.slane %v1205, %v1212
  %1214 = vrot.lane.b32.xlu0 %v1213, 32
  %v1215 = vpop.permute.xlu0 %1214
  %s1217 = scalar_lea.vmem %s4, 10
  %1218 = vst.msk [vmem:[%s1217] sm:$0x3] %vm338, %v1215
  %v1219 = vpack.c.bf16 %v1120, %v1120
  %1221 = vrot.lane.b32.xlu0 %v1219, 32
  %v1222 = vpop.permute.xlu0 %1221
  %v1224 = vsel %vm247, %v1222, 0
  %1226 = vmatprep.subr.bf16.mxu0 0
  %1227 = vmatpush1.bf16.msra.mxu0 %v349
  %1228 = vmatprep.subr.bf16.mxu0 0
  %1229 = vmatpush1.bf16.msra.mxu0 %v350
  %1230 = vmatprep.subr.bf16.mxu0 0
  %1231 = vmatpush1.bf16.msra.mxu0 0
  %1232 = vmatprep.subr.bf16.mxu0 0
  %1233 = vmatpush1.bf16.msra.mxu0 0
  %1234 = vmatprep.subr.bf16.mxu0 0
  %1235 = vmatpush1.bf16.msra.mxu0 0
  %1236 = vmatprep.subr.bf16.mxu0 0
  %1237 = vmatpush1.bf16.msra.mxu0 0
  %1238 = vmatprep.subr.bf16.mxu0 0
  %1239 = vmatpush1.bf16.msra.mxu0 0
  %1240 = vmatprep.subr.bf16.mxu0 0
  %1241 = vmatpush1.bf16.msra.mxu0 0
  %1242 = vmatprep.subr.bf16.mxu0 0
  %1243 = vmatpush1.bf16.msra.mxu0 0
  %1244 = vmatprep.subr.bf16.mxu0 0
  %1245 = vmatpush1.bf16.msra.mxu0 0
  %1246 = vmatprep.subr.bf16.mxu0 0
  %1247 = vmatpush1.bf16.msra.mxu0 0
  %1248 = vmatprep.subr.bf16.mxu0 0
  %1249 = vmatpush1.bf16.msra.mxu0 0
  %1250 = vmatprep.subr.bf16.mxu0 0
  %1251 = vmatpush1.bf16.msra.mxu0 0
  %1252 = vmatprep.subr.bf16.mxu0 0
  %1253 = vmatpush1.bf16.msra.mxu0 0
  %1254 = vmatprep.subr.bf16.mxu0 0
  %1255 = vmatpush1.bf16.msra.mxu0 0
  %1256 = vmatprep.subr.bf16.mxu0 0
  %1257 = vmatpush1.bf16.msra.mxu0 0
  %1258 = vmatprep.mubr.bf16.mxu0 0
  %1259 = vmatmul.mubr.bf16.gmra.mrb[0].mxu0 %v1224
  %v1260 = vpop.f32.mrb[0].mxu0
  %v1261 = vadd.f32 0.0, %v1260
  %v1262 = vpop.f32.mrb[0].mxu0
  %v1263 = vpop.f32.mrb[0].mxu0
  %v1264 = vpop.f32.mrb[0].mxu0
  %1265 = vdwg.mxu0
  %v1266 = vrot.slane %v211, 2
  %v1268 = vadd.f32 %v1266, %v1261
  %v1269 = vxor.u32 %v1268, 2147483648
  %v1270 = vmul.f32 %v1269, 1.442695
  %v1271 = vpow.pop %v1270
  %v1272 = vadd.f32 %v1271, 1.0
  %v1273 = vrcp.pop %v1272
  %v1274 = vmul.f32 1.0, %v1273
  %v1275 = vtanh.pop %v1268
  %v1276 = vmul.f32 %v1274, %v1114
  %1278 = vrot.lane.b32.xlu0 %v1275, 64
  %v1279 = vpop.permute.xlu0 %1278
  %v1281 = vmul.f32 %v1274, %v1279
  %1283 = vrot.lane.b32.xlu0 %v1281, 32
  %v1284 = vpop.permute.xlu0 %1283
  %v1286 = vadd.f32 %v1276, %v1284
  %v1287 = vtanh.pop %v1286
  %1289 = vrot.lane.b32.xlu0 %v1287, 64
  %v1290 = vpop.permute.xlu0 %1289
  %v1292 = vmul.f32 %v1274, %v1290
  %v1295 = vunpack.c.l.s4 1983009808
  %v1296 = vunpack.c.0.s8 %v1295
  %v1297 = vlaneseq
  %v1298 = vshrl.u32 %v1297, 7
  %v1299 = vsub.s32 %v1296, %v1298
  %v1300 = vrot.slane %v1292, %v1299
  %1301 = vrot.lane.b32.xlu0 %v1300, 32
  %v1302 = vpop.permute.xlu0 %1301
  %s1304 = scalar_lea.vmem %s5, 10
  %1305 = vst.msk [vmem:[%s1304] sm:$0x3] %vm338, %v1302
  %v1306 = vpack.c.bf16 %v1205, %v1205
  %1308 = vrot.lane.b32.xlu0 %v1306, 32
  %v1309 = vpop.permute.xlu0 %1308
  %v1311 = vsel %vm247, %v1309, 0
  %1313 = vmatprep.subr.bf16.mxu0 0
  %1314 = vmatpush1.bf16.msra.mxu0 %v243
  %1315 = vmatprep.subr.bf16.mxu0 0
  %1316 = vmatpush1.bf16.msra.mxu0 %v244
  %1317 = vmatprep.subr.bf16.mxu0 0
  %1318 = vmatpush1.bf16.msra.mxu0 0
  %1319 = vmatprep.subr.bf16.mxu0 0
  %1320 = vmatpush1.bf16.msra.mxu0 0
  %1321 = vmatprep.subr.bf16.mxu0 0
  %1322 = vmatpush1.bf16.msra.mxu0 0
  %1323 = vmatprep.subr.bf16.mxu0 0
  %1324 = vmatpush1.bf16.msra.mxu0 0
  %1325 = vmatprep.subr.bf16.mxu0 0
  %1326 = vmatpush1.bf16.msra.mxu0 0
  %1327 = vmatprep.subr.bf16.mxu0 0
  %1328 = vmatpush1.bf16.msra.mxu0 0
  %1329 = vmatprep.subr.bf16.mxu0 0
  %1330 = vmatpush1.bf16.msra.mxu0 0
  %1331 = vmatprep.subr.bf16.mxu0 0
  %1332 = vmatpush1.bf16.msra.mxu0 0
  %1333 = vmatprep.subr.bf16.mxu0 0
  %1334 = vmatpush1.bf16.msra.mxu0 0
  %1335 = vmatprep.subr.bf16.mxu0 0
  %1336 = vmatpush1.bf16.msra.mxu0 0
  %1337 = vmatprep.subr.bf16.mxu0 0
  %1338 = vmatpush1.bf16.msra.mxu0 0
  %1339 = vmatprep.subr.bf16.mxu0 0
  %1340 = vmatpush1.bf16.msra.mxu0 0
  %1341 = vmatprep.subr.bf16.mxu0 0
  %1342 = vmatpush1.bf16.msra.mxu0 0
  %1343 = vmatprep.subr.bf16.mxu0 0
  %1344 = vmatpush1.bf16.msra.mxu0 0
  %1345 = vmatprep.mubr.bf16.mxu0 0
  %1346 = vmatmul.mubr.bf16.gmra.mrb[0].mxu0 %v1311
  %v1347 = vpop.f32.mrb[0].mxu0
  %v1348 = vadd.f32 0.0, %v1347
  %v1349 = vpop.f32.mrb[0].mxu0
  %v1350 = vpop.f32.mrb[0].mxu0
  %v1351 = vpop.f32.mrb[0].mxu0
  %1352 = vdwg.mxu0
  %v1353 = vadd.f32 %v210, %v1348
  %v1354 = vxor.u32 %v1353, 2147483648
  %v1355 = vmul.f32 %v1354, 1.442695
  %v1356 = vpow.pop %v1355
  %v1357 = vadd.f32 %v1356, 1.0
  %v1358 = vrcp.pop %v1357
  %v1359 = vmul.f32 1.0, %v1358
  %v1360 = vtanh.pop %v1353
  %v1361 = vmul.f32 %v1359, %v1199
  %1363 = vrot.lane.b32.xlu0 %v1360, 64
  %v1364 = vpop.permute.xlu0 %1363
  %v1366 = vmul.f32 %v1359, %v1364
  %1368 = vrot.lane.b32.xlu0 %v1366, 32
  %v1369 = vpop.permute.xlu0 %1368
  %v1371 = vadd.f32 %v1361, %v1369
  %v1372 = vtanh.pop %v1371
  %1374 = vrot.lane.b32.xlu0 %v1372, 64
  %v1375 = vpop.permute.xlu0 %1374
  %v1377 = vmul.f32 %v1359, %v1375
  %v1380 = vunpack.c.l.s4 1983009808
  %v1381 = vunpack.c.0.s8 %v1380
  %v1382 = vlaneseq
  %v1383 = vshrl.u32 %v1382, 7
  %v1384 = vsub.s32 %v1381, %v1383
  %v1385 = vrot.slane %v1377, %v1384
  %1386 = vrot.lane.b32.xlu0 %v1385, 32
  %v1387 = vpop.permute.xlu0 %1386
  %s1389 = scalar_lea.vmem %s4, 12
  %1390 = vst.msk [vmem:[%s1389] sm:$0x3] %vm338, %v1387
  %v1391 = vpack.c.bf16 %v1292, %v1292
  %1393 = vrot.lane.b32.xlu0 %v1391, 32
  %v1394 = vpop.permute.xlu0 %1393
  %v1396 = vsel %vm247, %v1394, 0
  %1398 = vmatprep.subr.bf16.mxu0 0
  %1399 = vmatpush1.bf16.msra.mxu0 %v349
  %1400 = vmatprep.subr.bf16.mxu0 0
  %1401 = vmatpush1.bf16.msra.mxu0 %v350
  %1402 = vmatprep.subr.bf16.mxu0 0
  %1403 = vmatpush1.bf16.msra.mxu0 0
  %1404 = vmatprep.subr.bf16.mxu0 0
  %1405 = vmatpush1.bf16.msra.mxu0 0
  %1406 = vmatprep.subr.bf16.mxu0 0
  %1407 = vmatpush1.bf16.msra.mxu0 0
  %1408 = vmatprep.subr.bf16.mxu0 0
  %1409 = vmatpush1.bf16.msra.mxu0 0
  %1410 = vmatprep.subr.bf16.mxu0 0
  %1411 = vmatpush1.bf16.msra.mxu0 0
  %1412 = vmatprep.subr.bf16.mxu0 0
  %1413 = vmatpush1.bf16.msra.mxu0 0
  %1414 = vmatprep.subr.bf16.mxu0 0
  %1415 = vmatpush1.bf16.msra.mxu0 0
  %1416 = vmatprep.subr.bf16.mxu0 0
  %1417 = vmatpush1.bf16.msra.mxu0 0
  %1418 = vmatprep.subr.bf16.mxu0 0
  %1419 = vmatpush1.bf16.msra.mxu0 0
  %1420 = vmatprep.subr.bf16.mxu0 0
  %1421 = vmatpush1.bf16.msra.mxu0 0
  %1422 = vmatprep.subr.bf16.mxu0 0
  %1423 = vmatpush1.bf16.msra.mxu0 0
  %1424 = vmatprep.subr.bf16.mxu0 0
  %1425 = vmatpush1.bf16.msra.mxu0 0
  %1426 = vmatprep.subr.bf16.mxu0 0
  %1427 = vmatpush1.bf16.msra.mxu0 0
  %1428 = vmatprep.subr.bf16.mxu0 0
  %1429 = vmatpush1.bf16.msra.mxu0 0
  %1430 = vmatprep.mubr.bf16.mxu0 0
  %1431 = vmatmul.mubr.bf16.gmra.mrb[0].mxu0 %v1396
  %v1432 = vpop.f32.mrb[0].mxu0
  %v1433 = vadd.f32 0.0, %v1432
  %v1434 = vpop.f32.mrb[0].mxu0
  %v1435 = vpop.f32.mrb[0].mxu0
  %v1436 = vpop.f32.mrb[0].mxu0
  %1437 = vdwg.mxu0
  %v1438 = vrot.slane %v210, 2
  %v1440 = vadd.f32 %v1438, %v1433
  %v1441 = vxor.u32 %v1440, 2147483648
  %v1442 = vmul.f32 %v1441, 1.442695
  %v1443 = vpow.pop %v1442
  %v1444 = vadd.f32 %v1443, 1.0
  %v1445 = vrcp.pop %v1444
  %v1446 = vmul.f32 1.0, %v1445
  %v1447 = vtanh.pop %v1440
  %v1448 = vmul.f32 %v1446, %v1286
  %1450 = vrot.lane.b32.xlu0 %v1447, 64
  %v1451 = vpop.permute.xlu0 %1450
  %v1453 = vmul.f32 %v1446, %v1451
  %1455 = vrot.lane.b32.xlu0 %v1453, 32
  %v1456 = vpop.permute.xlu0 %1455
  %v1458 = vadd.f32 %v1448, %v1456
  %v1459 = vtanh.pop %v1458
  %1461 = vrot.lane.b32.xlu0 %v1459, 64
  %v1462 = vpop.permute.xlu0 %1461
  %v1464 = vmul.f32 %v1446, %v1462
  %v1467 = vunpack.c.l.s4 1983009808
  %v1468 = vunpack.c.0.s8 %v1467
  %v1469 = vlaneseq
  %v1470 = vshrl.u32 %v1469, 7
  %v1471 = vsub.s32 %v1468, %v1470
  %v1472 = vrot.slane %v1464, %v1471
  %1473 = vrot.lane.b32.xlu0 %v1472, 32
  %v1474 = vpop.permute.xlu0 %1473
  %s1476 = scalar_lea.vmem %s5, 12
  %1477 = vst.msk [vmem:[%s1476] sm:$0x3] %vm338, %v1474
  %v1478 = vpack.c.bf16 %v1377, %v1377
  %1480 = vrot.lane.b32.xlu0 %v1478, 32
  %v1481 = vpop.permute.xlu0 %1480
  %v1483 = vsel %vm247, %v1481, 0
  %1485 = vmatprep.subr.bf16.mxu0 0
  %1486 = vmatpush1.bf16.msra.mxu0 %v243
  %1487 = vmatprep.subr.bf16.mxu0 0
  %1488 = vmatpush1.bf16.msra.mxu0 %v244
  %1489 = vmatprep.subr.bf16.mxu0 0
  %1490 = vmatpush1.bf16.msra.mxu0 0
  %1491 = vmatprep.subr.bf16.mxu0 0
  %1492 = vmatpush1.bf16.msra.mxu0 0
  %1493 = vmatprep.subr.bf16.mxu0 0
  %1494 = vmatpush1.bf16.msra.mxu0 0
  %1495 = vmatprep.subr.bf16.mxu0 0
  %1496 = vmatpush1.bf16.msra.mxu0 0
  %1497 = vmatprep.subr.bf16.mxu0 0
  %1498 = vmatpush1.bf16.msra.mxu0 0
  %1499 = vmatprep.subr.bf16.mxu0 0
  %1500 = vmatpush1.bf16.msra.mxu0 0
  %1501 = vmatprep.subr.bf16.mxu0 0
  %1502 = vmatpush1.bf16.msra.mxu0 0
  %1503 = vmatprep.subr.bf16.mxu0 0
  %1504 = vmatpush1.bf16.msra.mxu0 0
  %1505 = vmatprep.subr.bf16.mxu0 0
  %1506 = vmatpush1.bf16.msra.mxu0 0
  %1507 = vmatprep.subr.bf16.mxu0 0
  %1508 = vmatpush1.bf16.msra.mxu0 0
  %1509 = vmatprep.subr.bf16.mxu0 0
  %1510 = vmatpush1.bf16.msra.mxu0 0
  %1511 = vmatprep.subr.bf16.mxu0 0
  %1512 = vmatpush1.bf16.msra.mxu0 0
  %1513 = vmatprep.subr.bf16.mxu0 0
  %1514 = vmatpush1.bf16.msra.mxu0 0
  %1515 = vmatprep.subr.bf16.mxu0 0
  %1516 = vmatpush1.bf16.msra.mxu0 0
  %1517 = vmatprep.mubr.bf16.mxu0 0
  %1518 = vmatmul.mubr.bf16.gmra.mrb[0].mxu0 %v1483
  %v1519 = vpop.f32.mrb[0].mxu0
  %v1520 = vadd.f32 0.0, %v1519
  %v1521 = vpop.f32.mrb[0].mxu0
  %v1522 = vpop.f32.mrb[0].mxu0
  %v1523 = vpop.f32.mrb[0].mxu0
  %1524 = vdwg.mxu0
  %v1525 = vadd.f32 %v212, %v1520
  %v1526 = vxor.u32 %v1525, 2147483648
  %v1527 = vmul.f32 %v1526, 1.442695
  %v1528 = vpow.pop %v1527
  %v1529 = vadd.f32 %v1528, 1.0
  %v1530 = vrcp.pop %v1529
  %v1531 = vmul.f32 1.0, %v1530
  %v1532 = vtanh.pop %v1525
  %v1533 = vmul.f32 %v1531, %v1371
  %1535 = vrot.lane.b32.xlu0 %v1532, 64
  %v1536 = vpop.permute.xlu0 %1535
  %v1538 = vmul.f32 %v1531, %v1536
  %1540 = vrot.lane.b32.xlu0 %v1538, 32
  %v1541 = vpop.permute.xlu0 %1540
  %v1543 = vadd.f32 %v1533, %v1541
  %v1544 = vtanh.pop %v1543
  %1546 = vrot.lane.b32.xlu0 %v1544, 64
  %v1547 = vpop.permute.xlu0 %1546
  %v1549 = vmul.f32 %v1531, %v1547
  %v1552 = vunpack.c.l.s4 1983009808
  %v1553 = vunpack.c.0.s8 %v1552
  %v1554 = vlaneseq
  %v1555 = vshrl.u32 %v1554, 7
  %v1556 = vsub.s32 %v1553, %v1555
  %v1557 = vrot.slane %v1549, %v1556
  %1558 = vrot.lane.b32.xlu0 %v1557, 32
  %v1559 = vpop.permute.xlu0 %1558
  %s1561 = scalar_lea.vmem %s4, 14
  %1562 = vst.msk [vmem:[%s1561] sm:$0x3] %vm338, %v1559
  %v1563 = vpack.c.bf16 %v1464, %v1464
  %1565 = vrot.lane.b32.xlu0 %v1563, 32
  %v1566 = vpop.permute.xlu0 %1565
  %v1568 = vsel %vm247, %v1566, 0
  %1570 = vmatprep.subr.bf16.mxu0 0
  %1571 = vmatpush1.bf16.msra.mxu0 %v349
  %1572 = vmatprep.subr.bf16.mxu0 0
  %1573 = vmatpush1.bf16.msra.mxu0 %v350
  %1574 = vmatprep.subr.bf16.mxu0 0
  %1575 = vmatpush1.bf16.msra.mxu0 0
  %1576 = vmatprep.subr.bf16.mxu0 0
  %1577 = vmatpush1.bf16.msra.mxu0 0
  %1578 = vmatprep.subr.bf16.mxu0 0
  %1579 = vmatpush1.bf16.msra.mxu0 0
  %1580 = vmatprep.subr.bf16.mxu0 0
  %1581 = vmatpush1.bf16.msra.mxu0 0
  %1582 = vmatprep.subr.bf16.mxu0 0
  %1583 = vmatpush1.bf16.msra.mxu0 0
  %1584 = vmatprep.subr.bf16.mxu0 0
  %1585 = vmatpush1.bf16.msra.mxu0 0
  %1586 = vmatprep.subr.bf16.mxu0 0
  %1587 = vmatpush1.bf16.msra.mxu0 0
  %1588 = vmatprep.subr.bf16.mxu0 0
  %1589 = vmatpush1.bf16.msra.mxu0 0
  %1590 = vmatprep.subr.bf16.mxu0 0
  %1591 = vmatpush1.bf16.msra.mxu0 0
  %1592 = vmatprep.subr.bf16.mxu0 0
  %1593 = vmatpush1.bf16.msra.mxu0 0
  %1594 = vmatprep.subr.bf16.mxu0 0
  %1595 = vmatpush1.bf16.msra.mxu0 0
  %1596 = vmatprep.subr.bf16.mxu0 0
  %1597 = vmatpush1.bf16.msra.mxu0 0
  %1598 = vmatprep.subr.bf16.mxu0 0
  %1599 = vmatpush1.bf16.msra.mxu0 0
  %1600 = vmatprep.subr.bf16.mxu0 0
  %1601 = vmatpush1.bf16.msra.mxu0 0
  %1602 = vmatprep.mubr.bf16.mxu0 0
  %1603 = vmatmul.mubr.bf16.gmra.mrb[0].mxu0 %v1568
  %v1604 = vpop.f32.mrb[0].mxu0
  %v1605 = vadd.f32 0.0, %v1604
  %v1606 = vpop.f32.mrb[0].mxu0
  %v1607 = vpop.f32.mrb[0].mxu0
  %v1608 = vpop.f32.mrb[0].mxu0
  %1609 = vdwg.mxu0
  %v1610 = vrot.slane %v212, 2
  %v1612 = vadd.f32 %v1610, %v1605
  %v1613 = vxor.u32 %v1612, 2147483648
  %v1614 = vmul.f32 %v1613, 1.442695
  %v1615 = vpow.pop %v1614
  %v1616 = vadd.f32 %v1615, 1.0
  %v1617 = vrcp.pop %v1616
  %v1618 = vmul.f32 1.0, %v1617
  %v1619 = vtanh.pop %v1612
  %v1620 = vmul.f32 %v1618, %v1458
  %1622 = vrot.lane.b32.xlu0 %v1619, 64
  %v1623 = vpop.permute.xlu0 %1622
  %v1625 = vmul.f32 %v1618, %v1623
  %1627 = vrot.lane.b32.xlu0 %v1625, 32
  %v1628 = vpop.permute.xlu0 %1627
  %v1630 = vadd.f32 %v1620, %v1628
  %v1631 = vtanh.pop %v1630
  %1633 = vrot.lane.b32.xlu0 %v1631, 64
  %v1634 = vpop.permute.xlu0 %1633
  %v1636 = vmul.f32 %v1618, %v1634
  %v1639 = vunpack.c.l.s4 1983009808
  %v1640 = vunpack.c.0.s8 %v1639
  %v1641 = vlaneseq
  %v1642 = vshrl.u32 %v1641, 7
  %v1643 = vsub.s32 %v1640, %v1642
  %v1644 = vrot.slane %v1636, %v1643
  %1645 = vrot.lane.b32.xlu0 %v1644, 32
  %v1646 = vpop.permute.xlu0 %1645
  %s1648 = scalar_lea.vmem %s5, 14
  %1649 = vst.msk [vmem:[%s1648] sm:$0x3] %vm338, %v1646
  %1650 = vst.msk [vmem:[#allocation2] sm:$0x3] %vm338, %v1559
  %1651 = vst.msk [vmem:[#allocation2 + $0x2] sm:$0x3] %vm338, %v1646
  %v1655 = vunpack.c.l.s4 1983009808
  %v1656 = vunpack.c.0.s8 %v1655
  %v1657 = vlaneseq
  %v1658 = vshrl.u32 %v1657, 7
  %v1659 = vsub.s32 %v1656, %v1658
  %v1660 = vrot.slane %v1543, %v1659
  %v1662 = vunpack.c.l.s4 1983009808
  %v1663 = vunpack.c.0.s8 %v1662
  %v1664 = vlaneseq
  %v1665 = vshrl.u32 %v1664, 7
  %v1666 = vsub.s32 %v1663, %v1665
  %v1667 = vrot.slane %v1630, %v1666
  %1668 = vrot.lane.b32.xlu0 %v1660, 96
  %v1669 = vpop.permute.xlu0 %1668
  %1670 = vrot.lane.b32.xlu0 %v1667, 96
  %v1671 = vpop.permute.xlu0 %1670
  %1674 = vst.msk [vmem:[#allocation3] sm:$0x3] %vm338, %v1669
  %1675 = vst.msk [vmem:[#allocation3 + $0x2] sm:$0x3] %vm338, %v1671
  // Predicated region
  $region22: #{e2e_forward.6} parent=0 // pred_check
    _
  $region23: #{e2e_forward.6} parent=0 // pred_check_branch
    %1677 = sbr.rel (0) target = $region25
  $region24: #{e2e_forward.6} parent=0 // pred_region
    _
  $region25: #{e2e_forward.6} parent=0 // pred_fallthru
    _
  // Predicated region
  $region26: #{e2e_forward.6} parent=0 // pred_check
    _
  $region27: #{e2e_forward.6} parent=0 // pred_check_branch
    %1679 = sbr.rel (0) target = $region29
  $region28: #{e2e_forward.6} parent=0 // pred_region
    _
  $region29: #{e2e_forward.6} parent=0 // pred_fallthru
    _
  // Predicated region
  $region30: #{e2e_forward.6} parent=0 // pred_check
    _
  $region31: #{e2e_forward.6} parent=0 // pred_check_branch
    %1681 = sbr.rel (0) target = $region33
  $region32: #{e2e_forward.6} parent=0 // pred_region
    _
  $region33: #{e2e_forward.6} parent=0 // pred_fallthru
    _
  // Predicated region
  $region34: #{e2e_forward.6} parent=0 // pred_check
    _
  $region35: #{e2e_forward.6} parent=0 // pred_check_branch
    %1683 = sbr.rel (0) target = $region37
  $region36: #{e2e_forward.6} parent=0 // pred_region
    _
  $region37: #{e2e_forward.6} parent=0 // pred_fallthru
    _

</llo_original>
